<compile_context>
chip_gen: v7x
topology: tpu7x:2x2x1
jax: 0.10.0
libtpu: 0.0.40
codegen_flags: <defaults>
</compile_context>

<pallas_src>
import math

import jax
import jax.numpy as jnp
from jax.experimental import pallas as pl
from jax.experimental.pallas import tpu as pltpu

# --- hyperparameters (module defaults, small) ---
VOCAB_SIZE = 32
D_MODEL = 64
NHEAD = 4
NUM_LAYERS = 3
DIM_FF = 128
MAX_SEQ_LEN = 16
PAD_IDX = 0
LN_EPS = 1e-5
NEG_INF = -1e30           # additive attention-mask value
OUT_PAD = 128             # output lane padding (>= VOCAB_SIZE)


def _layernorm(x, w, b):
    mean = jnp.mean(x, axis=-1, keepdims=True)
    var = jnp.mean((x - mean) ** 2, axis=-1, keepdims=True)
    return (x - mean) * jax.lax.rsqrt(var + LN_EPS) * w + b


# ----------------------------- fused Pallas kernel --------------------------

def fused_forward_kernel(src_col_ref, mask_ref, emb_ref, pe_ref,
                         wqkv_ref, bqkv_ref, wo_ref, w1_ref, b1_ref, w2_ref,
                         vecd_ref, wout_ref, bout_ref, out_ref):
    """Embedding + PE + NUM_LAYERS post-norm encoder layers + output linear."""
    BS = src_col_ref.shape[0]
    V, D = emb_ref.shape
    S = pe_ref.shape[0]
    B = BS // S
    L = wqkv_ref.shape[0]
    H = NHEAD
    hd = D // H
    scale = 1.0 / math.sqrt(hd)

    # ---- embedding gather as a one-hot matmul (table resident in VMEM) ----
    tok = src_col_ref[...]                                          # (BS, 1) i32
    onehot = (tok == jax.lax.broadcasted_iota(jnp.int32, (BS, V), 1)
              ).astype(jnp.bfloat16)                                # (BS, V)
    x = jnp.dot(onehot, emb_ref[...], preferred_element_type=jnp.float32)
    x = x * math.sqrt(D)
    # broadcast PE over batch with a cheap sublane concat (no wrapper tile)
    x = x + jnp.concatenate([pe_ref[...]] * B, axis=0)              # (BS, D) f32

    # layer-invariant additive attention bias: block-diag + key padding
    mask = mask_ref[...]                                            # (H*BS, H*BS)

    for l in range(L):
        vd = vecd_ref[l]                                            # (8, D) f32
        b_o  = vd[0:1, :]
        b_2  = vd[1:2, :]
        ln1w = vd[2:3, :]
        ln1b = vd[3:4, :]
        ln2w = vd[4:5, :]
        ln2b = vd[5:6, :]

        # ---- fused QKV projection for the whole (BS, D) slab ----
        x_bf = x.astype(jnp.bfloat16)
        qkv = jnp.dot(x_bf, wqkv_ref[l],
                      preferred_element_type=jnp.float32) + bqkv_ref[l]  # (BS, 3D)

        # ---- head-major relayout: rows ordered (head, batch, seq) ----
        qh = jnp.concatenate(
            [qkv[:, h * hd:(h + 1) * hd] for h in range(H)], axis=0
        ).astype(jnp.bfloat16)                                      # (H*BS, hd)
        kh = jnp.concatenate(
            [qkv[:, D + h * hd:D + (h + 1) * hd] for h in range(H)], axis=0
        ).astype(jnp.bfloat16)
        vh = jnp.concatenate(
            [qkv[:, 2 * D + h * hd:2 * D + (h + 1) * hd] for h in range(H)], axis=0
        ).astype(jnp.bfloat16)

        # ---- block-diagonal attention: ONE score matmul for all (b, h) ----
        s = jax.lax.dot_general(qh, kh, (((1,), (1,)), ((), ())),
                                preferred_element_type=jnp.float32)  # (H*BS, H*BS)
        s = s * scale + mask
        s = s - jnp.max(s, axis=-1, keepdims=True)
        p = jnp.exp(s)
        # exact divide (matches torch softmax; approx reciprocal dropped)
        p = p / jnp.sum(p, axis=-1, keepdims=True)
        # TODO(synk): fully-padded rows give a uniform softmax over pads here,
        # whereas torch MHA would emit NaNs; not exercised by the test data.
        ctx = jnp.dot(p.astype(jnp.bfloat16), vh,
                      preferred_element_type=jnp.float32)            # (H*BS, hd)

        # back to (BS, D): sublane slices + lane concat, then ONE Wo matmul
        ctx_bs = jnp.concatenate(
            [ctx[h * BS:(h + 1) * BS, :] for h in range(H)], axis=1)  # (BS, D)
        attn = jnp.dot(ctx_bs.astype(jnp.bfloat16), wo_ref[l],
                       preferred_element_type=jnp.float32) + b_o

        # ---- residual + LN1, FFN (relu), residual + LN2 (post-norm) ----
        y = _layernorm(x + attn, ln1w, ln1b)
        hidden = jnp.maximum(
            jnp.dot(y.astype(jnp.bfloat16), w1_ref[l],
                    preferred_element_type=jnp.float32) + b1_ref[l], 0.0)
        ffn = jnp.dot(hidden.astype(jnp.bfloat16), w2_ref[l],
                      preferred_element_type=jnp.float32) + b_2
        x = _layernorm(y + ffn, ln2w, ln2b)

    # ---- output linear (lane-padded to 128 for unmasked full-lane stores) ----
    out_ref[...] = (jnp.dot(x.astype(jnp.bfloat16), wout_ref[...],
                            preferred_element_type=jnp.float32) + bout_ref[...])


# ------------------------------ wrapper --------------------------------------

@jax.jit
def forward(params, src):
    """src: int32 [batch, seq] -> logits float32 [batch, seq, vocab]."""
    B, S = src.shape
    src = src.astype(jnp.int32)
    BS = B * S
    BHS = B * NHEAD * S

    # Layer-invariant additive attention mask, rows/cols ordered (head, batch,
    # seq): allow only the diagonal (head, batch) blocks, and mask padded keys.
    blk_r = jax.lax.broadcasted_iota(jnp.int32, (BHS, BHS), 0) // S
    blk_c = jax.lax.broadcasted_iota(jnp.int32, (BHS, BHS), 1) // S
    key_pad = jnp.tile((src == PAD_IDX).reshape(1, BS), (1, NHEAD))   # (1, BHS)
    mask = jnp.where((blk_r == blk_c) & jnp.logical_not(key_pad),
                     0.0, NEG_INF).astype(jnp.float32)

    vmem = pl.BlockSpec(memory_space=pltpu.MemorySpace.VMEM)
    logits = pl.pallas_call(
        fused_forward_kernel,
        out_shape=jax.ShapeDtypeStruct((BS, OUT_PAD), jnp.float32),
        in_specs=[vmem] * 13,
        out_specs=vmem,
    )(src.reshape(BS, 1),            # token ids as a column (one-hot gather)
      mask,                          # (BHS, BHS) additive attention bias
      params["emb"],                 # (V, D)        bf16
      params["pe"][:S],              # (S, D)        f32
      params["wqkv"],                # (L, D, 3D)    bf16
      params["bqkv"],                # (L, 1, 3D)    f32
      params["wo"],                  # (L, D, D)     bf16
      params["w1"],                  # (L, D, FF)    bf16
      params["b1"],                  # (L, 1, FF)    f32
      params["w2"],                  # (L, FF, D)    bf16
      params["vecd"],                # (L, 8, D)     f32 packed 1-row params
      params["wout"],                # (D, 128)      bf16 (lane-padded)
      params["bout"])                # (1, 128)      f32  (lane-padded)
    return logits[:, :VOCAB_SIZE].reshape(B, S, VOCAB_SIZE)


# -------------------------- parameters & glue --------------------------------

def positional_encoding(max_len, d_model):
    position = jnp.arange(max_len, dtype=jnp.float32)[:, None]
    div_term = jnp.exp(jnp.arange(0, d_model, 2, dtype=jnp.float32)
                       * (-math.log(10000.0) / d_model))
    pe = jnp.zeros((max_len, d_model), jnp.float32)
    pe = pe.at[:, 0::2].set(jnp.sin(position * div_term))
    pe = pe.at[:, 1::2].set(jnp.cos(position * div_term))
    return pe


def init_params(key):
    keys = iter(jax.random.split(key, 2 + 4 * NUM_LAYERS))

    def unif(shape, scale=0.1):
        return jax.random.uniform(next(keys), shape, jnp.float32, -scale, scale)

    # _init_weights overwrites the embedding (incl. the pad row) with uniform,
    # matching the reference module.
    emb = unif((VOCAB_SIZE, D_MODEL)).astype(jnp.bfloat16)

    wqkv = jnp.stack([unif((D_MODEL, 3 * D_MODEL)) for _ in range(NUM_LAYERS)]
                     ).astype(jnp.bfloat16)
    wo = jnp.stack([unif((D_MODEL, D_MODEL)) for _ in range(NUM_LAYERS)]
                   ).astype(jnp.bfloat16)
    w1 = jnp.stack([unif((D_MODEL, DIM_FF)) for _ in range(NUM_LAYERS)]
                   ).astype(jnp.bfloat16)
    w2 = jnp.stack([unif((DIM_FF, D_MODEL)) for _ in range(NUM_LAYERS)]
                   ).astype(jnp.bfloat16)

    bqkv = jnp.zeros((NUM_LAYERS, 1, 3 * D_MODEL), jnp.float32)
    b1 = jnp.zeros((NUM_LAYERS, 1, DIM_FF), jnp.float32)

    # packed D-wide 1-row params, rows: [b_o, b_2, ln1w, ln1b, ln2w, ln2b, 0, 0]
    vecd = jnp.zeros((NUM_LAYERS, 8, D_MODEL), jnp.float32)
    vecd = vecd.at[:, 2, :].set(1.0)   # LayerNorm1 weight
    vecd = vecd.at[:, 4, :].set(1.0)   # LayerNorm2 weight

    wout = jnp.zeros((D_MODEL, OUT_PAD), jnp.float32)
    wout = wout.at[:, :VOCAB_SIZE].set(unif((D_MODEL, VOCAB_SIZE))
                                       ).astype(jnp.bfloat16)
    bout = jnp.zeros((1, OUT_PAD), jnp.float32)

    pe = positional_encoding(MAX_SEQ_LEN, D_MODEL)
    return dict(emb=emb, pe=pe, wqkv=wqkv, bqkv=bqkv, wo=wo, w1=w1, b1=b1,
                w2=w2, vecd=vecd, wout=wout, bout=bout)


if __name__ == "__main__":
    key = jax.random.PRNGKey(0)
    k_param, k_src = jax.random.split(key)

    params = init_params(k_param)

    B, S = 2, 8
    src = jax.random.randint(k_src, (B, S), 1, VOCAB_SIZE, dtype=jnp.int32)
    src = src.at[1, 6:].set(PAD_IDX)   # exercise the key-padding mask

    out = forward(params, src)
    jax.block_until_ready(out)
    assert out.shape == (B, S, VOCAB_SIZE)
    assert bool(jnp.all(jnp.isfinite(out)))
    print("KERNEL_OK")
</pallas_src>

<mosaic_0001>
module attributes {stable_mosaic.version = 11 : i64} {
  func.func @fused_forward_kernel(%arg0: memref<16x1xi32, #tpu.memory_space<vmem>>, %arg1: memref<64x64xf32, #tpu.memory_space<vmem>>, %arg2: memref<32x64xbf16, #tpu.memory_space<vmem>>, %arg3: memref<8x64xf32, #tpu.memory_space<vmem>>, %arg4: memref<3x64x192xbf16, #tpu.memory_space<vmem>>, %arg5: memref<3x1x192xf32, #tpu.memory_space<vmem>>, %arg6: memref<3x64x64xbf16, #tpu.memory_space<vmem>>, %arg7: memref<3x64x128xbf16, #tpu.memory_space<vmem>>, %arg8: memref<3x1x128xf32, #tpu.memory_space<vmem>>, %arg9: memref<3x128x64xbf16, #tpu.memory_space<vmem>>, %arg10: memref<3x8x64xf32, #tpu.memory_space<vmem>>, %arg11: memref<64x128xbf16, #tpu.memory_space<vmem>>, %arg12: memref<1x128xf32, #tpu.memory_space<vmem>>, %arg13: memref<16x128xf32, #tpu.memory_space<vmem>>) attributes {dimension_semantics = [], scalar_prefetch = 0 : i64, scratch_operands = 0 : i64, tpu.core_type = #tpu.core_type<tc>} {
    %c0 = arith.constant 0 : index
    %c0_0 = arith.constant 0 : index
    %0 = vector.load %arg0[%c0, %c0_0] : memref<16x1xi32, #tpu.memory_space<vmem>>, vector<16x1xi32>
    %1 = tpu.iota {dimensions = array<i32: 1>} : vector<16x32xi32>
    %2 = vector.broadcast %0 : vector<16x1xi32> to vector<16x32xi32>
    %3 = arith.cmpi eq, %2, %1 : vector<16x32xi32>
    %4 = arith.extui %3 : vector<16x32xi1> to vector<16x32xi32>
    %5 = arith.sitofp %4 : vector<16x32xi32> to vector<16x32xf32>
    %6 = arith.truncf %5 : vector<16x32xf32> to vector<16x32xbf16>
    %c0_1 = arith.constant 0 : index
    %c0_2 = arith.constant 0 : index
    %7 = vector.load %arg2[%c0_1, %c0_2] : memref<32x64xbf16, #tpu.memory_space<vmem>>, vector<32x64xbf16>
    %cst = arith.constant dense<0.000000e+00> : vector<16x64xf32>
    %8 = tpu.matmul %6, %7, %cst {dimension_numbers = #tpu.dot_dimension_numbers<[1], [0], [0], [1], [0, 0, 1, 1], [], []>} : vector<16x32xbf16>, vector<32x64xbf16>, vector<16x64xf32> -> vector<16x64xf32>
    %cst_3 = arith.constant 8.000000e+00 : f32
    %9 = vector.broadcast %cst_3 : f32 to vector<16x64xf32>
    %10 = arith.mulf %8, %9 : vector<16x64xf32>
    %c0_4 = arith.constant 0 : index
    %c0_5 = arith.constant 0 : index
    %11 = vector.load %arg3[%c0_4, %c0_5] : memref<8x64xf32, #tpu.memory_space<vmem>>, vector<8x64xf32>
    %12 = tpu.concatenate %11, %11 in 0 : vector<8x64xf32>, vector<8x64xf32> -> vector<16x64xf32>
    %13 = arith.addf %10, %12 : vector<16x64xf32>
    %c0_6 = arith.constant 0 : index
    %c0_7 = arith.constant 0 : index
    %14 = vector.load %arg1[%c0_6, %c0_7] : memref<64x64xf32, #tpu.memory_space<vmem>>, vector<64x64xf32>
    %c0_8 = arith.constant 0 : index
    %c0_9 = arith.constant 0 : index
    %c0_10 = arith.constant 0 : index
    %15 = vector.load %arg10[%c0_8, %c0_9, %c0_10] : memref<3x8x64xf32, #tpu.memory_space<vmem>>, vector<1x8x64xf32>
    %16 = vector.shape_cast %15 : vector<1x8x64xf32> to vector<8x64xf32>
    %17 = vector.extract_strided_slice %16 {offsets = [0, 0], sizes = [1, 64], strides = [1, 1]} : vector<8x64xf32> to vector<1x64xf32>
    %18 = vector.extract_strided_slice %16 {offsets = [1, 0], sizes = [1, 64], strides = [1, 1]} : vector<8x64xf32> to vector<1x64xf32>
    %19 = vector.extract_strided_slice %16 {offsets = [2, 0], sizes = [1, 64], strides = [1, 1]} : vector<8x64xf32> to vector<1x64xf32>
    %20 = vector.extract_strided_slice %16 {offsets = [3, 0], sizes = [1, 64], strides = [1, 1]} : vector<8x64xf32> to vector<1x64xf32>
    %21 = vector.extract_strided_slice %16 {offsets = [4, 0], sizes = [1, 64], strides = [1, 1]} : vector<8x64xf32> to vector<1x64xf32>
    %22 = vector.extract_strided_slice %16 {offsets = [5, 0], sizes = [1, 64], strides = [1, 1]} : vector<8x64xf32> to vector<1x64xf32>
    %23 = arith.truncf %13 : vector<16x64xf32> to vector<16x64xbf16>
    %c0_11 = arith.constant 0 : index
    %c0_12 = arith.constant 0 : index
    %c0_13 = arith.constant 0 : index
    %24 = vector.load %arg4[%c0_11, %c0_12, %c0_13] : memref<3x64x192xbf16, #tpu.memory_space<vmem>>, vector<1x64x192xbf16>
    %25 = vector.shape_cast %24 : vector<1x64x192xbf16> to vector<64x192xbf16>
    %cst_14 = arith.constant dense<0.000000e+00> : vector<16x192xf32>
    %26 = tpu.matmul %23, %25, %cst_14 {dimension_numbers = #tpu.dot_dimension_numbers<[1], [0], [0], [1], [0, 0, 1, 1], [], []>} : vector<16x64xbf16>, vector<64x192xbf16>, vector<16x192xf32> -> vector<16x192xf32>
    %c0_15 = arith.constant 0 : index
    %c0_16 = arith.constant 0 : index
    %c0_17 = arith.constant 0 : index
    %27 = vector.load %arg5[%c0_15, %c0_16, %c0_17] : memref<3x1x192xf32, #tpu.memory_space<vmem>>, vector<1x1x192xf32>
    %28 = vector.shape_cast %27 : vector<1x1x192xf32> to vector<1x192xf32>
    %29 = vector.broadcast %28 : vector<1x192xf32> to vector<16x192xf32>
    %30 = arith.addf %26, %29 : vector<16x192xf32>
    %31 = vector.extract_strided_slice %30 {offsets = [0, 0], sizes = [16, 16], strides = [1, 1]} : vector<16x192xf32> to vector<16x16xf32>
    %32 = vector.extract_strided_slice %30 {offsets = [0, 16], sizes = [16, 16], strides = [1, 1]} : vector<16x192xf32> to vector<16x16xf32>
    %33 = vector.extract_strided_slice %30 {offsets = [0, 32], sizes = [16, 16], strides = [1, 1]} : vector<16x192xf32> to vector<16x16xf32>
    %34 = vector.extract_strided_slice %30 {offsets = [0, 48], sizes = [16, 16], strides = [1, 1]} : vector<16x192xf32> to vector<16x16xf32>
    %35 = tpu.concatenate %31, %32, %33, %34 in 0 : vector<16x16xf32>, vector<16x16xf32>, vector<16x16xf32>, vector<16x16xf32> -> vector<64x16xf32>
    %36 = arith.truncf %35 : vector<64x16xf32> to vector<64x16xbf16>
    %37 = vector.extract_strided_slice %30 {offsets = [0, 64], sizes = [16, 16], strides = [1, 1]} : vector<16x192xf32> to vector<16x16xf32>
    %38 = vector.extract_strided_slice %30 {offsets = [0, 80], sizes = [16, 16], strides = [1, 1]} : vector<16x192xf32> to vector<16x16xf32>
    %39 = vector.extract_strided_slice %30 {offsets = [0, 96], sizes = [16, 16], strides = [1, 1]} : vector<16x192xf32> to vector<16x16xf32>
    %40 = vector.extract_strided_slice %30 {offsets = [0, 112], sizes = [16, 16], strides = [1, 1]} : vector<16x192xf32> to vector<16x16xf32>
    %41 = tpu.concatenate %37, %38, %39, %40 in 0 : vector<16x16xf32>, vector<16x16xf32>, vector<16x16xf32>, vector<16x16xf32> -> vector<64x16xf32>
    %42 = arith.truncf %41 : vector<64x16xf32> to vector<64x16xbf16>
    %43 = vector.extract_strided_slice %30 {offsets = [0, 128], sizes = [16, 16], strides = [1, 1]} : vector<16x192xf32> to vector<16x16xf32>
    %44 = vector.extract_strided_slice %30 {offsets = [0, 144], sizes = [16, 16], strides = [1, 1]} : vector<16x192xf32> to vector<16x16xf32>
    %45 = vector.extract_strided_slice %30 {offsets = [0, 160], sizes = [16, 16], strides = [1, 1]} : vector<16x192xf32> to vector<16x16xf32>
    %46 = vector.extract_strided_slice %30 {offsets = [0, 176], sizes = [16, 16], strides = [1, 1]} : vector<16x192xf32> to vector<16x16xf32>
    %47 = tpu.concatenate %43, %44, %45, %46 in 0 : vector<16x16xf32>, vector<16x16xf32>, vector<16x16xf32>, vector<16x16xf32> -> vector<64x16xf32>
    %48 = arith.truncf %47 : vector<64x16xf32> to vector<64x16xbf16>
    %cst_18 = arith.constant dense<0.000000e+00> : vector<64x64xf32>
    %49 = tpu.matmul %36, %42, %cst_18 {dimension_numbers = #tpu.dot_dimension_numbers<[1], [1], [0], [0], [0, 0, 1, 0], [], []>} : vector<64x16xbf16>, vector<64x16xbf16>, vector<64x64xf32> -> vector<64x64xf32>
    %cst_19 = arith.constant 2.500000e-01 : f32
    %50 = vector.broadcast %cst_19 : f32 to vector<64x64xf32>
    %51 = arith.mulf %49, %50 : vector<64x64xf32>
    %52 = arith.addf %51, %14 : vector<64x64xf32>
    %cst_20 = arith.constant dense<0xFF800000> : vector<64xf32>
    %53 = vector.multi_reduction <maximumf>, %52, %cst_20 [1] : vector<64x64xf32> to vector<64xf32>
    %54 = vector.shape_cast %53 : vector<64xf32> to vector<64x1xf32>
    %55 = vector.broadcast %54 : vector<64x1xf32> to vector<64x64xf32>
    %56 = arith.subf %52, %55 : vector<64x64xf32>
    %57 = math.exp %56 : vector<64x64xf32>
    %cst_21 = arith.constant dense<0.000000e+00> : vector<64xf32>
    %58 = vector.multi_reduction <add>, %57, %cst_21 [1] : vector<64x64xf32> to vector<64xf32>
    %59 = vector.shape_cast %58 : vector<64xf32> to vector<64x1xf32>
    %60 = vector.broadcast %59 : vector<64x1xf32> to vector<64x64xf32>
    %61 = arith.divf %57, %60 : vector<64x64xf32>
    %62 = arith.truncf %61 : vector<64x64xf32> to vector<64x64xbf16>
    %cst_22 = arith.constant dense<0.000000e+00> : vector<64x16xf32>
    %63 = tpu.matmul %62, %48, %cst_22 {dimension_numbers = #tpu.dot_dimension_numbers<[1], [0], [0], [1], [0, 0, 1, 1], [], []>} : vector<64x64xbf16>, vector<64x16xbf16>, vector<64x16xf32> -> vector<64x16xf32>
    %64 = vector.extract_strided_slice %63 {offsets = [0, 0], sizes = [16, 16], strides = [1, 1]} : vector<64x16xf32> to vector<16x16xf32>
    %65 = vector.extract_strided_slice %63 {offsets = [16, 0], sizes = [16, 16], strides = [1, 1]} : vector<64x16xf32> to vector<16x16xf32>
    %66 = vector.extract_strided_slice %63 {offsets = [32, 0], sizes = [16, 16], strides = [1, 1]} : vector<64x16xf32> to vector<16x16xf32>
    %67 = vector.extract_strided_slice %63 {offsets = [48, 0], sizes = [16, 16], strides = [1, 1]} : vector<64x16xf32> to vector<16x16xf32>
    %68 = tpu.concatenate %64, %65, %66, %67 in 1 : vector<16x16xf32>, vector<16x16xf32>, vector<16x16xf32>, vector<16x16xf32> -> vector<16x64xf32>
    %69 = arith.truncf %68 : vector<16x64xf32> to vector<16x64xbf16>
    %c0_23 = arith.constant 0 : index
    %c0_24 = arith.constant 0 : index
    %c0_25 = arith.constant 0 : index
    %70 = vector.load %arg6[%c0_23, %c0_24, %c0_25] : memref<3x64x64xbf16, #tpu.memory_space<vmem>>, vector<1x64x64xbf16>
    %71 = vector.shape_cast %70 : vector<1x64x64xbf16> to vector<64x64xbf16>
    %cst_26 = arith.constant dense<0.000000e+00> : vector<16x64xf32>
    %72 = tpu.matmul %69, %71, %cst_26 {dimension_numbers = #tpu.dot_dimension_numbers<[1], [0], [0], [1], [0, 0, 1, 1], [], []>} : vector<16x64xbf16>, vector<64x64xbf16>, vector<16x64xf32> -> vector<16x64xf32>
    %73 = vector.broadcast %17 : vector<1x64xf32> to vector<16x64xf32>
    %74 = arith.addf %72, %73 : vector<16x64xf32>
    %75 = arith.addf %13, %74 : vector<16x64xf32>
    %cst_27 = arith.constant dense<0.000000e+00> : vector<16xf32>
    %76 = vector.multi_reduction <add>, %75, %cst_27 [1] : vector<16x64xf32> to vector<16xf32>
    %77 = vector.shape_cast %76 : vector<16xf32> to vector<16x1xf32>
    %cst_28 = arith.constant 6.400000e+01 : f32
    %78 = vector.broadcast %cst_28 : f32 to vector<16x1xf32>
    %79 = arith.divf %77, %78 : vector<16x1xf32>
    %80 = vector.broadcast %79 : vector<16x1xf32> to vector<16x64xf32>
    %81 = arith.subf %75, %80 : vector<16x64xf32>
    %82 = arith.mulf %81, %81 : vector<16x64xf32>
    %cst_29 = arith.constant dense<0.000000e+00> : vector<16xf32>
    %83 = vector.multi_reduction <add>, %82, %cst_29 [1] : vector<16x64xf32> to vector<16xf32>
    %84 = vector.shape_cast %83 : vector<16xf32> to vector<16x1xf32>
    %cst_30 = arith.constant 6.400000e+01 : f32
    %85 = vector.broadcast %cst_30 : f32 to vector<16x1xf32>
    %86 = arith.divf %84, %85 : vector<16x1xf32>
    %87 = vector.broadcast %79 : vector<16x1xf32> to vector<16x64xf32>
    %88 = arith.subf %75, %87 : vector<16x64xf32>
    %cst_31 = arith.constant 9.99999974E-6 : f32
    %89 = vector.broadcast %cst_31 : f32 to vector<16x1xf32>
    %90 = arith.addf %86, %89 : vector<16x1xf32>
    %91 = math.rsqrt %90 : vector<16x1xf32>
    %92 = vector.broadcast %91 : vector<16x1xf32> to vector<16x64xf32>
    %93 = arith.mulf %88, %92 : vector<16x64xf32>
    %94 = vector.broadcast %19 : vector<1x64xf32> to vector<16x64xf32>
    %95 = arith.mulf %93, %94 : vector<16x64xf32>
    %96 = vector.broadcast %20 : vector<1x64xf32> to vector<16x64xf32>
    %97 = arith.addf %95, %96 : vector<16x64xf32>
    %98 = arith.truncf %97 : vector<16x64xf32> to vector<16x64xbf16>
    %c0_32 = arith.constant 0 : index
    %c0_33 = arith.constant 0 : index
    %c0_34 = arith.constant 0 : index
    %99 = vector.load %arg7[%c0_32, %c0_33, %c0_34] : memref<3x64x128xbf16, #tpu.memory_space<vmem>>, vector<1x64x128xbf16>
    %100 = vector.shape_cast %99 : vector<1x64x128xbf16> to vector<64x128xbf16>
    %cst_35 = arith.constant dense<0.000000e+00> : vector<16x128xf32>
    %101 = tpu.matmul %98, %100, %cst_35 {dimension_numbers = #tpu.dot_dimension_numbers<[1], [0], [0], [1], [0, 0, 1, 1], [], []>} : vector<16x64xbf16>, vector<64x128xbf16>, vector<16x128xf32> -> vector<16x128xf32>
    %c0_36 = arith.constant 0 : index
    %c0_37 = arith.constant 0 : index
    %c0_38 = arith.constant 0 : index
    %102 = vector.load %arg8[%c0_36, %c0_37, %c0_38] : memref<3x1x128xf32, #tpu.memory_space<vmem>>, vector<1x1x128xf32>
    %103 = vector.shape_cast %102 : vector<1x1x128xf32> to vector<1x128xf32>
    %104 = vector.broadcast %103 : vector<1x128xf32> to vector<16x128xf32>
    %105 = arith.addf %101, %104 : vector<16x128xf32>
    %cst_39 = arith.constant 0.000000e+00 : f32
    %106 = vector.broadcast %cst_39 : f32 to vector<16x128xf32>
    %107 = arith.maximumf %105, %106 : vector<16x128xf32>
    %108 = arith.truncf %107 : vector<16x128xf32> to vector<16x128xbf16>
    %c0_40 = arith.constant 0 : index
    %c0_41 = arith.constant 0 : index
    %c0_42 = arith.constant 0 : index
    %109 = vector.load %arg9[%c0_40, %c0_41, %c0_42] : memref<3x128x64xbf16, #tpu.memory_space<vmem>>, vector<1x128x64xbf16>
    %110 = vector.shape_cast %109 : vector<1x128x64xbf16> to vector<128x64xbf16>
    %cst_43 = arith.constant dense<0.000000e+00> : vector<16x64xf32>
    %111 = tpu.matmul %108, %110, %cst_43 {dimension_numbers = #tpu.dot_dimension_numbers<[1], [0], [0], [1], [0, 0, 1, 1], [], []>} : vector<16x128xbf16>, vector<128x64xbf16>, vector<16x64xf32> -> vector<16x64xf32>
    %112 = vector.broadcast %18 : vector<1x64xf32> to vector<16x64xf32>
    %113 = arith.addf %111, %112 : vector<16x64xf32>
    %114 = arith.addf %97, %113 : vector<16x64xf32>
    %cst_44 = arith.constant dense<0.000000e+00> : vector<16xf32>
    %115 = vector.multi_reduction <add>, %114, %cst_44 [1] : vector<16x64xf32> to vector<16xf32>
    %116 = vector.shape_cast %115 : vector<16xf32> to vector<16x1xf32>
    %cst_45 = arith.constant 6.400000e+01 : f32
    %117 = vector.broadcast %cst_45 : f32 to vector<16x1xf32>
    %118 = arith.divf %116, %117 : vector<16x1xf32>
    %119 = vector.broadcast %118 : vector<16x1xf32> to vector<16x64xf32>
    %120 = arith.subf %114, %119 : vector<16x64xf32>
    %121 = arith.mulf %120, %120 : vector<16x64xf32>
    %cst_46 = arith.constant dense<0.000000e+00> : vector<16xf32>
    %122 = vector.multi_reduction <add>, %121, %cst_46 [1] : vector<16x64xf32> to vector<16xf32>
    %123 = vector.shape_cast %122 : vector<16xf32> to vector<16x1xf32>
    %cst_47 = arith.constant 6.400000e+01 : f32
    %124 = vector.broadcast %cst_47 : f32 to vector<16x1xf32>
    %125 = arith.divf %123, %124 : vector<16x1xf32>
    %126 = vector.broadcast %118 : vector<16x1xf32> to vector<16x64xf32>
    %127 = arith.subf %114, %126 : vector<16x64xf32>
    %cst_48 = arith.constant 9.99999974E-6 : f32
    %128 = vector.broadcast %cst_48 : f32 to vector<16x1xf32>
    %129 = arith.addf %125, %128 : vector<16x1xf32>
    %130 = math.rsqrt %129 : vector<16x1xf32>
    %131 = vector.broadcast %130 : vector<16x1xf32> to vector<16x64xf32>
    %132 = arith.mulf %127, %131 : vector<16x64xf32>
    %133 = vector.broadcast %21 : vector<1x64xf32> to vector<16x64xf32>
    %134 = arith.mulf %132, %133 : vector<16x64xf32>
    %135 = vector.broadcast %22 : vector<1x64xf32> to vector<16x64xf32>
    %136 = arith.addf %134, %135 : vector<16x64xf32>
    %c1 = arith.constant 1 : index
    %c0_49 = arith.constant 0 : index
    %c0_50 = arith.constant 0 : index
    %137 = vector.load %arg10[%c1, %c0_49, %c0_50] : memref<3x8x64xf32, #tpu.memory_space<vmem>>, vector<1x8x64xf32>
    %138 = vector.shape_cast %137 : vector<1x8x64xf32> to vector<8x64xf32>
    %139 = vector.extract_strided_slice %138 {offsets = [0, 0], sizes = [1, 64], strides = [1, 1]} : vector<8x64xf32> to vector<1x64xf32>
    %140 = vector.extract_strided_slice %138 {offsets = [1, 0], sizes = [1, 64], strides = [1, 1]} : vector<8x64xf32> to vector<1x64xf32>
    %141 = vector.extract_strided_slice %138 {offsets = [2, 0], sizes = [1, 64], strides = [1, 1]} : vector<8x64xf32> to vector<1x64xf32>
    %142 = vector.extract_strided_slice %138 {offsets = [3, 0], sizes = [1, 64], strides = [1, 1]} : vector<8x64xf32> to vector<1x64xf32>
    %143 = vector.extract_strided_slice %138 {offsets = [4, 0], sizes = [1, 64], strides = [1, 1]} : vector<8x64xf32> to vector<1x64xf32>
    %144 = vector.extract_strided_slice %138 {offsets = [5, 0], sizes = [1, 64], strides = [1, 1]} : vector<8x64xf32> to vector<1x64xf32>
    %145 = arith.truncf %136 : vector<16x64xf32> to vector<16x64xbf16>
    %c1_51 = arith.constant 1 : index
    %c0_52 = arith.constant 0 : index
    %c0_53 = arith.constant 0 : index
    %146 = vector.load %arg4[%c1_51, %c0_52, %c0_53] : memref<3x64x192xbf16, #tpu.memory_space<vmem>>, vector<1x64x192xbf16>
    %147 = vector.shape_cast %146 : vector<1x64x192xbf16> to vector<64x192xbf16>
    %cst_54 = arith.constant dense<0.000000e+00> : vector<16x192xf32>
    %148 = tpu.matmul %145, %147, %cst_54 {dimension_numbers = #tpu.dot_dimension_numbers<[1], [0], [0], [1], [0, 0, 1, 1], [], []>} : vector<16x64xbf16>, vector<64x192xbf16>, vector<16x192xf32> -> vector<16x192xf32>
    %c1_55 = arith.constant 1 : index
    %c0_56 = arith.constant 0 : index
    %c0_57 = arith.constant 0 : index
    %149 = vector.load %arg5[%c1_55, %c0_56, %c0_57] : memref<3x1x192xf32, #tpu.memory_space<vmem>>, vector<1x1x192xf32>
    %150 = vector.shape_cast %149 : vector<1x1x192xf32> to vector<1x192xf32>
    %151 = vector.broadcast %150 : vector<1x192xf32> to vector<16x192xf32>
    %152 = arith.addf %148, %151 : vector<16x192xf32>
    %153 = vector.extract_strided_slice %152 {offsets = [0, 0], sizes = [16, 16], strides = [1, 1]} : vector<16x192xf32> to vector<16x16xf32>
    %154 = vector.extract_strided_slice %152 {offsets = [0, 16], sizes = [16, 16], strides = [1, 1]} : vector<16x192xf32> to vector<16x16xf32>
    %155 = vector.extract_strided_slice %152 {offsets = [0, 32], sizes = [16, 16], strides = [1, 1]} : vector<16x192xf32> to vector<16x16xf32>
    %156 = vector.extract_strided_slice %152 {offsets = [0, 48], sizes = [16, 16], strides = [1, 1]} : vector<16x192xf32> to vector<16x16xf32>
    %157 = tpu.concatenate %153, %154, %155, %156 in 0 : vector<16x16xf32>, vector<16x16xf32>, vector<16x16xf32>, vector<16x16xf32> -> vector<64x16xf32>
    %158 = arith.truncf %157 : vector<64x16xf32> to vector<64x16xbf16>
    %159 = vector.extract_strided_slice %152 {offsets = [0, 64], sizes = [16, 16], strides = [1, 1]} : vector<16x192xf32> to vector<16x16xf32>
    %160 = vector.extract_strided_slice %152 {offsets = [0, 80], sizes = [16, 16], strides = [1, 1]} : vector<16x192xf32> to vector<16x16xf32>
    %161 = vector.extract_strided_slice %152 {offsets = [0, 96], sizes = [16, 16], strides = [1, 1]} : vector<16x192xf32> to vector<16x16xf32>
    %162 = vector.extract_strided_slice %152 {offsets = [0, 112], sizes = [16, 16], strides = [1, 1]} : vector<16x192xf32> to vector<16x16xf32>
    %163 = tpu.concatenate %159, %160, %161, %162 in 0 : vector<16x16xf32>, vector<16x16xf32>, vector<16x16xf32>, vector<16x16xf32> -> vector<64x16xf32>
    %164 = arith.truncf %163 : vector<64x16xf32> to vector<64x16xbf16>
    %165 = vector.extract_strided_slice %152 {offsets = [0, 128], sizes = [16, 16], strides = [1, 1]} : vector<16x192xf32> to vector<16x16xf32>
    %166 = vector.extract_strided_slice %152 {offsets = [0, 144], sizes = [16, 16], strides = [1, 1]} : vector<16x192xf32> to vector<16x16xf32>
    %167 = vector.extract_strided_slice %152 {offsets = [0, 160], sizes = [16, 16], strides = [1, 1]} : vector<16x192xf32> to vector<16x16xf32>
    %168 = vector.extract_strided_slice %152 {offsets = [0, 176], sizes = [16, 16], strides = [1, 1]} : vector<16x192xf32> to vector<16x16xf32>
    %169 = tpu.concatenate %165, %166, %167, %168 in 0 : vector<16x16xf32>, vector<16x16xf32>, vector<16x16xf32>, vector<16x16xf32> -> vector<64x16xf32>
    %170 = arith.truncf %169 : vector<64x16xf32> to vector<64x16xbf16>
    %cst_58 = arith.constant dense<0.000000e+00> : vector<64x64xf32>
    %171 = tpu.matmul %158, %164, %cst_58 {dimension_numbers = #tpu.dot_dimension_numbers<[1], [1], [0], [0], [0, 0, 1, 0], [], []>} : vector<64x16xbf16>, vector<64x16xbf16>, vector<64x64xf32> -> vector<64x64xf32>
    %cst_59 = arith.constant 2.500000e-01 : f32
    %172 = vector.broadcast %cst_59 : f32 to vector<64x64xf32>
    %173 = arith.mulf %171, %172 : vector<64x64xf32>
    %174 = arith.addf %173, %14 : vector<64x64xf32>
    %cst_60 = arith.constant dense<0xFF800000> : vector<64xf32>
    %175 = vector.multi_reduction <maximumf>, %174, %cst_60 [1] : vector<64x64xf32> to vector<64xf32>
    %176 = vector.shape_cast %175 : vector<64xf32> to vector<64x1xf32>
    %177 = vector.broadcast %176 : vector<64x1xf32> to vector<64x64xf32>
    %178 = arith.subf %174, %177 : vector<64x64xf32>
    %179 = math.exp %178 : vector<64x64xf32>
    %cst_61 = arith.constant dense<0.000000e+00> : vector<64xf32>
    %180 = vector.multi_reduction <add>, %179, %cst_61 [1] : vector<64x64xf32> to vector<64xf32>
    %181 = vector.shape_cast %180 : vector<64xf32> to vector<64x1xf32>
    %182 = vector.broadcast %181 : vector<64x1xf32> to vector<64x64xf32>
    %183 = arith.divf %179, %182 : vector<64x64xf32>
    %184 = arith.truncf %183 : vector<64x64xf32> to vector<64x64xbf16>
    %cst_62 = arith.constant dense<0.000000e+00> : vector<64x16xf32>
    %185 = tpu.matmul %184, %170, %cst_62 {dimension_numbers = #tpu.dot_dimension_numbers<[1], [0], [0], [1], [0, 0, 1, 1], [], []>} : vector<64x64xbf16>, vector<64x16xbf16>, vector<64x16xf32> -> vector<64x16xf32>
    %186 = vector.extract_strided_slice %185 {offsets = [0, 0], sizes = [16, 16], strides = [1, 1]} : vector<64x16xf32> to vector<16x16xf32>
    %187 = vector.extract_strided_slice %185 {offsets = [16, 0], sizes = [16, 16], strides = [1, 1]} : vector<64x16xf32> to vector<16x16xf32>
    %188 = vector.extract_strided_slice %185 {offsets = [32, 0], sizes = [16, 16], strides = [1, 1]} : vector<64x16xf32> to vector<16x16xf32>
    %189 = vector.extract_strided_slice %185 {offsets = [48, 0], sizes = [16, 16], strides = [1, 1]} : vector<64x16xf32> to vector<16x16xf32>
    %190 = tpu.concatenate %186, %187, %188, %189 in 1 : vector<16x16xf32>, vector<16x16xf32>, vector<16x16xf32>, vector<16x16xf32> -> vector<16x64xf32>
    %191 = arith.truncf %190 : vector<16x64xf32> to vector<16x64xbf16>
    %c1_63 = arith.constant 1 : index
    %c0_64 = arith.constant 0 : index
    %c0_65 = arith.constant 0 : index
    %192 = vector.load %arg6[%c1_63, %c0_64, %c0_65] : memref<3x64x64xbf16, #tpu.memory_space<vmem>>, vector<1x64x64xbf16>
    %193 = vector.shape_cast %192 : vector<1x64x64xbf16> to vector<64x64xbf16>
    %cst_66 = arith.constant dense<0.000000e+00> : vector<16x64xf32>
    %194 = tpu.matmul %191, %193, %cst_66 {dimension_numbers = #tpu.dot_dimension_numbers<[1], [0], [0], [1], [0, 0, 1, 1], [], []>} : vector<16x64xbf16>, vector<64x64xbf16>, vector<16x64xf32> -> vector<16x64xf32>
    %195 = vector.broadcast %139 : vector<1x64xf32> to vector<16x64xf32>
    %196 = arith.addf %194, %195 : vector<16x64xf32>
    %197 = arith.addf %136, %196 : vector<16x64xf32>
    %cst_67 = arith.constant dense<0.000000e+00> : vector<16xf32>
    %198 = vector.multi_reduction <add>, %197, %cst_67 [1] : vector<16x64xf32> to vector<16xf32>
    %199 = vector.shape_cast %198 : vector<16xf32> to vector<16x1xf32>
    %cst_68 = arith.constant 6.400000e+01 : f32
    %200 = vector.broadcast %cst_68 : f32 to vector<16x1xf32>
    %201 = arith.divf %199, %200 : vector<16x1xf32>
    %202 = vector.broadcast %201 : vector<16x1xf32> to vector<16x64xf32>
    %203 = arith.subf %197, %202 : vector<16x64xf32>
    %204 = arith.mulf %203, %203 : vector<16x64xf32>
    %cst_69 = arith.constant dense<0.000000e+00> : vector<16xf32>
    %205 = vector.multi_reduction <add>, %204, %cst_69 [1] : vector<16x64xf32> to vector<16xf32>
    %206 = vector.shape_cast %205 : vector<16xf32> to vector<16x1xf32>
    %cst_70 = arith.constant 6.400000e+01 : f32
    %207 = vector.broadcast %cst_70 : f32 to vector<16x1xf32>
    %208 = arith.divf %206, %207 : vector<16x1xf32>
    %209 = vector.broadcast %201 : vector<16x1xf32> to vector<16x64xf32>
    %210 = arith.subf %197, %209 : vector<16x64xf32>
    %cst_71 = arith.constant 9.99999974E-6 : f32
    %211 = vector.broadcast %cst_71 : f32 to vector<16x1xf32>
    %212 = arith.addf %208, %211 : vector<16x1xf32>
    %213 = math.rsqrt %212 : vector<16x1xf32>
    %214 = vector.broadcast %213 : vector<16x1xf32> to vector<16x64xf32>
    %215 = arith.mulf %210, %214 : vector<16x64xf32>
    %216 = vector.broadcast %141 : vector<1x64xf32> to vector<16x64xf32>
    %217 = arith.mulf %215, %216 : vector<16x64xf32>
    %218 = vector.broadcast %142 : vector<1x64xf32> to vector<16x64xf32>
    %219 = arith.addf %217, %218 : vector<16x64xf32>
    %220 = arith.truncf %219 : vector<16x64xf32> to vector<16x64xbf16>
    %c1_72 = arith.constant 1 : index
    %c0_73 = arith.constant 0 : index
    %c0_74 = arith.constant 0 : index
    %221 = vector.load %arg7[%c1_72, %c0_73, %c0_74] : memref<3x64x128xbf16, #tpu.memory_space<vmem>>, vector<1x64x128xbf16>
    %222 = vector.shape_cast %221 : vector<1x64x128xbf16> to vector<64x128xbf16>
    %cst_75 = arith.constant dense<0.000000e+00> : vector<16x128xf32>
    %223 = tpu.matmul %220, %222, %cst_75 {dimension_numbers = #tpu.dot_dimension_numbers<[1], [0], [0], [1], [0, 0, 1, 1], [], []>} : vector<16x64xbf16>, vector<64x128xbf16>, vector<16x128xf32> -> vector<16x128xf32>
    %c1_76 = arith.constant 1 : index
    %c0_77 = arith.constant 0 : index
    %c0_78 = arith.constant 0 : index
    %224 = vector.load %arg8[%c1_76, %c0_77, %c0_78] : memref<3x1x128xf32, #tpu.memory_space<vmem>>, vector<1x1x128xf32>
    %225 = vector.shape_cast %224 : vector<1x1x128xf32> to vector<1x128xf32>
    %226 = vector.broadcast %225 : vector<1x128xf32> to vector<16x128xf32>
    %227 = arith.addf %223, %226 : vector<16x128xf32>
    %cst_79 = arith.constant 0.000000e+00 : f32
    %228 = vector.broadcast %cst_79 : f32 to vector<16x128xf32>
    %229 = arith.maximumf %227, %228 : vector<16x128xf32>
    %230 = arith.truncf %229 : vector<16x128xf32> to vector<16x128xbf16>
    %c1_80 = arith.constant 1 : index
    %c0_81 = arith.constant 0 : index
    %c0_82 = arith.constant 0 : index
    %231 = vector.load %arg9[%c1_80, %c0_81, %c0_82] : memref<3x128x64xbf16, #tpu.memory_space<vmem>>, vector<1x128x64xbf16>
    %232 = vector.shape_cast %231 : vector<1x128x64xbf16> to vector<128x64xbf16>
    %cst_83 = arith.constant dense<0.000000e+00> : vector<16x64xf32>
    %233 = tpu.matmul %230, %232, %cst_83 {dimension_numbers = #tpu.dot_dimension_numbers<[1], [0], [0], [1], [0, 0, 1, 1], [], []>} : vector<16x128xbf16>, vector<128x64xbf16>, vector<16x64xf32> -> vector<16x64xf32>
    %234 = vector.broadcast %140 : vector<1x64xf32> to vector<16x64xf32>
    %235 = arith.addf %233, %234 : vector<16x64xf32>
    %236 = arith.addf %219, %235 : vector<16x64xf32>
    %cst_84 = arith.constant dense<0.000000e+00> : vector<16xf32>
    %237 = vector.multi_reduction <add>, %236, %cst_84 [1] : vector<16x64xf32> to vector<16xf32>
    %238 = vector.shape_cast %237 : vector<16xf32> to vector<16x1xf32>
    %cst_85 = arith.constant 6.400000e+01 : f32
    %239 = vector.broadcast %cst_85 : f32 to vector<16x1xf32>
    %240 = arith.divf %238, %239 : vector<16x1xf32>
    %241 = vector.broadcast %240 : vector<16x1xf32> to vector<16x64xf32>
    %242 = arith.subf %236, %241 : vector<16x64xf32>
    %243 = arith.mulf %242, %242 : vector<16x64xf32>
    %cst_86 = arith.constant dense<0.000000e+00> : vector<16xf32>
    %244 = vector.multi_reduction <add>, %243, %cst_86 [1] : vector<16x64xf32> to vector<16xf32>
    %245 = vector.shape_cast %244 : vector<16xf32> to vector<16x1xf32>
    %cst_87 = arith.constant 6.400000e+01 : f32
    %246 = vector.broadcast %cst_87 : f32 to vector<16x1xf32>
    %247 = arith.divf %245, %246 : vector<16x1xf32>
    %248 = vector.broadcast %240 : vector<16x1xf32> to vector<16x64xf32>
    %249 = arith.subf %236, %248 : vector<16x64xf32>
    %cst_88 = arith.constant 9.99999974E-6 : f32
    %250 = vector.broadcast %cst_88 : f32 to vector<16x1xf32>
    %251 = arith.addf %247, %250 : vector<16x1xf32>
    %252 = math.rsqrt %251 : vector<16x1xf32>
    %253 = vector.broadcast %252 : vector<16x1xf32> to vector<16x64xf32>
    %254 = arith.mulf %249, %253 : vector<16x64xf32>
    %255 = vector.broadcast %143 : vector<1x64xf32> to vector<16x64xf32>
    %256 = arith.mulf %254, %255 : vector<16x64xf32>
    %257 = vector.broadcast %144 : vector<1x64xf32> to vector<16x64xf32>
    %258 = arith.addf %256, %257 : vector<16x64xf32>
    %c2 = arith.constant 2 : index
    %c0_89 = arith.constant 0 : index
    %c0_90 = arith.constant 0 : index
    %259 = vector.load %arg10[%c2, %c0_89, %c0_90] : memref<3x8x64xf32, #tpu.memory_space<vmem>>, vector<1x8x64xf32>
    %260 = vector.shape_cast %259 : vector<1x8x64xf32> to vector<8x64xf32>
    %261 = vector.extract_strided_slice %260 {offsets = [0, 0], sizes = [1, 64], strides = [1, 1]} : vector<8x64xf32> to vector<1x64xf32>
    %262 = vector.extract_strided_slice %260 {offsets = [1, 0], sizes = [1, 64], strides = [1, 1]} : vector<8x64xf32> to vector<1x64xf32>
    %263 = vector.extract_strided_slice %260 {offsets = [2, 0], sizes = [1, 64], strides = [1, 1]} : vector<8x64xf32> to vector<1x64xf32>
    %264 = vector.extract_strided_slice %260 {offsets = [3, 0], sizes = [1, 64], strides = [1, 1]} : vector<8x64xf32> to vector<1x64xf32>
    %265 = vector.extract_strided_slice %260 {offsets = [4, 0], sizes = [1, 64], strides = [1, 1]} : vector<8x64xf32> to vector<1x64xf32>
    %266 = vector.extract_strided_slice %260 {offsets = [5, 0], sizes = [1, 64], strides = [1, 1]} : vector<8x64xf32> to vector<1x64xf32>
    %267 = arith.truncf %258 : vector<16x64xf32> to vector<16x64xbf16>
    %c2_91 = arith.constant 2 : index
    %c0_92 = arith.constant 0 : index
    %c0_93 = arith.constant 0 : index
    %268 = vector.load %arg4[%c2_91, %c0_92, %c0_93] : memref<3x64x192xbf16, #tpu.memory_space<vmem>>, vector<1x64x192xbf16>
    %269 = vector.shape_cast %268 : vector<1x64x192xbf16> to vector<64x192xbf16>
    %cst_94 = arith.constant dense<0.000000e+00> : vector<16x192xf32>
    %270 = tpu.matmul %267, %269, %cst_94 {dimension_numbers = #tpu.dot_dimension_numbers<[1], [0], [0], [1], [0, 0, 1, 1], [], []>} : vector<16x64xbf16>, vector<64x192xbf16>, vector<16x192xf32> -> vector<16x192xf32>
    %c2_95 = arith.constant 2 : index
    %c0_96 = arith.constant 0 : index
    %c0_97 = arith.constant 0 : index
    %271 = vector.load %arg5[%c2_95, %c0_96, %c0_97] : memref<3x1x192xf32, #tpu.memory_space<vmem>>, vector<1x1x192xf32>
    %272 = vector.shape_cast %271 : vector<1x1x192xf32> to vector<1x192xf32>
    %273 = vector.broadcast %272 : vector<1x192xf32> to vector<16x192xf32>
    %274 = arith.addf %270, %273 : vector<16x192xf32>
    %275 = vector.extract_strided_slice %274 {offsets = [0, 0], sizes = [16, 16], strides = [1, 1]} : vector<16x192xf32> to vector<16x16xf32>
    %276 = vector.extract_strided_slice %274 {offsets = [0, 16], sizes = [16, 16], strides = [1, 1]} : vector<16x192xf32> to vector<16x16xf32>
    %277 = vector.extract_strided_slice %274 {offsets = [0, 32], sizes = [16, 16], strides = [1, 1]} : vector<16x192xf32> to vector<16x16xf32>
    %278 = vector.extract_strided_slice %274 {offsets = [0, 48], sizes = [16, 16], strides = [1, 1]} : vector<16x192xf32> to vector<16x16xf32>
    %279 = tpu.concatenate %275, %276, %277, %278 in 0 : vector<16x16xf32>, vector<16x16xf32>, vector<16x16xf32>, vector<16x16xf32> -> vector<64x16xf32>
    %280 = arith.truncf %279 : vector<64x16xf32> to vector<64x16xbf16>
    %281 = vector.extract_strided_slice %274 {offsets = [0, 64], sizes = [16, 16], strides = [1, 1]} : vector<16x192xf32> to vector<16x16xf32>
    %282 = vector.extract_strided_slice %274 {offsets = [0, 80], sizes = [16, 16], strides = [1, 1]} : vector<16x192xf32> to vector<16x16xf32>
    %283 = vector.extract_strided_slice %274 {offsets = [0, 96], sizes = [16, 16], strides = [1, 1]} : vector<16x192xf32> to vector<16x16xf32>
    %284 = vector.extract_strided_slice %274 {offsets = [0, 112], sizes = [16, 16], strides = [1, 1]} : vector<16x192xf32> to vector<16x16xf32>
    %285 = tpu.concatenate %281, %282, %283, %284 in 0 : vector<16x16xf32>, vector<16x16xf32>, vector<16x16xf32>, vector<16x16xf32> -> vector<64x16xf32>
    %286 = arith.truncf %285 : vector<64x16xf32> to vector<64x16xbf16>
    %287 = vector.extract_strided_slice %274 {offsets = [0, 128], sizes = [16, 16], strides = [1, 1]} : vector<16x192xf32> to vector<16x16xf32>
    %288 = vector.extract_strided_slice %274 {offsets = [0, 144], sizes = [16, 16], strides = [1, 1]} : vector<16x192xf32> to vector<16x16xf32>
    %289 = vector.extract_strided_slice %274 {offsets = [0, 160], sizes = [16, 16], strides = [1, 1]} : vector<16x192xf32> to vector<16x16xf32>
    %290 = vector.extract_strided_slice %274 {offsets = [0, 176], sizes = [16, 16], strides = [1, 1]} : vector<16x192xf32> to vector<16x16xf32>
    %291 = tpu.concatenate %287, %288, %289, %290 in 0 : vector<16x16xf32>, vector<16x16xf32>, vector<16x16xf32>, vector<16x16xf32> -> vector<64x16xf32>
    %292 = arith.truncf %291 : vector<64x16xf32> to vector<64x16xbf16>
    %cst_98 = arith.constant dense<0.000000e+00> : vector<64x64xf32>
    %293 = tpu.matmul %280, %286, %cst_98 {dimension_numbers = #tpu.dot_dimension_numbers<[1], [1], [0], [0], [0, 0, 1, 0], [], []>} : vector<64x16xbf16>, vector<64x16xbf16>, vector<64x64xf32> -> vector<64x64xf32>
    %cst_99 = arith.constant 2.500000e-01 : f32
    %294 = vector.broadcast %cst_99 : f32 to vector<64x64xf32>
    %295 = arith.mulf %293, %294 : vector<64x64xf32>
    %296 = arith.addf %295, %14 : vector<64x64xf32>
    %cst_100 = arith.constant dense<0xFF800000> : vector<64xf32>
    %297 = vector.multi_reduction <maximumf>, %296, %cst_100 [1] : vector<64x64xf32> to vector<64xf32>
    %298 = vector.shape_cast %297 : vector<64xf32> to vector<64x1xf32>
    %299 = vector.broadcast %298 : vector<64x1xf32> to vector<64x64xf32>
    %300 = arith.subf %296, %299 : vector<64x64xf32>
    %301 = math.exp %300 : vector<64x64xf32>
    %cst_101 = arith.constant dense<0.000000e+00> : vector<64xf32>
    %302 = vector.multi_reduction <add>, %301, %cst_101 [1] : vector<64x64xf32> to vector<64xf32>
    %303 = vector.shape_cast %302 : vector<64xf32> to vector<64x1xf32>
    %304 = vector.broadcast %303 : vector<64x1xf32> to vector<64x64xf32>
    %305 = arith.divf %301, %304 : vector<64x64xf32>
    %306 = arith.truncf %305 : vector<64x64xf32> to vector<64x64xbf16>
    %cst_102 = arith.constant dense<0.000000e+00> : vector<64x16xf32>
    %307 = tpu.matmul %306, %292, %cst_102 {dimension_numbers = #tpu.dot_dimension_numbers<[1], [0], [0], [1], [0, 0, 1, 1], [], []>} : vector<64x64xbf16>, vector<64x16xbf16>, vector<64x16xf32> -> vector<64x16xf32>
    %308 = vector.extract_strided_slice %307 {offsets = [0, 0], sizes = [16, 16], strides = [1, 1]} : vector<64x16xf32> to vector<16x16xf32>
    %309 = vector.extract_strided_slice %307 {offsets = [16, 0], sizes = [16, 16], strides = [1, 1]} : vector<64x16xf32> to vector<16x16xf32>
    %310 = vector.extract_strided_slice %307 {offsets = [32, 0], sizes = [16, 16], strides = [1, 1]} : vector<64x16xf32> to vector<16x16xf32>
    %311 = vector.extract_strided_slice %307 {offsets = [48, 0], sizes = [16, 16], strides = [1, 1]} : vector<64x16xf32> to vector<16x16xf32>
    %312 = tpu.concatenate %308, %309, %310, %311 in 1 : vector<16x16xf32>, vector<16x16xf32>, vector<16x16xf32>, vector<16x16xf32> -> vector<16x64xf32>
    %313 = arith.truncf %312 : vector<16x64xf32> to vector<16x64xbf16>
    %c2_103 = arith.constant 2 : index
    %c0_104 = arith.constant 0 : index
    %c0_105 = arith.constant 0 : index
    %314 = vector.load %arg6[%c2_103, %c0_104, %c0_105] : memref<3x64x64xbf16, #tpu.memory_space<vmem>>, vector<1x64x64xbf16>
    %315 = vector.shape_cast %314 : vector<1x64x64xbf16> to vector<64x64xbf16>
    %cst_106 = arith.constant dense<0.000000e+00> : vector<16x64xf32>
    %316 = tpu.matmul %313, %315, %cst_106 {dimension_numbers = #tpu.dot_dimension_numbers<[1], [0], [0], [1], [0, 0, 1, 1], [], []>} : vector<16x64xbf16>, vector<64x64xbf16>, vector<16x64xf32> -> vector<16x64xf32>
    %317 = vector.broadcast %261 : vector<1x64xf32> to vector<16x64xf32>
    %318 = arith.addf %316, %317 : vector<16x64xf32>
    %319 = arith.addf %258, %318 : vector<16x64xf32>
    %cst_107 = arith.constant dense<0.000000e+00> : vector<16xf32>
    %320 = vector.multi_reduction <add>, %319, %cst_107 [1] : vector<16x64xf32> to vector<16xf32>
    %321 = vector.shape_cast %320 : vector<16xf32> to vector<16x1xf32>
    %cst_108 = arith.constant 6.400000e+01 : f32
    %322 = vector.broadcast %cst_108 : f32 to vector<16x1xf32>
    %323 = arith.divf %321, %322 : vector<16x1xf32>
    %324 = vector.broadcast %323 : vector<16x1xf32> to vector<16x64xf32>
    %325 = arith.subf %319, %324 : vector<16x64xf32>
    %326 = arith.mulf %325, %325 : vector<16x64xf32>
    %cst_109 = arith.constant dense<0.000000e+00> : vector<16xf32>
    %327 = vector.multi_reduction <add>, %326, %cst_109 [1] : vector<16x64xf32> to vector<16xf32>
    %328 = vector.shape_cast %327 : vector<16xf32> to vector<16x1xf32>
    %cst_110 = arith.constant 6.400000e+01 : f32
    %329 = vector.broadcast %cst_110 : f32 to vector<16x1xf32>
    %330 = arith.divf %328, %329 : vector<16x1xf32>
    %331 = vector.broadcast %323 : vector<16x1xf32> to vector<16x64xf32>
    %332 = arith.subf %319, %331 : vector<16x64xf32>
    %cst_111 = arith.constant 9.99999974E-6 : f32
    %333 = vector.broadcast %cst_111 : f32 to vector<16x1xf32>
    %334 = arith.addf %330, %333 : vector<16x1xf32>
    %335 = math.rsqrt %334 : vector<16x1xf32>
    %336 = vector.broadcast %335 : vector<16x1xf32> to vector<16x64xf32>
    %337 = arith.mulf %332, %336 : vector<16x64xf32>
    %338 = vector.broadcast %263 : vector<1x64xf32> to vector<16x64xf32>
    %339 = arith.mulf %337, %338 : vector<16x64xf32>
    %340 = vector.broadcast %264 : vector<1x64xf32> to vector<16x64xf32>
    %341 = arith.addf %339, %340 : vector<16x64xf32>
    %342 = arith.truncf %341 : vector<16x64xf32> to vector<16x64xbf16>
    %c2_112 = arith.constant 2 : index
    %c0_113 = arith.constant 0 : index
    %c0_114 = arith.constant 0 : index
    %343 = vector.load %arg7[%c2_112, %c0_113, %c0_114] : memref<3x64x128xbf16, #tpu.memory_space<vmem>>, vector<1x64x128xbf16>
    %344 = vector.shape_cast %343 : vector<1x64x128xbf16> to vector<64x128xbf16>
    %cst_115 = arith.constant dense<0.000000e+00> : vector<16x128xf32>
    %345 = tpu.matmul %342, %344, %cst_115 {dimension_numbers = #tpu.dot_dimension_numbers<[1], [0], [0], [1], [0, 0, 1, 1], [], []>} : vector<16x64xbf16>, vector<64x128xbf16>, vector<16x128xf32> -> vector<16x128xf32>
    %c2_116 = arith.constant 2 : index
    %c0_117 = arith.constant 0 : index
    %c0_118 = arith.constant 0 : index
    %346 = vector.load %arg8[%c2_116, %c0_117, %c0_118] : memref<3x1x128xf32, #tpu.memory_space<vmem>>, vector<1x1x128xf32>
    %347 = vector.shape_cast %346 : vector<1x1x128xf32> to vector<1x128xf32>
    %348 = vector.broadcast %347 : vector<1x128xf32> to vector<16x128xf32>
    %349 = arith.addf %345, %348 : vector<16x128xf32>
    %cst_119 = arith.constant 0.000000e+00 : f32
    %350 = vector.broadcast %cst_119 : f32 to vector<16x128xf32>
    %351 = arith.maximumf %349, %350 : vector<16x128xf32>
    %352 = arith.truncf %351 : vector<16x128xf32> to vector<16x128xbf16>
    %c2_120 = arith.constant 2 : index
    %c0_121 = arith.constant 0 : index
    %c0_122 = arith.constant 0 : index
    %353 = vector.load %arg9[%c2_120, %c0_121, %c0_122] : memref<3x128x64xbf16, #tpu.memory_space<vmem>>, vector<1x128x64xbf16>
    %354 = vector.shape_cast %353 : vector<1x128x64xbf16> to vector<128x64xbf16>
    %cst_123 = arith.constant dense<0.000000e+00> : vector<16x64xf32>
    %355 = tpu.matmul %352, %354, %cst_123 {dimension_numbers = #tpu.dot_dimension_numbers<[1], [0], [0], [1], [0, 0, 1, 1], [], []>} : vector<16x128xbf16>, vector<128x64xbf16>, vector<16x64xf32> -> vector<16x64xf32>
    %356 = vector.broadcast %262 : vector<1x64xf32> to vector<16x64xf32>
    %357 = arith.addf %355, %356 : vector<16x64xf32>
    %358 = arith.addf %341, %357 : vector<16x64xf32>
    %cst_124 = arith.constant dense<0.000000e+00> : vector<16xf32>
    %359 = vector.multi_reduction <add>, %358, %cst_124 [1] : vector<16x64xf32> to vector<16xf32>
    %360 = vector.shape_cast %359 : vector<16xf32> to vector<16x1xf32>
    %cst_125 = arith.constant 6.400000e+01 : f32
    %361 = vector.broadcast %cst_125 : f32 to vector<16x1xf32>
    %362 = arith.divf %360, %361 : vector<16x1xf32>
    %363 = vector.broadcast %362 : vector<16x1xf32> to vector<16x64xf32>
    %364 = arith.subf %358, %363 : vector<16x64xf32>
    %365 = arith.mulf %364, %364 : vector<16x64xf32>
    %cst_126 = arith.constant dense<0.000000e+00> : vector<16xf32>
    %366 = vector.multi_reduction <add>, %365, %cst_126 [1] : vector<16x64xf32> to vector<16xf32>
    %367 = vector.shape_cast %366 : vector<16xf32> to vector<16x1xf32>
    %cst_127 = arith.constant 6.400000e+01 : f32
    %368 = vector.broadcast %cst_127 : f32 to vector<16x1xf32>
    %369 = arith.divf %367, %368 : vector<16x1xf32>
    %370 = vector.broadcast %362 : vector<16x1xf32> to vector<16x64xf32>
    %371 = arith.subf %358, %370 : vector<16x64xf32>
    %cst_128 = arith.constant 9.99999974E-6 : f32
    %372 = vector.broadcast %cst_128 : f32 to vector<16x1xf32>
    %373 = arith.addf %369, %372 : vector<16x1xf32>
    %374 = math.rsqrt %373 : vector<16x1xf32>
    %375 = vector.broadcast %374 : vector<16x1xf32> to vector<16x64xf32>
    %376 = arith.mulf %371, %375 : vector<16x64xf32>
    %377 = vector.broadcast %265 : vector<1x64xf32> to vector<16x64xf32>
    %378 = arith.mulf %376, %377 : vector<16x64xf32>
    %379 = vector.broadcast %266 : vector<1x64xf32> to vector<16x64xf32>
    %380 = arith.addf %378, %379 : vector<16x64xf32>
    %381 = arith.truncf %380 : vector<16x64xf32> to vector<16x64xbf16>
    %c0_129 = arith.constant 0 : index
    %c0_130 = arith.constant 0 : index
    %382 = vector.load %arg11[%c0_129, %c0_130] : memref<64x128xbf16, #tpu.memory_space<vmem>>, vector<64x128xbf16>
    %cst_131 = arith.constant dense<0.000000e+00> : vector<16x128xf32>
    %383 = tpu.matmul %381, %382, %cst_131 {dimension_numbers = #tpu.dot_dimension_numbers<[1], [0], [0], [1], [0, 0, 1, 1], [], []>} : vector<16x64xbf16>, vector<64x128xbf16>, vector<16x128xf32> -> vector<16x128xf32>
    %c0_132 = arith.constant 0 : index
    %c0_133 = arith.constant 0 : index
    %384 = vector.load %arg12[%c0_132, %c0_133] : memref<1x128xf32, #tpu.memory_space<vmem>>, vector<1x128xf32>
    %385 = vector.broadcast %384 : vector<1x128xf32> to vector<16x128xf32>
    %386 = arith.addf %383, %385 : vector<16x128xf32>
    %c0_134 = arith.constant 0 : index
    %c0_135 = arith.constant 0 : index
    %387 = vector.load %arg13[%c0_134, %c0_135] : memref<16x128xf32, #tpu.memory_space<vmem>>, vector<16x128xf32>
    tpu.vector_store %arg13[%c0_134, %c0_135], %386 {strides = array<i32>} : memref<16x128xf32, #tpu.memory_space<vmem>>, vector<16x128xf32>,
    return
  }
}

</mosaic_0001>

<llo_original>
// kernel: forward.1
$region0: #{forward.1}
  #allocation0 [shape = 'u32[]', space=smem, size = 0x4, offset = 0x4, fixed_abs, tag = 'smem constant byte address 0x4 - core index']
  #allocation1 [shape = 'u32[144,128]{1,0:T(1,128)}', space=vmem, size = 0x12000, scoped, tag = 'internal scratch']
  %s0 = inlined_call_operand.vmem [shape: s32[16,1], index: 0, kind: input, shape index: {}]
  %s1 = inlined_call_operand.vmem [shape: f32[64,64], index: 1, kind: input, shape index: {}]
  %s2 = inlined_call_operand.hbm [shape: bf16[32,64], index: 2, kind: input, shape index: {}]
  %s3 = inlined_call_operand.vmem [shape: f32[8,64], index: 3, kind: input, shape index: {}]
  %s4 = inlined_call_operand.vmem [shape: bf16[3,64,192], index: 4, kind: input, shape index: {}]
  %s5 = inlined_call_operand.vmem [shape: f32[3,1,192], index: 5, kind: input, shape index: {}]
  %s6 = inlined_call_operand.vmem [shape: bf16[3,64,64], index: 6, kind: input, shape index: {}]
  %s7 = inlined_call_operand.vmem [shape: bf16[3,64,128], index: 7, kind: input, shape index: {}]
  %s8 = inlined_call_operand.hbm [shape: f32[3,1,128], index: 8, kind: input, shape index: {}]
  %s9 = inlined_call_operand.vmem [shape: bf16[3,128,64], index: 9, kind: input, shape index: {}]
  %s10 = inlined_call_operand.hbm [shape: f32[3,8,64], index: 10, kind: input, shape index: {}]
  %s11 = inlined_call_operand.vmem [shape: bf16[64,128], index: 11, kind: input, shape index: {}]
  %s12 = inlined_call_operand.hbm [shape: f32[1,128], index: 12, kind: input, shape index: {}]
  %s13 = inlined_call_operand.vmem [shape: f32[16,128], index: 13, kind: output, shape index: {}]
  %s14 = sld [smem:[#allocation0]]
  $region78: #{forward.1} parent=0
    _
  %s16 = ssub.s32 1, %s14
  %s17 = scalar_select 0, %s16, %s14
  $region1: #{forward.1} parent=0
    #allocation2 [shape = 'u8[8192]{0}', space=vmem, size = 0x2000, scoped, tag = 'input window, operand 2, single buffered']
    #allocation3 [shape = 's32[1]{0}', space=sflag, size = 0x4, scoped, tag = 'scoped memory for forward.1']
    #allocation4 [shape = 'u8[1536]{0}', space=vmem, size = 0x800, scoped, tag = 'input window, operand 8, single buffered']
    #allocation5 [shape = 's32[1]{0}', space=sflag, size = 0x4, scoped, tag = 'scoped memory for forward.1']
    #allocation6 [shape = 'u8[12288]{0}', space=vmem, size = 0x3000, scoped, tag = 'input window, operand 10, single buffered']
    #allocation7 [shape = 'u8[512]{0}', space=vmem, size = 0x400, scoped, tag = 'input window, operand 12, single buffered']
    #allocation8 [shape = 's32[1]{0}', space=sflag, size = 0x4, scoped, tag = 'scoped memory for forward.1']
    %18 = vsyncpa [#allocation3], 0
    %19 = vsyncpa [#allocation5], 0
    %20 = vsyncpa [#allocation8], 0
    // Predicated region
    $region2: #{forward.1} parent=1 // pred_check
      _
    $region3: #{forward.1} parent=1 // pred_check_branch
      %22 = sbr.rel (0) target = $region5
    $region4: #{forward.1} parent=1 // pred_region
      _
    $region5: #{forward.1} parent=1 // pred_fallthru
      _
    // Predicated region
    $region6: #{forward.1} parent=1 // pred_check
      _
    $region7: #{forward.1} parent=1 // pred_check_branch
      %24 = sbr.rel (0) target = $region9
    $region8: #{forward.1} parent=1 // pred_region
      _
    $region9: #{forward.1} parent=1 // pred_fallthru
      _
    // Predicated region
    $region10: #{forward.1} parent=1 // pred_check
      _
    $region11: #{forward.1} parent=1 // pred_check_branch
      %26 = sbr.rel (0) target = $region13
    $region12: #{forward.1} parent=1 // pred_region
      %s28 = ssub.s32 256, 256
      %29 = vsyncadd [#allocation3], %s28
      %s30 = sshll.u32 [#allocation2], 4
      %s31 = int_to_ptr.vmem [resolvable:$true] %s30
      %36 = dma.hbm_to_vmem [thread:$0]  %s2, 256, %s31, [#allocation3], 64, 64, 4
    $region13: #{forward.1} parent=1 // pred_fallthru
      _
    // Predicated region
    $region14: #{forward.1} parent=1 // pred_check
      _
    $region15: #{forward.1} parent=1 // pred_check_branch
      %38 = sbr.rel (0) target = $region17
    $region16: #{forward.1} parent=1 // pred_region
      _
    $region17: #{forward.1} parent=1 // pred_fallthru
      _
    // Predicated region
    $region18: #{forward.1} parent=1 // pred_check
      _
    $region19: #{forward.1} parent=1 // pred_check_branch
      %40 = sbr.rel (0) target = $region21
    $region20: #{forward.1} parent=1 // pred_region
      _
    $region21: #{forward.1} parent=1 // pred_fallthru
      _
    // Predicated region
    $region22: #{forward.1} parent=1 // pred_check
      _
    $region23: #{forward.1} parent=1 // pred_check_branch
      %42 = sbr.rel (0) target = $region25
    $region24: #{forward.1} parent=1 // pred_region
      _
    $region25: #{forward.1} parent=1 // pred_fallthru
      _
    // Predicated region
    $region26: #{forward.1} parent=1 // pred_check
      _
    $region27: #{forward.1} parent=1 // pred_check_branch
      %44 = sbr.rel (0) target = $region29
    $region28: #{forward.1} parent=1 // pred_region
      _
    $region29: #{forward.1} parent=1 // pred_fallthru
      _
    // Predicated region
    $region30: #{forward.1} parent=1 // pred_check
      _
    $region31: #{forward.1} parent=1 // pred_check_branch
      %46 = sbr.rel (0) target = $region33
    $region32: #{forward.1} parent=1 // pred_region
      _
    $region33: #{forward.1} parent=1 // pred_fallthru
      _
    // Predicated region
    $region34: #{forward.1} parent=1 // pred_check
      _
    $region35: #{forward.1} parent=1 // pred_check_branch
      %48 = sbr.rel (0) target = $region37
    $region36: #{forward.1} parent=1 // pred_region
      %s50 = ssub.s32 48, 48
      %51 = vsyncadd [#allocation5], %s50
      %s52 = sshll.u32 [#allocation4], 4
      %s53 = int_to_ptr.vmem [resolvable:$true] %s52
      %58 = dma.hbm_to_vmem [thread:$0]  %s8, 48, %s53, [#allocation5], 16, 16, 1
    $region37: #{forward.1} parent=1 // pred_fallthru
      _
    // Predicated region
    $region38: #{forward.1} parent=1 // pred_check
      _
    $region39: #{forward.1} parent=1 // pred_check_branch
      %60 = sbr.rel (0) target = $region41
    $region40: #{forward.1} parent=1 // pred_region
      _
    $region41: #{forward.1} parent=1 // pred_fallthru
      _
    // Predicated region
    $region42: #{forward.1} parent=1 // pred_check
      _
    $region43: #{forward.1} parent=1 // pred_check_branch
      %62 = sbr.rel (0) target = $region45
    $region44: #{forward.1} parent=1 // pred_region
      %s64 = ssub.s32 384, 384
      %65 = vsyncadd [#allocation5], %s64
      %s66 = sshll.u32 [#allocation6], 4
      %s67 = int_to_ptr.vmem [resolvable:$true] %s66
      %72 = dma.hbm_to_vmem [thread:$0]  %s10, 384, %s67, [#allocation5], 128, 128, 8
    $region45: #{forward.1} parent=1 // pred_fallthru
      _
    // Predicated region
    $region46: #{forward.1} parent=1 // pred_check
      _
    $region47: #{forward.1} parent=1 // pred_check_branch
      %74 = sbr.rel (0) target = $region49
    $region48: #{forward.1} parent=1 // pred_region
      _
    $region49: #{forward.1} parent=1 // pred_fallthru
      _
    // Predicated region
    $region50: #{forward.1} parent=1 // pred_check
      _
    $region51: #{forward.1} parent=1 // pred_check_branch
      %76 = sbr.rel (0) target = $region53
    $region52: #{forward.1} parent=1 // pred_region
      %s78 = ssub.s32 16, 16
      %79 = vsyncadd [#allocation8], %s78
      %s81 = sshll.u32 [#allocation7], 4
      %s82 = int_to_ptr.vmem [resolvable:$true] %s81
      %84 = dma.hbm_to_vmem [thread:$0]  %s12, 16, %s82, [#allocation8]
    $region53: #{forward.1} parent=1 // pred_fallthru
      _
    // Predicated region
    $region54: #{forward.1} parent=1 // pred_check
      _
    $region55: #{forward.1} parent=1 // pred_check_branch
      %86 = sbr.rel (0) target = $region57
    $region56: #{forward.1} parent=1 // pred_region
      %87 = dma.done [#allocation3], 256
    $region57: #{forward.1} parent=1 // pred_fallthru
      _
    // Predicated region
    $region58: #{forward.1} parent=1 // pred_check
      _
    $region59: #{forward.1} parent=1 // pred_check_branch
      %89 = sbr.rel (0) target = $region61
    $region60: #{forward.1} parent=1 // pred_region
      %90 = dma.done [#allocation5], 48
    $region61: #{forward.1} parent=1 // pred_fallthru
      _
    // Predicated region
    $region62: #{forward.1} parent=1 // pred_check
      _
    $region63: #{forward.1} parent=1 // pred_check_branch
      %92 = sbr.rel (0) target = $region65
    $region64: #{forward.1} parent=1 // pred_region
      %93 = dma.done [#allocation5], 384
    $region65: #{forward.1} parent=1 // pred_fallthru
      _
    // Predicated region
    $region66: #{forward.1} parent=1 // pred_check
      _
    $region67: #{forward.1} parent=1 // pred_check_branch
      %95 = sbr.rel (0) target = $region69
    $region68: #{forward.1} parent=1 // pred_region
      %96 = dma.done [#allocation8], 16
    $region69: #{forward.1} parent=1 // pred_fallthru
      _
    %v98 = vld [vmem:[%s0] sm:$0xff]
    %v99 = vld [vmem:[%s0 + $0x8] sm:$0xff]
    %v100 = vlaneseq
    %v101 = vand.u32 %v100, 127
    %102 = vset.pattern.permute.xlu0 0
    %103 = vperm.xlu0 %102, %v98
    %v104 = vpop.permute.xlu0 %103
    %105 = vset.pattern.permute.xlu0 0
    %106 = vperm.xlu0 %105, %v99
    %v107 = vpop.permute.xlu0 %106
    %vm108 = vcmp.eq.s32.totalorder %v104, %v101
    %vm109 = vcmp.eq.s32.totalorder %v107, %v101
    %v110 = vsel %vm108, 1, 0
    %v111 = vsel %vm109, 1, 0
    %v112 = vcvt.s32.f32 %v110
    %v113 = vcvt.s32.f32 %v111
    %v114 = vpack.c.bf16 %v113, %v112
    %v115 = vld [vmem:[#allocation2] sm:$0xf]
    %v116 = vld [vmem:[#allocation2 + $0x4] sm:$0xf]
    %v117 = vld [vmem:[#allocation2 + $0x8] sm:$0xf]
    %v118 = vld [vmem:[#allocation2 + $0xc] sm:$0xf]
    %v123 = vunpack.c.l.b16 %v115
    %v124 = vunpack.c.l.b16 %v116
    %v125 = vunpack.c.l.b16 %v117
    %v126 = vunpack.c.l.b16 %v118
    %v127 = vpack.c.b16 %v124, %v123
    %v128 = vpack.c.b16 %v126, %v125
    %vm131 = vcmask 261120
    %v133 = vsel %vm131, %v114, 0
    %135 = vmatprep.subr.bf16.mxu0 0
    %136 = vmatpush1.bf16.msra.mxu0 %v127
    %137 = vmatprep.subr.bf16.mxu0 0
    %138 = vmatpush1.bf16.msra.mxu0 %v128
    %139 = vmatprep.subr.bf16.mxu0 0
    %140 = vmatpush1.bf16.msra.mxu0 0
    %141 = vmatprep.subr.bf16.mxu0 0
    %142 = vmatpush1.bf16.msra.mxu0 0
    %143 = vmatprep.subr.bf16.mxu0 0
    %144 = vmatpush1.bf16.msra.mxu0 0
    %145 = vmatprep.subr.bf16.mxu0 0
    %146 = vmatpush1.bf16.msra.mxu0 0
    %147 = vmatprep.subr.bf16.mxu0 0
    %148 = vmatpush1.bf16.msra.mxu0 0
    %149 = vmatprep.subr.bf16.mxu0 0
    %150 = vmatpush1.bf16.msra.mxu0 0
    %151 = vmatprep.subr.bf16.mxu0 0
    %152 = vmatpush1.bf16.msra.mxu0 0
    %153 = vmatprep.subr.bf16.mxu0 0
    %154 = vmatpush1.bf16.msra.mxu0 0
    %155 = vmatprep.subr.bf16.mxu0 0
    %156 = vmatpush1.bf16.msra.mxu0 0
    %157 = vmatprep.subr.bf16.mxu0 0
    %158 = vmatpush1.bf16.msra.mxu0 0
    %159 = vmatprep.subr.bf16.mxu0 0
    %160 = vmatpush1.bf16.msra.mxu0 0
    %161 = vmatprep.subr.bf16.mxu0 0
    %162 = vmatpush1.bf16.msra.mxu0 0
    %163 = vmatprep.subr.bf16.mxu0 0
    %164 = vmatpush1.bf16.msra.mxu0 0
    %165 = vmatprep.subr.bf16.mxu0 0
    %166 = vmatpush1.bf16.msra.mxu0 0
    %167 = vmatprep.mubr.bf16.mxu0 0
    %168 = vmatmul.mubr.bf16.gmra.mrb[0].mxu0 %v133
    %v169 = vpop.f32.mrb[0].mxu0
    %v170 = vadd.f32 0.0, %v169
    %v171 = vpop.f32.mrb[0].mxu0
    %v172 = vpop.f32.mrb[0].mxu0
    %v173 = vadd.f32 0.0, %v172
    %v174 = vpop.f32.mrb[0].mxu0
    %175 = vdwg.mxu0
    %v176 = vmul.f32 %v170, 8.0
    %v177 = vmul.f32 %v173, 8.0
    %v178 = vld [vmem:[%s3] sm:$0xff]
    %v179 = vadd.f32 %v176, %v178
    %v180 = vadd.f32 %v177, %v178
    %v181 = vld [vmem:[%s1] sm:$0xff]
    %v182 = vld [vmem:[%s1 + $0x8] sm:$0xff]
    %v183 = vld [vmem:[%s1 + $0x10] sm:$0xff]
    %v184 = vld [vmem:[%s1 + $0x18] sm:$0xff]
    %v185 = vld [vmem:[%s1 + $0x20] sm:$0xff]
    %v186 = vld [vmem:[%s1 + $0x28] sm:$0xff]
    %v187 = vld [vmem:[%s1 + $0x30] sm:$0xff]
    %v188 = vld [vmem:[%s1 + $0x38] sm:$0xff]
    %v189 = vld [vmem:[#allocation6] sm:$0xff]
    %v190 = vpack.c.bf16 %v180, %v179
    %v191 = vld [vmem:[%s4] sm:$0xff]
    %v192 = vld [vmem:[%s4 + $0x8] sm:$0xff]
    %v193 = vld [vmem:[%s4 + $0x10] sm:$0xff]
    %v194 = vld [vmem:[%s4 + $0x18] sm:$0xff]
    %v195 = vld [vmem:[%s4 + $0x20] sm:$0xff]
    %v196 = vld [vmem:[%s4 + $0x28] sm:$0xff]
    %v197 = vld [vmem:[%s4 + $0x30] sm:$0xff]
    %v198 = vld [vmem:[%s4 + $0x38] sm:$0xff]
    %v199 = vld [vmem:[%s5] sm:$0x3]
    %v201 = vlaneseq
    %v202 = vshrl.u32 %v201, 7
    %v203 = vsub.s32 0, %v202
    %v204 = vrot.slane %v199, %v203
    %v205 = vlaneseq
    %v206 = vshrl.u32 %v205, 7
    %v207 = vsub.s32 1, %v206
    %v208 = vrot.slane %v199, %v207
    %v219 = vunpack.c.l.b16 %v191
    %v220 = vunpack.c.h.b16 %v191
    %v221 = vunpack.c.l.b16 %v192
    %v222 = vunpack.c.h.b16 %v192
    %v223 = vunpack.c.l.b16 %v193
    %v224 = vunpack.c.h.b16 %v193
    %v225 = vunpack.c.l.b16 %v194
    %v226 = vunpack.c.h.b16 %v194
    %v227 = vunpack.c.l.b16 %v195
    %v228 = vunpack.c.h.b16 %v195
    %v229 = vunpack.c.l.b16 %v196
    %v230 = vunpack.c.h.b16 %v196
    %v231 = vunpack.c.l.b16 %v197
    %v232 = vunpack.c.h.b16 %v197
    %v233 = vunpack.c.l.b16 %v198
    %v234 = vunpack.c.h.b16 %v198
    %v235 = vpack.c.b16 %v221, %v219
    %v236 = vpack.c.b16 %v222, %v220
    %v237 = vpack.c.b16 %v225, %v223
    %v238 = vpack.c.b16 %v226, %v224
    %v239 = vpack.c.b16 %v229, %v227
    %v240 = vpack.c.b16 %v230, %v228
    %v241 = vpack.c.b16 %v233, %v231
    %v242 = vpack.c.b16 %v234, %v232
    %vm251 = vcmask 523264
    %v253 = vsel %vm251, %v190, 0
    %255 = vmatprep.subr.bf16.mxu0 %v236
    %256 = vmatpush1.bf16.msra.mxu0 %v235
    %257 = vmatprep.subr.bf16.mxu0 %v238
    %258 = vmatpush1.bf16.msra.mxu0 %v237
    %259 = vmatprep.subr.bf16.mxu0 %v240
    %260 = vmatpush1.bf16.msra.mxu0 %v239
    %261 = vmatprep.subr.bf16.mxu0 %v242
    %262 = vmatpush1.bf16.msra.mxu0 %v241
    %263 = vmatprep.subr.bf16.mxu0 0
    %264 = vmatpush1.bf16.msra.mxu0 0
    %265 = vmatprep.subr.bf16.mxu0 0
    %266 = vmatpush1.bf16.msra.mxu0 0
    %267 = vmatprep.subr.bf16.mxu0 0
    %268 = vmatpush1.bf16.msra.mxu0 0
    %269 = vmatprep.subr.bf16.mxu0 0
    %270 = vmatpush1.bf16.msra.mxu0 0
    %271 = vmatprep.subr.bf16.mxu0 0
    %272 = vmatpush1.bf16.msra.mxu0 0
    %273 = vmatprep.subr.bf16.mxu0 0
    %274 = vmatpush1.bf16.msra.mxu0 0
    %275 = vmatprep.subr.bf16.mxu0 0
    %276 = vmatpush1.bf16.msra.mxu0 0
    %277 = vmatprep.subr.bf16.mxu0 0
    %278 = vmatpush1.bf16.msra.mxu0 0
    %279 = vmatprep.subr.bf16.mxu0 0
    %280 = vmatpush1.bf16.msra.mxu0 0
    %281 = vmatprep.subr.bf16.mxu0 0
    %282 = vmatpush1.bf16.msra.mxu0 0
    %283 = vmatprep.subr.bf16.mxu0 0
    %284 = vmatpush1.bf16.msra.mxu0 0
    %285 = vmatprep.subr.bf16.mxu0 0
    %286 = vmatpush1.bf16.msra.mxu0 0
    %287 = vmatprep.mubr.bf16.mxu0 0
    %288 = vmatmul.mubr.bf16.gmra.mrb[0].mxu0 %v253
    %v289 = vpop.f32.mrb[0].mxu0
    %v290 = vadd.f32 %v204, %v289
    %v291 = vpop.f32.mrb[0].mxu0
    %v292 = vadd.f32 %v208, %v291
    %v293 = vpop.f32.mrb[0].mxu0
    %v294 = vadd.f32 %v204, %v293
    %v295 = vpop.f32.mrb[0].mxu0
    %v296 = vadd.f32 %v208, %v295
    %297 = vdwg.mxu0
    %300 = vrot.lane.b32.xlu0 %v290, 112
    %v301 = vpop.permute.xlu0 %300
    %302 = vrot.lane.b32.xlu0 %v294, 112
    %v303 = vpop.permute.xlu0 %302
    %306 = vrot.lane.b32.xlu0 %v290, 96
    %v307 = vpop.permute.xlu0 %306
    %308 = vrot.lane.b32.xlu0 %v294, 96
    %v309 = vpop.permute.xlu0 %308
    %312 = vrot.lane.b32.xlu0 %v290, 80
    %v313 = vpop.permute.xlu0 %312
    %314 = vrot.lane.b32.xlu0 %v294, 80
    %v315 = vpop.permute.xlu0 %314
    %v318 = vpack.c.bf16 %v294, %v290
    %v319 = vpack.c.bf16 %v303, %v301
    %v320 = vpack.c.bf16 %v309, %v307
    %v321 = vpack.c.bf16 %v315, %v313
    %324 = vrot.lane.b32.xlu0 %v292, 112
    %v325 = vpop.permute.xlu0 %324
    %326 = vrot.lane.b32.xlu0 %v296, 112
    %v327 = vpop.permute.xlu0 %326
    %330 = vrot.lane.b32.xlu0 %v292, 96
    %v331 = vpop.permute.xlu0 %330
    %332 = vrot.lane.b32.xlu0 %v296, 96
    %v333 = vpop.permute.xlu0 %332
    %336 = vrot.lane.b32.xlu0 %v292, 80
    %v337 = vpop.permute.xlu0 %336
    %338 = vrot.lane.b32.xlu0 %v296, 80
    %v339 = vpop.permute.xlu0 %338
    %v342 = vpack.c.bf16 %v296, %v292
    %v343 = vpack.c.bf16 %v327, %v325
    %v344 = vpack.c.bf16 %v333, %v331
    %v345 = vpack.c.bf16 %v339, %v337
    %350 = vrot.lane.b32.xlu0 %v318, 64
    %v351 = vpop.permute.xlu0 %350
    %352 = vrot.lane.b32.xlu0 %v319, 64
    %v353 = vpop.permute.xlu0 %352
    %354 = vrot.lane.b32.xlu0 %v320, 64
    %v355 = vpop.permute.xlu0 %354
    %356 = vrot.lane.b32.xlu0 %v321, 64
    %v357 = vpop.permute.xlu0 %356
    %vm358 = vcmask 130048
    %v360 = vsel %vm358, %v318, 0
    %v363 = vsel %vm358, %v319, 0
    %v366 = vsel %vm358, %v320, 0
    %v369 = vsel %vm358, %v321, 0
    %v372 = vsel %vm358, %v351, 0
    %v375 = vsel %vm358, %v353, 0
    %v378 = vsel %vm358, %v355, 0
    %v381 = vsel %vm358, %v357, 0
    %383 = vmatprep.subr.bf16.mxu0 0
    %384 = vmatpush1.bf16.xpose.msra.mxu0 %v372
    %385 = vmatprep.subr.bf16.mxu0 0
    %386 = vmatpush1.bf16.xpose.msra.mxu0 %v375
    %387 = vmatprep.subr.bf16.mxu0 0
    %388 = vmatpush1.bf16.xpose.msra.mxu0 %v378
    %389 = vmatprep.subr.bf16.mxu0 0
    %390 = vmatpush1.bf16.xpose.msra.mxu0 %v381
    %391 = vmatprep.subr.bf16.mxu0 0
    %392 = vmatpush1.bf16.xpose.msra.mxu0 0
    %393 = vmatprep.subr.bf16.mxu0 0
    %394 = vmatpush1.bf16.xpose.msra.mxu0 0
    %395 = vmatprep.subr.bf16.mxu0 0
    %396 = vmatpush1.bf16.xpose.msra.mxu0 0
    %397 = vmatprep.subr.bf16.mxu0 0
    %398 = vmatpush1.bf16.xpose.msra.mxu0 0
    %399 = vmatprep.subr.bf16.mxu0 0
    %400 = vmatpush1.bf16.xpose.msra.mxu0 0
    %401 = vmatprep.subr.bf16.mxu0 0
    %402 = vmatpush1.bf16.xpose.msra.mxu0 0
    %403 = vmatprep.subr.bf16.mxu0 0
    %404 = vmatpush1.bf16.xpose.msra.mxu0 0
    %405 = vmatprep.subr.bf16.mxu0 0
    %406 = vmatpush1.bf16.xpose.msra.mxu0 0
    %407 = vmatprep.subr.bf16.mxu0 0
    %408 = vmatpush1.bf16.xpose.msra.mxu0 0
    %409 = vmatprep.subr.bf16.mxu0 0
    %410 = vmatpush1.bf16.xpose.msra.mxu0 0
    %411 = vmatprep.subr.bf16.mxu0 0
    %412 = vmatpush1.bf16.xpose.msra.mxu0 0
    %413 = vmatprep.subr.bf16.mxu0 0
    %414 = vmatpush1.bf16.xpose.msra.mxu0 0
    %415 = vmatprep.mubr.bf16.mxu0 0
    %416 = vmatmul.mubr.bf16.gmra.mrb[0].mxu0 %v360
    %v417 = vpop.f32.mrb[0].mxu0
    %v418 = vadd.f32 0.0, %v417
    %v419 = vpop.f32.mrb[0].mxu0
    %v420 = vpop.f32.mrb[0].mxu0
    %v421 = vadd.f32 0.0, %v420
    %v422 = vpop.f32.mrb[0].mxu0
    %423 = vmatprep.mubr.bf16.mxu0 0
    %424 = vmatmul.mubr.bf16.gmra.mrb[0].mxu0 %v363
    %v425 = vpop.f32.mrb[0].mxu0
    %v426 = vadd.f32 0.0, %v425
    %v427 = vpop.f32.mrb[0].mxu0
    %v428 = vpop.f32.mrb[0].mxu0
    %v429 = vadd.f32 0.0, %v428
    %v430 = vpop.f32.mrb[0].mxu0
    %431 = vmatprep.mubr.bf16.mxu0 0
    %432 = vmatmul.mubr.bf16.gmra.mrb[0].mxu0 %v366
    %v433 = vpop.f32.mrb[0].mxu0
    %v434 = vadd.f32 0.0, %v433
    %v435 = vpop.f32.mrb[0].mxu0
    %v436 = vpop.f32.mrb[0].mxu0
    %v437 = vadd.f32 0.0, %v436
    %v438 = vpop.f32.mrb[0].mxu0
    %439 = vmatprep.mubr.bf16.mxu0 0
    %440 = vmatmul.mubr.bf16.gmra.mrb[0].mxu0 %v369
    %v441 = vpop.f32.mrb[0].mxu0
    %v442 = vadd.f32 0.0, %v441
    %v443 = vpop.f32.mrb[0].mxu0
    %v444 = vpop.f32.mrb[0].mxu0
    %v445 = vadd.f32 0.0, %v444
    %v446 = vpop.f32.mrb[0].mxu0
    %447 = vdwg.mxu0
    %v448 = vmul.f32 %v418, 0.25
    %v449 = vmul.f32 %v421, 0.25
    %v450 = vmul.f32 %v426, 0.25
    %v451 = vmul.f32 %v429, 0.25
    %v452 = vmul.f32 %v434, 0.25
    %v453 = vmul.f32 %v437, 0.25
    %v454 = vmul.f32 %v442, 0.25
    %v455 = vmul.f32 %v445, 0.25
    %v456 = vadd.f32 %v448, %v181
    %v457 = vadd.f32 %v449, %v182
    %v458 = vadd.f32 %v450, %v183
    %v459 = vadd.f32 %v451, %v184
    %v460 = vadd.f32 %v452, %v185
    %v461 = vadd.f32 %v453, %v186
    %v462 = vadd.f32 %v454, %v187
    %v463 = vadd.f32 %v455, %v188
    %v464 = vsel %vm251, %v456, -inf
    %465 = vmax.xlane.f32.xlu0 %v464
    %v466 = vpop.xlane.xlu0 %465
    %v467 = vsel %vm251, %v457, -inf
    %468 = vmax.xlane.f32.xlu0 %v467
    %v469 = vpop.xlane.xlu0 %468
    %v470 = vsel %vm251, %v458, -inf
    %471 = vmax.xlane.f32.xlu0 %v470
    %v472 = vpop.xlane.xlu0 %471
    %v473 = vsel %vm251, %v459, -inf
    %474 = vmax.xlane.f32.xlu0 %v473
    %v475 = vpop.xlane.xlu0 %474
    %v476 = vsel %vm251, %v460, -inf
    %477 = vmax.xlane.f32.xlu0 %v476
    %v478 = vpop.xlane.xlu0 %477
    %v479 = vsel %vm251, %v461, -inf
    %480 = vmax.xlane.f32.xlu0 %v479
    %v481 = vpop.xlane.xlu0 %480
    %v482 = vsel %vm251, %v462, -inf
    %483 = vmax.xlane.f32.xlu0 %v482
    %v484 = vpop.xlane.xlu0 %483
    %v485 = vsel %vm251, %v463, -inf
    %486 = vmax.xlane.f32.xlu0 %v485
    %v487 = vpop.xlane.xlu0 %486
    %v488 = vsub.f32 %v456, %v466
    %v489 = vsub.f32 %v457, %v469
    %v490 = vsub.f32 %v458, %v472
    %v491 = vsub.f32 %v459, %v475
    %v492 = vsub.f32 %v460, %v478
    %v493 = vsub.f32 %v461, %v481
    %v494 = vsub.f32 %v462, %v484
    %v495 = vsub.f32 %v463, %v487
    %v496 = vmul.f32 %v488, 1.442695
    %v497 = vpow.pop %v496
    %v498 = vmul.f32 %v489, 1.442695
    %v499 = vpow.pop %v498
    %v500 = vmul.f32 %v490, 1.442695
    %v501 = vpow.pop %v500
    %v502 = vmul.f32 %v491, 1.442695
    %v503 = vpow.pop %v502
    %v504 = vmul.f32 %v492, 1.442695
    %v505 = vpow.pop %v504
    %v506 = vmul.f32 %v493, 1.442695
    %v507 = vpow.pop %v506
    %v508 = vmul.f32 %v494, 1.442695
    %v509 = vpow.pop %v508
    %v510 = vmul.f32 %v495, 1.442695
    %v511 = vpow.pop %v510
    %v512 = vsel %vm251, %v497, 0.0
    %513 = vadd.xlane.f32.xlu0 %v512
    %v514 = vpop.xlane.xlu0 %513
    %v515 = vsel %vm251, %v499, 0.0
    %516 = vadd.xlane.f32.xlu0 %v515
    %v517 = vpop.xlane.xlu0 %516
    %v518 = vsel %vm251, %v501, 0.0
    %519 = vadd.xlane.f32.xlu0 %v518
    %v520 = vpop.xlane.xlu0 %519
    %v521 = vsel %vm251, %v503, 0.0
    %522 = vadd.xlane.f32.xlu0 %v521
    %v523 = vpop.xlane.xlu0 %522
    %v524 = vsel %vm251, %v505, 0.0
    %525 = vadd.xlane.f32.xlu0 %v524
    %v526 = vpop.xlane.xlu0 %525
    %v527 = vsel %vm251, %v507, 0.0
    %528 = vadd.xlane.f32.xlu0 %v527
    %v529 = vpop.xlane.xlu0 %528
    %v530 = vsel %vm251, %v509, 0.0
    %531 = vadd.xlane.f32.xlu0 %v530
    %v532 = vpop.xlane.xlu0 %531
    %v533 = vsel %vm251, %v511, 0.0
    %534 = vadd.xlane.f32.xlu0 %v533
    %v535 = vpop.xlane.xlu0 %534
    %v536 = vrcp.pop %v514
    %v537 = vmul.f32 %v497, %v536
    %v538 = vrcp.pop %v517
    %v539 = vmul.f32 %v499, %v538
    %v540 = vrcp.pop %v520
    %v541 = vmul.f32 %v501, %v540
    %v542 = vrcp.pop %v523
    %v543 = vmul.f32 %v503, %v542
    %v544 = vrcp.pop %v526
    %v545 = vmul.f32 %v505, %v544
    %v546 = vrcp.pop %v529
    %v547 = vmul.f32 %v507, %v546
    %v548 = vrcp.pop %v532
    %v549 = vmul.f32 %v509, %v548
    %v550 = vrcp.pop %v535
    %v551 = vmul.f32 %v511, %v550
    %v552 = vpack.c.bf16 %v539, %v537
    %v553 = vpack.c.bf16 %v543, %v541
    %v554 = vpack.c.bf16 %v547, %v545
    %v555 = vpack.c.bf16 %v551, %v549
    %v557 = vsel %vm251, %v552, 0
    %v560 = vsel %vm251, %v553, 0
    %v563 = vsel %vm251, %v554, 0
    %v566 = vsel %vm251, %v555, 0
    %568 = vmatprep.subr.bf16.mxu0 0
    %569 = vmatpush1.bf16.msra.mxu0 %v342
    %570 = vmatprep.subr.bf16.mxu0 0
    %571 = vmatpush1.bf16.msra.mxu0 %v343
    %572 = vmatprep.subr.bf16.mxu0 0
    %573 = vmatpush1.bf16.msra.mxu0 %v344
    %574 = vmatprep.subr.bf16.mxu0 0
    %575 = vmatpush1.bf16.msra.mxu0 %v345
    %576 = vmatprep.subr.bf16.mxu0 0
    %577 = vmatpush1.bf16.msra.mxu0 0
    %578 = vmatprep.subr.bf16.mxu0 0
    %579 = vmatpush1.bf16.msra.mxu0 0
    %580 = vmatprep.subr.bf16.mxu0 0
    %581 = vmatpush1.bf16.msra.mxu0 0
    %582 = vmatprep.subr.bf16.mxu0 0
    %583 = vmatpush1.bf16.msra.mxu0 0
    %584 = vmatprep.subr.bf16.mxu0 0
    %585 = vmatpush1.bf16.msra.mxu0 0
    %586 = vmatprep.subr.bf16.mxu0 0
    %587 = vmatpush1.bf16.msra.mxu0 0
    %588 = vmatprep.subr.bf16.mxu0 0
    %589 = vmatpush1.bf16.msra.mxu0 0
    %590 = vmatprep.subr.bf16.mxu0 0
    %591 = vmatpush1.bf16.msra.mxu0 0
    %592 = vmatprep.subr.bf16.mxu0 0
    %593 = vmatpush1.bf16.msra.mxu0 0
    %594 = vmatprep.subr.bf16.mxu0 0
    %595 = vmatpush1.bf16.msra.mxu0 0
    %596 = vmatprep.subr.bf16.mxu0 0
    %597 = vmatpush1.bf16.msra.mxu0 0
    %598 = vmatprep.subr.bf16.mxu0 0
    %599 = vmatpush1.bf16.msra.mxu0 0
    %600 = vmatprep.mubr.bf16.mxu0 0
    %601 = vmatmul.mubr.bf16.gmra.mrb[0].mxu0 %v557
    %v602 = vpop.f32.mrb[0].mxu0
    %v603 = vadd.f32 0.0, %v602
    %v604 = vpop.f32.mrb[0].mxu0
    %v605 = vpop.f32.mrb[0].mxu0
    %v606 = vadd.f32 0.0, %v605
    %v607 = vpop.f32.mrb[0].mxu0
    %608 = vmatprep.mubr.bf16.mxu0 0
    %609 = vmatmul.mubr.bf16.gmra.mrb[0].mxu0 %v560
    %v610 = vpop.f32.mrb[0].mxu0
    %v611 = vadd.f32 0.0, %v610
    %v612 = vpop.f32.mrb[0].mxu0
    %v613 = vpop.f32.mrb[0].mxu0
    %v614 = vadd.f32 0.0, %v613
    %v615 = vpop.f32.mrb[0].mxu0
    %616 = vmatprep.mubr.bf16.mxu0 0
    %617 = vmatmul.mubr.bf16.gmra.mrb[0].mxu0 %v563
    %v618 = vpop.f32.mrb[0].mxu0
    %v619 = vadd.f32 0.0, %v618
    %v620 = vpop.f32.mrb[0].mxu0
    %v621 = vpop.f32.mrb[0].mxu0
    %v622 = vadd.f32 0.0, %v621
    %v623 = vpop.f32.mrb[0].mxu0
    %624 = vmatprep.mubr.bf16.mxu0 0
    %625 = vmatmul.mubr.bf16.gmra.mrb[0].mxu0 %v566
    %v626 = vpop.f32.mrb[0].mxu0
    %v627 = vadd.f32 0.0, %v626
    %v628 = vpop.f32.mrb[0].mxu0
    %v629 = vpop.f32.mrb[0].mxu0
    %v630 = vadd.f32 0.0, %v629
    %v631 = vpop.f32.mrb[0].mxu0
    %632 = vdwg.mxu0
    %635 = vrot.lane.b32.xlu0 %v611, 16
    %v636 = vpop.permute.xlu0 %635
    %637 = vrot.lane.b32.xlu0 %v614, 16
    %v638 = vpop.permute.xlu0 %637
    %643 = vrot.lane.b32.xlu0 %v619, 32
    %v644 = vpop.permute.xlu0 %643
    %645 = vrot.lane.b32.xlu0 %v622, 32
    %v646 = vpop.permute.xlu0 %645
    %651 = vrot.lane.b32.xlu0 %v627, 48
    %v652 = vpop.permute.xlu0 %651
    %653 = vrot.lane.b32.xlu0 %v630, 48
    %v654 = vpop.permute.xlu0 %653
    %v657 = vsel %vm358, %v603, %v636
    %v658 = vsel %vm358, %v606, %v638
    %v659 = vsel %vm131, %v657, %v644
    %v660 = vsel %vm131, %v658, %v646
    %vm661 = vcmask 392192
    %v662 = vsel %vm661, %v659, %v652
    %v663 = vsel %vm661, %v660, %v654
    %v664 = vpack.c.bf16 %v663, %v662
    %v665 = vld [vmem:[%s6] sm:$0xf]
    %v666 = vld [vmem:[%s6 + $0x4] sm:$0xf]
    %v667 = vld [vmem:[%s6 + $0x8] sm:$0xf]
    %v668 = vld [vmem:[%s6 + $0xc] sm:$0xf]
    %v669 = vld [vmem:[%s6 + $0x10] sm:$0xf]
    %v670 = vld [vmem:[%s6 + $0x14] sm:$0xf]
    %v671 = vld [vmem:[%s6 + $0x18] sm:$0xf]
    %v672 = vld [vmem:[%s6 + $0x1c] sm:$0xf]
    %v673 = vlaneseq
    %v674 = vshrl.u32 %v673, 7
    %v675 = vsub.s32 0, %v674
    %v676 = vrot.slane %v189, %v675
    %v685 = vunpack.c.l.b16 %v665
    %v686 = vunpack.c.l.b16 %v666
    %v687 = vunpack.c.l.b16 %v667
    %v688 = vunpack.c.l.b16 %v668
    %v689 = vunpack.c.l.b16 %v669
    %v690 = vunpack.c.l.b16 %v670
    %v691 = vunpack.c.l.b16 %v671
    %v692 = vunpack.c.l.b16 %v672
    %v693 = vpack.c.b16 %v686, %v685
    %v694 = vpack.c.b16 %v688, %v687
    %v695 = vpack.c.b16 %v690, %v689
    %v696 = vpack.c.b16 %v692, %v691
    %v702 = vsel %vm251, %v664, 0
    %704 = vmatprep.subr.bf16.mxu0 0
    %705 = vmatpush1.bf16.msra.mxu0 %v693
    %706 = vmatprep.subr.bf16.mxu0 0
    %707 = vmatpush1.bf16.msra.mxu0 %v694
    %708 = vmatprep.subr.bf16.mxu0 0
    %709 = vmatpush1.bf16.msra.mxu0 %v695
    %710 = vmatprep.subr.bf16.mxu0 0
    %711 = vmatpush1.bf16.msra.mxu0 %v696
    %712 = vmatprep.subr.bf16.mxu0 0
    %713 = vmatpush1.bf16.msra.mxu0 0
    %714 = vmatprep.subr.bf16.mxu0 0
    %715 = vmatpush1.bf16.msra.mxu0 0
    %716 = vmatprep.subr.bf16.mxu0 0
    %717 = vmatpush1.bf16.msra.mxu0 0
    %718 = vmatprep.subr.bf16.mxu0 0
    %719 = vmatpush1.bf16.msra.mxu0 0
    %720 = vmatprep.subr.bf16.mxu0 0
    %721 = vmatpush1.bf16.msra.mxu0 0
    %722 = vmatprep.subr.bf16.mxu0 0
    %723 = vmatpush1.bf16.msra.mxu0 0
    %724 = vmatprep.subr.bf16.mxu0 0
    %725 = vmatpush1.bf16.msra.mxu0 0
    %726 = vmatprep.subr.bf16.mxu0 0
    %727 = vmatpush1.bf16.msra.mxu0 0
    %728 = vmatprep.subr.bf16.mxu0 0
    %729 = vmatpush1.bf16.msra.mxu0 0
    %730 = vmatprep.subr.bf16.mxu0 0
    %731 = vmatpush1.bf16.msra.mxu0 0
    %732 = vmatprep.subr.bf16.mxu0 0
    %733 = vmatpush1.bf16.msra.mxu0 0
    %734 = vmatprep.subr.bf16.mxu0 0
    %735 = vmatpush1.bf16.msra.mxu0 0
    %736 = vmatprep.mubr.bf16.mxu0 0
    %737 = vmatmul.mubr.bf16.gmra.mrb[0].mxu0 %v702
    %v738 = vpop.f32.mrb[0].mxu0
    %v739 = vadd.f32 %v676, %v738
    %v740 = vpop.f32.mrb[0].mxu0
    %v741 = vpop.f32.mrb[0].mxu0
    %v742 = vadd.f32 %v676, %v741
    %v743 = vpop.f32.mrb[0].mxu0
    %744 = vdwg.mxu0
    %v745 = vadd.f32 %v179, %v739
    %v746 = vadd.f32 %v180, %v742
    %v747 = vsel %vm251, %v745, 0.0
    %748 = vadd.xlane.f32.xlu0 %v747
    %v749 = vpop.xlane.xlu0 %748
    %v750 = vsel %vm251, %v746, 0.0
    %751 = vadd.xlane.f32.xlu0 %v750
    %v752 = vpop.xlane.xlu0 %751
    %v753 = vrcp.pop 64.0
    %v754 = vmul.f32 %v749, %v753
    %v755 = vmul.f32 %v752, %v753
    %v756 = vsub.f32 %v745, %v754
    %v757 = vsub.f32 %v746, %v755
    %v758 = vmul.f32 %v756, %v756
    %v759 = vmul.f32 %v757, %v757
    %v760 = vsel %vm251, %v758, 0.0
    %761 = vadd.xlane.f32.xlu0 %v760
    %v762 = vpop.xlane.xlu0 %761
    %v763 = vsel %vm251, %v759, 0.0
    %764 = vadd.xlane.f32.xlu0 %v763
    %v765 = vpop.xlane.xlu0 %764
    %v766 = vmul.f32 %v762, %v753
    %v767 = vmul.f32 %v765, %v753
    %v768 = vadd.f32 %v766, 1e-05
    %v769 = vadd.f32 %v767, 1e-05
    %v770 = vrsqrt.pop %v768
    %v771 = vrsqrt.pop %v769
    %v772 = vmul.f32 %v756, %v770
    %v773 = vmul.f32 %v757, %v771
    %v774 = vlaneseq
    %v775 = vshrl.u32 %v774, 7
    %v776 = vsub.s32 2, %v775
    %v777 = vrot.slane %v189, %v776
    %v778 = vmul.f32 %v772, %v777
    %v779 = vmul.f32 %v773, %v777
    %v780 = vlaneseq
    %v781 = vshrl.u32 %v780, 7
    %v782 = vsub.s32 3, %v781
    %v783 = vrot.slane %v189, %v782
    %v784 = vadd.f32 %v778, %v783
    %v785 = vadd.f32 %v779, %v783
    %v786 = vpack.c.bf16 %v785, %v784
    %v787 = vld [vmem:[%s7] sm:$0xf]
    %v788 = vld [vmem:[%s7 + $0x4] sm:$0xf]
    %v789 = vld [vmem:[%s7 + $0x8] sm:$0xf]
    %v790 = vld [vmem:[%s7 + $0xc] sm:$0xf]
    %v791 = vld [vmem:[%s7 + $0x10] sm:$0xf]
    %v792 = vld [vmem:[%s7 + $0x14] sm:$0xf]
    %v793 = vld [vmem:[%s7 + $0x18] sm:$0xf]
    %v794 = vld [vmem:[%s7 + $0x1c] sm:$0xf]
    %v795 = vld [vmem:[#allocation4] sm:$0x1]
    %v797 = vlaneseq
    %v798 = vshrl.u32 %v797, 7
    %v799 = vsub.s32 0, %v798
    %v800 = vrot.slane %v795, %v799
    %v810 = vunpack.c.l.b16 %v787
    %v811 = vunpack.c.l.b16 %v788
    %v812 = vunpack.c.l.b16 %v789
    %v813 = vunpack.c.l.b16 %v790
    %v814 = vunpack.c.l.b16 %v791
    %v815 = vunpack.c.l.b16 %v792
    %v816 = vunpack.c.l.b16 %v793
    %v817 = vunpack.c.l.b16 %v794
    %v818 = vpack.c.b16 %v811, %v810
    %v819 = vpack.c.b16 %v813, %v812
    %v820 = vpack.c.b16 %v815, %v814
    %v821 = vpack.c.b16 %v817, %v816
    %v827 = vsel %vm251, %v786, 0
    %829 = vmatprep.subr.bf16.mxu0 0
    %830 = vmatpush1.bf16.msra.mxu0 %v818
    %831 = vmatprep.subr.bf16.mxu0 0
    %832 = vmatpush1.bf16.msra.mxu0 %v819
    %833 = vmatprep.subr.bf16.mxu0 0
    %834 = vmatpush1.bf16.msra.mxu0 %v820
    %835 = vmatprep.subr.bf16.mxu0 0
    %836 = vmatpush1.bf16.msra.mxu0 %v821
    %837 = vmatprep.subr.bf16.mxu0 0
    %838 = vmatpush1.bf16.msra.mxu0 0
    %839 = vmatprep.subr.bf16.mxu0 0
    %840 = vmatpush1.bf16.msra.mxu0 0
    %841 = vmatprep.subr.bf16.mxu0 0
    %842 = vmatpush1.bf16.msra.mxu0 0
    %843 = vmatprep.subr.bf16.mxu0 0
    %844 = vmatpush1.bf16.msra.mxu0 0
    %845 = vmatprep.subr.bf16.mxu0 0
    %846 = vmatpush1.bf16.msra.mxu0 0
    %847 = vmatprep.subr.bf16.mxu0 0
    %848 = vmatpush1.bf16.msra.mxu0 0
    %849 = vmatprep.subr.bf16.mxu0 0
    %850 = vmatpush1.bf16.msra.mxu0 0
    %851 = vmatprep.subr.bf16.mxu0 0
    %852 = vmatpush1.bf16.msra.mxu0 0
    %853 = vmatprep.subr.bf16.mxu0 0
    %854 = vmatpush1.bf16.msra.mxu0 0
    %855 = vmatprep.subr.bf16.mxu0 0
    %856 = vmatpush1.bf16.msra.mxu0 0
    %857 = vmatprep.subr.bf16.mxu0 0
    %858 = vmatpush1.bf16.msra.mxu0 0
    %859 = vmatprep.subr.bf16.mxu0 0
    %860 = vmatpush1.bf16.msra.mxu0 0
    %861 = vmatprep.mubr.bf16.mxu0 0
    %862 = vmatmul.mubr.bf16.gmra.mrb[0].mxu0 %v827
    %v863 = vpop.f32.mrb[0].mxu0
    %v864 = vadd.f32 %v800, %v863
    %v865 = vpop.f32.mrb[0].mxu0
    %v866 = vpop.f32.mrb[0].mxu0
    %v867 = vadd.f32 %v800, %v866
    %v868 = vpop.f32.mrb[0].mxu0
    %869 = vdwg.mxu0
    %v870 = vmax.f32 %v864, 0.0
    %v871 = vmax.f32 %v867, 0.0
    %v872 = vpack.c.bf16 %v871, %v870
    %v873 = vld [vmem:[%s9] sm:$0xf]
    %v874 = vld [vmem:[%s9 + $0x4] sm:$0xf]
    %v875 = vld [vmem:[%s9 + $0x8] sm:$0xf]
    %v876 = vld [vmem:[%s9 + $0xc] sm:$0xf]
    %v877 = vld [vmem:[%s9 + $0x10] sm:$0xf]
    %v878 = vld [vmem:[%s9 + $0x14] sm:$0xf]
    %v879 = vld [vmem:[%s9 + $0x18] sm:$0xf]
    %v880 = vld [vmem:[%s9 + $0x1c] sm:$0xf]
    %v881 = vld [vmem:[%s9 + $0x20] sm:$0xf]
    %v882 = vld [vmem:[%s9 + $0x24] sm:$0xf]
    %v883 = vld [vmem:[%s9 + $0x28] sm:$0xf]
    %v884 = vld [vmem:[%s9 + $0x2c] sm:$0xf]
    %v885 = vld [vmem:[%s9 + $0x30] sm:$0xf]
    %v886 = vld [vmem:[%s9 + $0x34] sm:$0xf]
    %v887 = vld [vmem:[%s9 + $0x38] sm:$0xf]
    %v888 = vld [vmem:[%s9 + $0x3c] sm:$0xf]
    %v889 = vlaneseq
    %v890 = vshrl.u32 %v889, 7
    %v891 = vsub.s32 1, %v890
    %v892 = vrot.slane %v189, %v891
    %v909 = vunpack.c.l.b16 %v873
    %v910 = vunpack.c.l.b16 %v874
    %v911 = vunpack.c.l.b16 %v875
    %v912 = vunpack.c.l.b16 %v876
    %v913 = vunpack.c.l.b16 %v877
    %v914 = vunpack.c.l.b16 %v878
    %v915 = vunpack.c.l.b16 %v879
    %v916 = vunpack.c.l.b16 %v880
    %v917 = vunpack.c.l.b16 %v881
    %v918 = vunpack.c.l.b16 %v882
    %v919 = vunpack.c.l.b16 %v883
    %v920 = vunpack.c.l.b16 %v884
    %v921 = vunpack.c.l.b16 %v885
    %v922 = vunpack.c.l.b16 %v886
    %v923 = vunpack.c.l.b16 %v887
    %v924 = vunpack.c.l.b16 %v888
    %v925 = vpack.c.b16 %v910, %v909
    %v926 = vpack.c.b16 %v912, %v911
    %v927 = vpack.c.b16 %v914, %v913
    %v928 = vpack.c.b16 %v916, %v915
    %v929 = vpack.c.b16 %v918, %v917
    %v930 = vpack.c.b16 %v920, %v919
    %v931 = vpack.c.b16 %v922, %v921
    %v932 = vpack.c.b16 %v924, %v923
    %941 = vmatprep.subr.bf16.mxu0 0
    %942 = vmatpush1.bf16.msra.mxu0 %v925
    %943 = vmatprep.subr.bf16.mxu0 0
    %944 = vmatpush1.bf16.msra.mxu0 %v926
    %945 = vmatprep.subr.bf16.mxu0 0
    %946 = vmatpush1.bf16.msra.mxu0 %v927
    %947 = vmatprep.subr.bf16.mxu0 0
    %948 = vmatpush1.bf16.msra.mxu0 %v928
    %949 = vmatprep.subr.bf16.mxu0 0
    %950 = vmatpush1.bf16.msra.mxu0 %v929
    %951 = vmatprep.subr.bf16.mxu0 0
    %952 = vmatpush1.bf16.msra.mxu0 %v930
    %953 = vmatprep.subr.bf16.mxu0 0
    %954 = vmatpush1.bf16.msra.mxu0 %v931
    %955 = vmatprep.subr.bf16.mxu0 0
    %956 = vmatpush1.bf16.msra.mxu0 %v932
    %957 = vmatprep.subr.bf16.mxu0 0
    %958 = vmatpush1.bf16.msra.mxu0 0
    %959 = vmatprep.subr.bf16.mxu0 0
    %960 = vmatpush1.bf16.msra.mxu0 0
    %961 = vmatprep.subr.bf16.mxu0 0
    %962 = vmatpush1.bf16.msra.mxu0 0
    %963 = vmatprep.subr.bf16.mxu0 0
    %964 = vmatpush1.bf16.msra.mxu0 0
    %965 = vmatprep.subr.bf16.mxu0 0
    %966 = vmatpush1.bf16.msra.mxu0 0
    %967 = vmatprep.subr.bf16.mxu0 0
    %968 = vmatpush1.bf16.msra.mxu0 0
    %969 = vmatprep.subr.bf16.mxu0 0
    %970 = vmatpush1.bf16.msra.mxu0 0
    %971 = vmatprep.subr.bf16.mxu0 0
    %972 = vmatpush1.bf16.msra.mxu0 0
    %973 = vmatprep.mubr.bf16.mxu0 0
    %974 = vmatmul.mubr.bf16.gmra.mrb[0].mxu0 %v872
    %v975 = vpop.f32.mrb[0].mxu0
    %v976 = vadd.f32 %v892, %v975
    %v977 = vpop.f32.mrb[0].mxu0
    %v978 = vpop.f32.mrb[0].mxu0
    %v979 = vadd.f32 %v892, %v978
    %v980 = vpop.f32.mrb[0].mxu0
    %981 = vdwg.mxu0
    %v982 = vadd.f32 %v784, %v976
    %v983 = vadd.f32 %v785, %v979
    %v984 = vsel %vm251, %v982, 0.0
    %985 = vadd.xlane.f32.xlu0 %v984
    %v986 = vpop.xlane.xlu0 %985
    %v987 = vsel %vm251, %v983, 0.0
    %988 = vadd.xlane.f32.xlu0 %v987
    %v989 = vpop.xlane.xlu0 %988
    %v990 = vmul.f32 %v986, %v753
    %v991 = vmul.f32 %v989, %v753
    %v992 = vsub.f32 %v982, %v990
    %v993 = vsub.f32 %v983, %v991
    %v994 = vmul.f32 %v992, %v992
    %v995 = vmul.f32 %v993, %v993
    %v996 = vsel %vm251, %v994, 0.0
    %997 = vadd.xlane.f32.xlu0 %v996
    %v998 = vpop.xlane.xlu0 %997
    %v999 = vsel %vm251, %v995, 0.0
    %1000 = vadd.xlane.f32.xlu0 %v999
    %v1001 = vpop.xlane.xlu0 %1000
    %v1002 = vmul.f32 %v998, %v753
    %v1003 = vmul.f32 %v1001, %v753
    %v1004 = vadd.f32 %v1002, 1e-05
    %v1005 = vadd.f32 %v1003, 1e-05
    %v1006 = vrsqrt.pop %v1004
    %v1007 = vrsqrt.pop %v1005
    %v1008 = vmul.f32 %v992, %v1006
    %v1009 = vmul.f32 %v993, %v1007
    %v1010 = vlaneseq
    %v1011 = vshrl.u32 %v1010, 7
    %v1012 = vsub.s32 4, %v1011
    %v1013 = vrot.slane %v189, %v1012
    %v1014 = vmul.f32 %v1008, %v1013
    %v1015 = vmul.f32 %v1009, %v1013
    %v1016 = vlaneseq
    %v1017 = vshrl.u32 %v1016, 7
    %v1018 = vsub.s32 5, %v1017
    %v1019 = vrot.slane %v189, %v1018
    %v1020 = vadd.f32 %v1014, %v1019
    %v1021 = vadd.f32 %v1015, %v1019
    %s1022 = scalar_lea.vmem [#allocation6], 8
    %v1023 = vld [vmem:[%s1022] sm:$0xff]
    %v1024 = vpack.c.bf16 %v1021, %v1020
    %s1025 = scalar_lea.vmem %s4, 64
    %v1026 = vld [vmem:[%s1025] sm:$0xff]
    %v1027 = vld [vmem:[%s1025 + $0x8] sm:$0xff]
    %v1028 = vld [vmem:[%s1025 + $0x10] sm:$0xff]
    %v1029 = vld [vmem:[%s1025 + $0x18] sm:$0xff]
    %v1030 = vld [vmem:[%s1025 + $0x20] sm:$0xff]
    %v1031 = vld [vmem:[%s1025 + $0x28] sm:$0xff]
    %v1032 = vld [vmem:[%s1025 + $0x30] sm:$0xff]
    %v1033 = vld [vmem:[%s1025 + $0x38] sm:$0xff]
    %s1034 = scalar_lea.vmem %s5, 2
    %v1035 = vld [vmem:[%s1034] sm:$0x3]
    %v1037 = vlaneseq
    %v1038 = vshrl.u32 %v1037, 7
    %v1039 = vsub.s32 0, %v1038
    %v1040 = vrot.slane %v1035, %v1039
    %v1041 = vlaneseq
    %v1042 = vshrl.u32 %v1041, 7
    %v1043 = vsub.s32 1, %v1042
    %v1044 = vrot.slane %v1035, %v1043
    %v1055 = vunpack.c.l.b16 %v1026
    %v1056 = vunpack.c.h.b16 %v1026
    %v1057 = vunpack.c.l.b16 %v1027
    %v1058 = vunpack.c.h.b16 %v1027
    %v1059 = vunpack.c.l.b16 %v1028
    %v1060 = vunpack.c.h.b16 %v1028
    %v1061 = vunpack.c.l.b16 %v1029
    %v1062 = vunpack.c.h.b16 %v1029
    %v1063 = vunpack.c.l.b16 %v1030
    %v1064 = vunpack.c.h.b16 %v1030
    %v1065 = vunpack.c.l.b16 %v1031
    %v1066 = vunpack.c.h.b16 %v1031
    %v1067 = vunpack.c.l.b16 %v1032
    %v1068 = vunpack.c.h.b16 %v1032
    %v1069 = vunpack.c.l.b16 %v1033
    %v1070 = vunpack.c.h.b16 %v1033
    %v1071 = vpack.c.b16 %v1057, %v1055
    %v1072 = vpack.c.b16 %v1058, %v1056
    %v1073 = vpack.c.b16 %v1061, %v1059
    %v1074 = vpack.c.b16 %v1062, %v1060
    %v1075 = vpack.c.b16 %v1065, %v1063
    %v1076 = vpack.c.b16 %v1066, %v1064
    %v1077 = vpack.c.b16 %v1069, %v1067
    %v1078 = vpack.c.b16 %v1070, %v1068
    %v1088 = vsel %vm251, %v1024, 0
    %1090 = vmatprep.subr.bf16.mxu0 %v1072
    %1091 = vmatpush1.bf16.msra.mxu0 %v1071
    %1092 = vmatprep.subr.bf16.mxu0 %v1074
    %1093 = vmatpush1.bf16.msra.mxu0 %v1073
    %1094 = vmatprep.subr.bf16.mxu0 %v1076
    %1095 = vmatpush1.bf16.msra.mxu0 %v1075
    %1096 = vmatprep.subr.bf16.mxu0 %v1078
    %1097 = vmatpush1.bf16.msra.mxu0 %v1077
    %1098 = vmatprep.subr.bf16.mxu0 0
    %1099 = vmatpush1.bf16.msra.mxu0 0
    %1100 = vmatprep.subr.bf16.mxu0 0
    %1101 = vmatpush1.bf16.msra.mxu0 0
    %1102 = vmatprep.subr.bf16.mxu0 0
    %1103 = vmatpush1.bf16.msra.mxu0 0
    %1104 = vmatprep.subr.bf16.mxu0 0
    %1105 = vmatpush1.bf16.msra.mxu0 0
    %1106 = vmatprep.subr.bf16.mxu0 0
    %1107 = vmatpush1.bf16.msra.mxu0 0
    %1108 = vmatprep.subr.bf16.mxu0 0
    %1109 = vmatpush1.bf16.msra.mxu0 0
    %1110 = vmatprep.subr.bf16.mxu0 0
    %1111 = vmatpush1.bf16.msra.mxu0 0
    %1112 = vmatprep.subr.bf16.mxu0 0
    %1113 = vmatpush1.bf16.msra.mxu0 0
    %1114 = vmatprep.subr.bf16.mxu0 0
    %1115 = vmatpush1.bf16.msra.mxu0 0
    %1116 = vmatprep.subr.bf16.mxu0 0
    %1117 = vmatpush1.bf16.msra.mxu0 0
    %1118 = vmatprep.subr.bf16.mxu0 0
    %1119 = vmatpush1.bf16.msra.mxu0 0
    %1120 = vmatprep.subr.bf16.mxu0 0
    %1121 = vmatpush1.bf16.msra.mxu0 0
    %1122 = vmatprep.mubr.bf16.mxu0 0
    %1123 = vmatmul.mubr.bf16.gmra.mrb[0].mxu0 %v1088
    %v1124 = vpop.f32.mrb[0].mxu0
    %v1125 = vadd.f32 %v1040, %v1124
    %v1126 = vpop.f32.mrb[0].mxu0
    %v1127 = vadd.f32 %v1044, %v1126
    %v1128 = vpop.f32.mrb[0].mxu0
    %v1129 = vadd.f32 %v1040, %v1128
    %v1130 = vpop.f32.mrb[0].mxu0
    %v1131 = vadd.f32 %v1044, %v1130
    %1132 = vdwg.mxu0
    %1135 = vrot.lane.b32.xlu0 %v1125, 112
    %v1136 = vpop.permute.xlu0 %1135
    %1137 = vrot.lane.b32.xlu0 %v1129, 112
    %v1138 = vpop.permute.xlu0 %1137
    %1141 = vrot.lane.b32.xlu0 %v1125, 96
    %v1142 = vpop.permute.xlu0 %1141
    %1143 = vrot.lane.b32.xlu0 %v1129, 96
    %v1144 = vpop.permute.xlu0 %1143
    %1147 = vrot.lane.b32.xlu0 %v1125, 80
    %v1148 = vpop.permute.xlu0 %1147
    %1149 = vrot.lane.b32.xlu0 %v1129, 80
    %v1150 = vpop.permute.xlu0 %1149
    %v1153 = vpack.c.bf16 %v1129, %v1125
    %v1154 = vpack.c.bf16 %v1138, %v1136
    %v1155 = vpack.c.bf16 %v1144, %v1142
    %v1156 = vpack.c.bf16 %v1150, %v1148
    %1159 = vrot.lane.b32.xlu0 %v1127, 112
    %v1160 = vpop.permute.xlu0 %1159
    %1161 = vrot.lane.b32.xlu0 %v1131, 112
    %v1162 = vpop.permute.xlu0 %1161
    %1165 = vrot.lane.b32.xlu0 %v1127, 96
    %v1166 = vpop.permute.xlu0 %1165
    %1167 = vrot.lane.b32.xlu0 %v1131, 96
    %v1168 = vpop.permute.xlu0 %1167
    %1171 = vrot.lane.b32.xlu0 %v1127, 80
    %v1172 = vpop.permute.xlu0 %1171
    %1173 = vrot.lane.b32.xlu0 %v1131, 80
    %v1174 = vpop.permute.xlu0 %1173
    %v1177 = vpack.c.bf16 %v1131, %v1127
    %v1178 = vpack.c.bf16 %v1162, %v1160
    %v1179 = vpack.c.bf16 %v1168, %v1166
    %v1180 = vpack.c.bf16 %v1174, %v1172
    %1185 = vrot.lane.b32.xlu0 %v1153, 64
    %v1186 = vpop.permute.xlu0 %1185
    %1187 = vrot.lane.b32.xlu0 %v1154, 64
    %v1188 = vpop.permute.xlu0 %1187
    %1189 = vrot.lane.b32.xlu0 %v1155, 64
    %v1190 = vpop.permute.xlu0 %1189
    %1191 = vrot.lane.b32.xlu0 %v1156, 64
    %v1192 = vpop.permute.xlu0 %1191
    %v1194 = vsel %vm358, %v1153, 0
    %v1197 = vsel %vm358, %v1154, 0
    %v1200 = vsel %vm358, %v1155, 0
    %v1203 = vsel %vm358, %v1156, 0
    %v1206 = vsel %vm358, %v1186, 0
    %v1209 = vsel %vm358, %v1188, 0
    %v1212 = vsel %vm358, %v1190, 0
    %v1215 = vsel %vm358, %v1192, 0
    %1217 = vmatprep.subr.bf16.mxu0 0
    %1218 = vmatpush1.bf16.xpose.msra.mxu0 %v1206
    %1219 = vmatprep.subr.bf16.mxu0 0
    %1220 = vmatpush1.bf16.xpose.msra.mxu0 %v1209
    %1221 = vmatprep.subr.bf16.mxu0 0
    %1222 = vmatpush1.bf16.xpose.msra.mxu0 %v1212
    %1223 = vmatprep.subr.bf16.mxu0 0
    %1224 = vmatpush1.bf16.xpose.msra.mxu0 %v1215
    %1225 = vmatprep.subr.bf16.mxu0 0
    %1226 = vmatpush1.bf16.xpose.msra.mxu0 0
    %1227 = vmatprep.subr.bf16.mxu0 0
    %1228 = vmatpush1.bf16.xpose.msra.mxu0 0
    %1229 = vmatprep.subr.bf16.mxu0 0
    %1230 = vmatpush1.bf16.xpose.msra.mxu0 0
    %1231 = vmatprep.subr.bf16.mxu0 0
    %1232 = vmatpush1.bf16.xpose.msra.mxu0 0
    %1233 = vmatprep.subr.bf16.mxu0 0
    %1234 = vmatpush1.bf16.xpose.msra.mxu0 0
    %1235 = vmatprep.subr.bf16.mxu0 0
    %1236 = vmatpush1.bf16.xpose.msra.mxu0 0
    %1237 = vmatprep.subr.bf16.mxu0 0
    %1238 = vmatpush1.bf16.xpose.msra.mxu0 0
    %1239 = vmatprep.subr.bf16.mxu0 0
    %1240 = vmatpush1.bf16.xpose.msra.mxu0 0
    %1241 = vmatprep.subr.bf16.mxu0 0
    %1242 = vmatpush1.bf16.xpose.msra.mxu0 0
    %1243 = vmatprep.subr.bf16.mxu0 0
    %1244 = vmatpush1.bf16.xpose.msra.mxu0 0
    %1245 = vmatprep.subr.bf16.mxu0 0
    %1246 = vmatpush1.bf16.xpose.msra.mxu0 0
    %1247 = vmatprep.subr.bf16.mxu0 0
    %1248 = vmatpush1.bf16.xpose.msra.mxu0 0
    %1249 = vmatprep.mubr.bf16.mxu0 0
    %1250 = vmatmul.mubr.bf16.gmra.mrb[0].mxu0 %v1194
    %v1251 = vpop.f32.mrb[0].mxu0
    %v1252 = vadd.f32 0.0, %v1251
    %v1253 = vpop.f32.mrb[0].mxu0
    %v1254 = vpop.f32.mrb[0].mxu0
    %v1255 = vadd.f32 0.0, %v1254
    %v1256 = vpop.f32.mrb[0].mxu0
    %1257 = vmatprep.mubr.bf16.mxu0 0
    %1258 = vmatmul.mubr.bf16.gmra.mrb[0].mxu0 %v1197
    %v1259 = vpop.f32.mrb[0].mxu0
    %v1260 = vadd.f32 0.0, %v1259
    %v1261 = vpop.f32.mrb[0].mxu0
    %v1262 = vpop.f32.mrb[0].mxu0
    %v1263 = vadd.f32 0.0, %v1262
    %v1264 = vpop.f32.mrb[0].mxu0
    %1265 = vmatprep.mubr.bf16.mxu0 0
    %1266 = vmatmul.mubr.bf16.gmra.mrb[0].mxu0 %v1200
    %v1267 = vpop.f32.mrb[0].mxu0
    %v1268 = vadd.f32 0.0, %v1267
    %v1269 = vpop.f32.mrb[0].mxu0
    %v1270 = vpop.f32.mrb[0].mxu0
    %v1271 = vadd.f32 0.0, %v1270
    %v1272 = vpop.f32.mrb[0].mxu0
    %1273 = vmatprep.mubr.bf16.mxu0 0
    %1274 = vmatmul.mubr.bf16.gmra.mrb[0].mxu0 %v1203
    %v1275 = vpop.f32.mrb[0].mxu0
    %v1276 = vadd.f32 0.0, %v1275
    %v1277 = vpop.f32.mrb[0].mxu0
    %v1278 = vpop.f32.mrb[0].mxu0
    %v1279 = vadd.f32 0.0, %v1278
    %v1280 = vpop.f32.mrb[0].mxu0
    %1281 = vdwg.mxu0
    %v1282 = vmul.f32 %v1252, 0.25
    %v1283 = vmul.f32 %v1255, 0.25
    %v1284 = vmul.f32 %v1260, 0.25
    %v1285 = vmul.f32 %v1263, 0.25
    %v1286 = vmul.f32 %v1268, 0.25
    %v1287 = vmul.f32 %v1271, 0.25
    %v1288 = vmul.f32 %v1276, 0.25
    %v1289 = vmul.f32 %v1279, 0.25
    %v1290 = vadd.f32 %v1282, %v181
    %v1291 = vadd.f32 %v1283, %v182
    %v1292 = vadd.f32 %v1284, %v183
    %v1293 = vadd.f32 %v1285, %v184
    %v1294 = vadd.f32 %v1286, %v185
    %v1295 = vadd.f32 %v1287, %v186
    %v1296 = vadd.f32 %v1288, %v187
    %v1297 = vadd.f32 %v1289, %v188
    %v1298 = vsel %vm251, %v1290, -inf
    %1299 = vmax.xlane.f32.xlu0 %v1298
    %v1300 = vpop.xlane.xlu0 %1299
    %v1301 = vsel %vm251, %v1291, -inf
    %1302 = vmax.xlane.f32.xlu0 %v1301
    %v1303 = vpop.xlane.xlu0 %1302
    %v1304 = vsel %vm251, %v1292, -inf
    %1305 = vmax.xlane.f32.xlu0 %v1304
    %v1306 = vpop.xlane.xlu0 %1305
    %v1307 = vsel %vm251, %v1293, -inf
    %1308 = vmax.xlane.f32.xlu0 %v1307
    %v1309 = vpop.xlane.xlu0 %1308
    %v1310 = vsel %vm251, %v1294, -inf
    %1311 = vmax.xlane.f32.xlu0 %v1310
    %v1312 = vpop.xlane.xlu0 %1311
    %v1313 = vsel %vm251, %v1295, -inf
    %1314 = vmax.xlane.f32.xlu0 %v1313
    %v1315 = vpop.xlane.xlu0 %1314
    %v1316 = vsel %vm251, %v1296, -inf
    %1317 = vmax.xlane.f32.xlu0 %v1316
    %v1318 = vpop.xlane.xlu0 %1317
    %v1319 = vsel %vm251, %v1297, -inf
    %1320 = vmax.xlane.f32.xlu0 %v1319
    %v1321 = vpop.xlane.xlu0 %1320
    %v1322 = vsub.f32 %v1290, %v1300
    %v1323 = vsub.f32 %v1291, %v1303
    %v1324 = vsub.f32 %v1292, %v1306
    %v1325 = vsub.f32 %v1293, %v1309
    %v1326 = vsub.f32 %v1294, %v1312
    %v1327 = vsub.f32 %v1295, %v1315
    %v1328 = vsub.f32 %v1296, %v1318
    %v1329 = vsub.f32 %v1297, %v1321
    %v1330 = vmul.f32 %v1322, 1.442695
    %v1331 = vpow.pop %v1330
    %v1332 = vmul.f32 %v1323, 1.442695
    %v1333 = vpow.pop %v1332
    %v1334 = vmul.f32 %v1324, 1.442695
    %v1335 = vpow.pop %v1334
    %v1336 = vmul.f32 %v1325, 1.442695
    %v1337 = vpow.pop %v1336
    %v1338 = vmul.f32 %v1326, 1.442695
    %v1339 = vpow.pop %v1338
    %v1340 = vmul.f32 %v1327, 1.442695
    %v1341 = vpow.pop %v1340
    %v1342 = vmul.f32 %v1328, 1.442695
    %v1343 = vpow.pop %v1342
    %v1344 = vmul.f32 %v1329, 1.442695
    %v1345 = vpow.pop %v1344
    %v1346 = vsel %vm251, %v1331, 0.0
    %1347 = vadd.xlane.f32.xlu0 %v1346
    %v1348 = vpop.xlane.xlu0 %1347
    %v1349 = vsel %vm251, %v1333, 0.0
    %1350 = vadd.xlane.f32.xlu0 %v1349
    %v1351 = vpop.xlane.xlu0 %1350
    %v1352 = vsel %vm251, %v1335, 0.0
    %1353 = vadd.xlane.f32.xlu0 %v1352
    %v1354 = vpop.xlane.xlu0 %1353
    %v1355 = vsel %vm251, %v1337, 0.0
    %1356 = vadd.xlane.f32.xlu0 %v1355
    %v1357 = vpop.xlane.xlu0 %1356
    %v1358 = vsel %vm251, %v1339, 0.0
    %1359 = vadd.xlane.f32.xlu0 %v1358
    %v1360 = vpop.xlane.xlu0 %1359
    %v1361 = vsel %vm251, %v1341, 0.0
    %1362 = vadd.xlane.f32.xlu0 %v1361
    %v1363 = vpop.xlane.xlu0 %1362
    %v1364 = vsel %vm251, %v1343, 0.0
    %1365 = vadd.xlane.f32.xlu0 %v1364
    %v1366 = vpop.xlane.xlu0 %1365
    %v1367 = vsel %vm251, %v1345, 0.0
    %1368 = vadd.xlane.f32.xlu0 %v1367
    %v1369 = vpop.xlane.xlu0 %1368
    %v1370 = vrcp.pop %v1348
    %v1371 = vmul.f32 %v1331, %v1370
    %v1372 = vrcp.pop %v1351
    %v1373 = vmul.f32 %v1333, %v1372
    %v1374 = vrcp.pop %v1354
    %v1375 = vmul.f32 %v1335, %v1374
    %v1376 = vrcp.pop %v1357
    %v1377 = vmul.f32 %v1337, %v1376
    %v1378 = vrcp.pop %v1360
    %v1379 = vmul.f32 %v1339, %v1378
    %v1380 = vrcp.pop %v1363
    %v1381 = vmul.f32 %v1341, %v1380
    %v1382 = vrcp.pop %v1366
    %v1383 = vmul.f32 %v1343, %v1382
    %v1384 = vrcp.pop %v1369
    %v1385 = vmul.f32 %v1345, %v1384
    %v1386 = vpack.c.bf16 %v1373, %v1371
    %v1387 = vpack.c.bf16 %v1377, %v1375
    %v1388 = vpack.c.bf16 %v1381, %v1379
    %v1389 = vpack.c.bf16 %v1385, %v1383
    %v1391 = vsel %vm251, %v1386, 0
    %v1394 = vsel %vm251, %v1387, 0
    %v1397 = vsel %vm251, %v1388, 0
    %v1400 = vsel %vm251, %v1389, 0
    %1402 = vmatprep.subr.bf16.mxu0 0
    %1403 = vmatpush1.bf16.msra.mxu0 %v1177
    %1404 = vmatprep.subr.bf16.mxu0 0
    %1405 = vmatpush1.bf16.msra.mxu0 %v1178
    %1406 = vmatprep.subr.bf16.mxu0 0
    %1407 = vmatpush1.bf16.msra.mxu0 %v1179
    %1408 = vmatprep.subr.bf16.mxu0 0
    %1409 = vmatpush1.bf16.msra.mxu0 %v1180
    %1410 = vmatprep.subr.bf16.mxu0 0
    %1411 = vmatpush1.bf16.msra.mxu0 0
    %1412 = vmatprep.subr.bf16.mxu0 0
    %1413 = vmatpush1.bf16.msra.mxu0 0
    %1414 = vmatprep.subr.bf16.mxu0 0
    %1415 = vmatpush1.bf16.msra.mxu0 0
    %1416 = vmatprep.subr.bf16.mxu0 0
    %1417 = vmatpush1.bf16.msra.mxu0 0
    %1418 = vmatprep.subr.bf16.mxu0 0
    %1419 = vmatpush1.bf16.msra.mxu0 0
    %1420 = vmatprep.subr.bf16.mxu0 0
    %1421 = vmatpush1.bf16.msra.mxu0 0
    %1422 = vmatprep.subr.bf16.mxu0 0
    %1423 = vmatpush1.bf16.msra.mxu0 0
    %1424 = vmatprep.subr.bf16.mxu0 0
    %1425 = vmatpush1.bf16.msra.mxu0 0
    %1426 = vmatprep.subr.bf16.mxu0 0
    %1427 = vmatpush1.bf16.msra.mxu0 0
    %1428 = vmatprep.subr.bf16.mxu0 0
    %1429 = vmatpush1.bf16.msra.mxu0 0
    %1430 = vmatprep.subr.bf16.mxu0 0
    %1431 = vmatpush1.bf16.msra.mxu0 0
    %1432 = vmatprep.subr.bf16.mxu0 0
    %1433 = vmatpush1.bf16.msra.mxu0 0
    %1434 = vmatprep.mubr.bf16.mxu0 0
    %1435 = vmatmul.mubr.bf16.gmra.mrb[0].mxu0 %v1391
    %v1436 = vpop.f32.mrb[0].mxu0
    %v1437 = vadd.f32 0.0, %v1436
    %v1438 = vpop.f32.mrb[0].mxu0
    %v1439 = vpop.f32.mrb[0].mxu0
    %v1440 = vadd.f32 0.0, %v1439
    %v1441 = vpop.f32.mrb[0].mxu0
    %1442 = vmatprep.mubr.bf16.mxu0 0
    %1443 = vmatmul.mubr.bf16.gmra.mrb[0].mxu0 %v1394
    %v1444 = vpop.f32.mrb[0].mxu0
    %v1445 = vadd.f32 0.0, %v1444
    %v1446 = vpop.f32.mrb[0].mxu0
    %v1447 = vpop.f32.mrb[0].mxu0
    %v1448 = vadd.f32 0.0, %v1447
    %v1449 = vpop.f32.mrb[0].mxu0
    %1450 = vmatprep.mubr.bf16.mxu0 0
    %1451 = vmatmul.mubr.bf16.gmra.mrb[0].mxu0 %v1397
    %v1452 = vpop.f32.mrb[0].mxu0
    %v1453 = vadd.f32 0.0, %v1452
    %v1454 = vpop.f32.mrb[0].mxu0
    %v1455 = vpop.f32.mrb[0].mxu0
    %v1456 = vadd.f32 0.0, %v1455
    %v1457 = vpop.f32.mrb[0].mxu0
    %1458 = vmatprep.mubr.bf16.mxu0 0
    %1459 = vmatmul.mubr.bf16.gmra.mrb[0].mxu0 %v1400
    %v1460 = vpop.f32.mrb[0].mxu0
    %v1461 = vadd.f32 0.0, %v1460
    %v1462 = vpop.f32.mrb[0].mxu0
    %v1463 = vpop.f32.mrb[0].mxu0
    %v1464 = vadd.f32 0.0, %v1463
    %v1465 = vpop.f32.mrb[0].mxu0
    %1466 = vdwg.mxu0
    %1469 = vrot.lane.b32.xlu0 %v1445, 16
    %v1470 = vpop.permute.xlu0 %1469
    %1471 = vrot.lane.b32.xlu0 %v1448, 16
    %v1472 = vpop.permute.xlu0 %1471
    %1477 = vrot.lane.b32.xlu0 %v1453, 32
    %v1478 = vpop.permute.xlu0 %1477
    %1479 = vrot.lane.b32.xlu0 %v1456, 32
    %v1480 = vpop.permute.xlu0 %1479
    %1485 = vrot.lane.b32.xlu0 %v1461, 48
    %v1486 = vpop.permute.xlu0 %1485
    %1487 = vrot.lane.b32.xlu0 %v1464, 48
    %v1488 = vpop.permute.xlu0 %1487
    %v1491 = vsel %vm358, %v1437, %v1470
    %v1492 = vsel %vm358, %v1440, %v1472
    %v1493 = vsel %vm131, %v1491, %v1478
    %v1494 = vsel %vm131, %v1492, %v1480
    %v1495 = vsel %vm661, %v1493, %v1486
    %v1496 = vsel %vm661, %v1494, %v1488
    %v1497 = vpack.c.bf16 %v1496, %v1495
    %s1498 = scalar_lea.vmem %s6, 32
    %v1499 = vld [vmem:[%s1498] sm:$0xf]
    %v1500 = vld [vmem:[%s1498 + $0x4] sm:$0xf]
    %v1501 = vld [vmem:[%s1498 + $0x8] sm:$0xf]
    %v1502 = vld [vmem:[%s1498 + $0xc] sm:$0xf]
    %v1503 = vld [vmem:[%s1498 + $0x10] sm:$0xf]
    %v1504 = vld [vmem:[%s1498 + $0x14] sm:$0xf]
    %v1505 = vld [vmem:[%s1498 + $0x18] sm:$0xf]
    %v1506 = vld [vmem:[%s1498 + $0x1c] sm:$0xf]
    %v1507 = vlaneseq
    %v1508 = vshrl.u32 %v1507, 7
    %v1509 = vsub.s32 0, %v1508
    %v1510 = vrot.slane %v1023, %v1509
    %v1519 = vunpack.c.l.b16 %v1499
    %v1520 = vunpack.c.l.b16 %v1500
    %v1521 = vunpack.c.l.b16 %v1501
    %v1522 = vunpack.c.l.b16 %v1502
    %v1523 = vunpack.c.l.b16 %v1503
    %v1524 = vunpack.c.l.b16 %v1504
    %v1525 = vunpack.c.l.b16 %v1505
    %v1526 = vunpack.c.l.b16 %v1506
    %v1527 = vpack.c.b16 %v1520, %v1519
    %v1528 = vpack.c.b16 %v1522, %v1521
    %v1529 = vpack.c.b16 %v1524, %v1523
    %v1530 = vpack.c.b16 %v1526, %v1525
    %v1536 = vsel %vm251, %v1497, 0
    %1538 = vmatprep.subr.bf16.mxu0 0
    %1539 = vmatpush1.bf16.msra.mxu0 %v1527
    %1540 = vmatprep.subr.bf16.mxu0 0
    %1541 = vmatpush1.bf16.msra.mxu0 %v1528
    %1542 = vmatprep.subr.bf16.mxu0 0
    %1543 = vmatpush1.bf16.msra.mxu0 %v1529
    %1544 = vmatprep.subr.bf16.mxu0 0
    %1545 = vmatpush1.bf16.msra.mxu0 %v1530
    %1546 = vmatprep.subr.bf16.mxu0 0
    %1547 = vmatpush1.bf16.msra.mxu0 0
    %1548 = vmatprep.subr.bf16.mxu0 0
    %1549 = vmatpush1.bf16.msra.mxu0 0
    %1550 = vmatprep.subr.bf16.mxu0 0
    %1551 = vmatpush1.bf16.msra.mxu0 0
    %1552 = vmatprep.subr.bf16.mxu0 0
    %1553 = vmatpush1.bf16.msra.mxu0 0
    %1554 = vmatprep.subr.bf16.mxu0 0
    %1555 = vmatpush1.bf16.msra.mxu0 0
    %1556 = vmatprep.subr.bf16.mxu0 0
    %1557 = vmatpush1.bf16.msra.mxu0 0
    %1558 = vmatprep.subr.bf16.mxu0 0
    %1559 = vmatpush1.bf16.msra.mxu0 0
    %1560 = vmatprep.subr.bf16.mxu0 0
    %1561 = vmatpush1.bf16.msra.mxu0 0
    %1562 = vmatprep.subr.bf16.mxu0 0
    %1563 = vmatpush1.bf16.msra.mxu0 0
    %1564 = vmatprep.subr.bf16.mxu0 0
    %1565 = vmatpush1.bf16.msra.mxu0 0
    %1566 = vmatprep.subr.bf16.mxu0 0
    %1567 = vmatpush1.bf16.msra.mxu0 0
    %1568 = vmatprep.subr.bf16.mxu0 0
    %1569 = vmatpush1.bf16.msra.mxu0 0
    %1570 = vmatprep.mubr.bf16.mxu0 0
    %1571 = vmatmul.mubr.bf16.gmra.mrb[0].mxu0 %v1536
    %v1572 = vpop.f32.mrb[0].mxu0
    %v1573 = vadd.f32 %v1510, %v1572
    %v1574 = vpop.f32.mrb[0].mxu0
    %v1575 = vpop.f32.mrb[0].mxu0
    %v1576 = vadd.f32 %v1510, %v1575
    %v1577 = vpop.f32.mrb[0].mxu0
    %1578 = vdwg.mxu0
    %v1579 = vadd.f32 %v1020, %v1573
    %v1580 = vadd.f32 %v1021, %v1576
    %v1581 = vsel %vm251, %v1579, 0.0
    %1582 = vadd.xlane.f32.xlu0 %v1581
    %v1583 = vpop.xlane.xlu0 %1582
    %v1584 = vsel %vm251, %v1580, 0.0
    %1585 = vadd.xlane.f32.xlu0 %v1584
    %v1586 = vpop.xlane.xlu0 %1585
    %v1587 = vmul.f32 %v1583, %v753
    %v1588 = vmul.f32 %v1586, %v753
    %v1589 = vsub.f32 %v1579, %v1587
    %v1590 = vsub.f32 %v1580, %v1588
    %v1591 = vmul.f32 %v1589, %v1589
    %v1592 = vmul.f32 %v1590, %v1590
    %v1593 = vsel %vm251, %v1591, 0.0
    %1594 = vadd.xlane.f32.xlu0 %v1593
    %v1595 = vpop.xlane.xlu0 %1594
    %v1596 = vsel %vm251, %v1592, 0.0
    %1597 = vadd.xlane.f32.xlu0 %v1596
    %v1598 = vpop.xlane.xlu0 %1597
    %v1599 = vmul.f32 %v1595, %v753
    %v1600 = vmul.f32 %v1598, %v753
    %v1601 = vadd.f32 %v1599, 1e-05
    %v1602 = vadd.f32 %v1600, 1e-05
    %v1603 = vrsqrt.pop %v1601
    %v1604 = vrsqrt.pop %v1602
    %v1605 = vmul.f32 %v1589, %v1603
    %v1606 = vmul.f32 %v1590, %v1604
    %v1607 = vlaneseq
    %v1608 = vshrl.u32 %v1607, 7
    %v1609 = vsub.s32 2, %v1608
    %v1610 = vrot.slane %v1023, %v1609
    %v1611 = vmul.f32 %v1605, %v1610
    %v1612 = vmul.f32 %v1606, %v1610
    %v1613 = vlaneseq
    %v1614 = vshrl.u32 %v1613, 7
    %v1615 = vsub.s32 3, %v1614
    %v1616 = vrot.slane %v1023, %v1615
    %v1617 = vadd.f32 %v1611, %v1616
    %v1618 = vadd.f32 %v1612, %v1616
    %v1619 = vpack.c.bf16 %v1618, %v1617
    %s1620 = scalar_lea.vmem %s7, 32
    %v1621 = vld [vmem:[%s1620] sm:$0xf]
    %v1622 = vld [vmem:[%s1620 + $0x4] sm:$0xf]
    %v1623 = vld [vmem:[%s1620 + $0x8] sm:$0xf]
    %v1624 = vld [vmem:[%s1620 + $0xc] sm:$0xf]
    %v1625 = vld [vmem:[%s1620 + $0x10] sm:$0xf]
    %v1626 = vld [vmem:[%s1620 + $0x14] sm:$0xf]
    %v1627 = vld [vmem:[%s1620 + $0x18] sm:$0xf]
    %v1628 = vld [vmem:[%s1620 + $0x1c] sm:$0xf]
    %s1629 = scalar_lea.vmem [#allocation4], 1
    %v1630 = vld [vmem:[%s1629] sm:$0x1]
    %v1632 = vlaneseq
    %v1633 = vshrl.u32 %v1632, 7
    %v1634 = vsub.s32 0, %v1633
    %v1635 = vrot.slane %v1630, %v1634
    %v1645 = vunpack.c.l.b16 %v1621
    %v1646 = vunpack.c.l.b16 %v1622
    %v1647 = vunpack.c.l.b16 %v1623
    %v1648 = vunpack.c.l.b16 %v1624
    %v1649 = vunpack.c.l.b16 %v1625
    %v1650 = vunpack.c.l.b16 %v1626
    %v1651 = vunpack.c.l.b16 %v1627
    %v1652 = vunpack.c.l.b16 %v1628
    %v1653 = vpack.c.b16 %v1646, %v1645
    %v1654 = vpack.c.b16 %v1648, %v1647
    %v1655 = vpack.c.b16 %v1650, %v1649
    %v1656 = vpack.c.b16 %v1652, %v1651
    %v1662 = vsel %vm251, %v1619, 0
    %1664 = vmatprep.subr.bf16.mxu0 0
    %1665 = vmatpush1.bf16.msra.mxu0 %v1653
    %1666 = vmatprep.subr.bf16.mxu0 0
    %1667 = vmatpush1.bf16.msra.mxu0 %v1654
    %1668 = vmatprep.subr.bf16.mxu0 0
    %1669 = vmatpush1.bf16.msra.mxu0 %v1655
    %1670 = vmatprep.subr.bf16.mxu0 0
    %1671 = vmatpush1.bf16.msra.mxu0 %v1656
    %1672 = vmatprep.subr.bf16.mxu0 0
    %1673 = vmatpush1.bf16.msra.mxu0 0
    %1674 = vmatprep.subr.bf16.mxu0 0
    %1675 = vmatpush1.bf16.msra.mxu0 0
    %1676 = vmatprep.subr.bf16.mxu0 0
    %1677 = vmatpush1.bf16.msra.mxu0 0
    %1678 = vmatprep.subr.bf16.mxu0 0
    %1679 = vmatpush1.bf16.msra.mxu0 0
    %1680 = vmatprep.subr.bf16.mxu0 0
    %1681 = vmatpush1.bf16.msra.mxu0 0
    %1682 = vmatprep.subr.bf16.mxu0 0
    %1683 = vmatpush1.bf16.msra.mxu0 0
    %1684 = vmatprep.subr.bf16.mxu0 0
    %1685 = vmatpush1.bf16.msra.mxu0 0
    %1686 = vmatprep.subr.bf16.mxu0 0
    %1687 = vmatpush1.bf16.msra.mxu0 0
    %1688 = vmatprep.subr.bf16.mxu0 0
    %1689 = vmatpush1.bf16.msra.mxu0 0
    %1690 = vmatprep.subr.bf16.mxu0 0
    %1691 = vmatpush1.bf16.msra.mxu0 0
    %1692 = vmatprep.subr.bf16.mxu0 0
    %1693 = vmatpush1.bf16.msra.mxu0 0
    %1694 = vmatprep.subr.bf16.mxu0 0
    %1695 = vmatpush1.bf16.msra.mxu0 0
    %1696 = vmatprep.mubr.bf16.mxu0 0
    %1697 = vmatmul.mubr.bf16.gmra.mrb[0].mxu0 %v1662
    %v1698 = vpop.f32.mrb[0].mxu0
    %v1699 = vadd.f32 %v1635, %v1698
    %v1700 = vpop.f32.mrb[0].mxu0
    %v1701 = vpop.f32.mrb[0].mxu0
    %v1702 = vadd.f32 %v1635, %v1701
    %v1703 = vpop.f32.mrb[0].mxu0
    %1704 = vdwg.mxu0
    %v1705 = vmax.f32 %v1699, 0.0
    %v1706 = vmax.f32 %v1702, 0.0
    %v1707 = vpack.c.bf16 %v1706, %v1705
    %s1708 = scalar_lea.vmem %s9, 64
    %v1709 = vld [vmem:[%s1708] sm:$0xf]
    %v1710 = vld [vmem:[%s1708 + $0x4] sm:$0xf]
    %v1711 = vld [vmem:[%s1708 + $0x8] sm:$0xf]
    %v1712 = vld [vmem:[%s1708 + $0xc] sm:$0xf]
    %v1713 = vld [vmem:[%s1708 + $0x10] sm:$0xf]
    %v1714 = vld [vmem:[%s1708 + $0x14] sm:$0xf]
    %v1715 = vld [vmem:[%s1708 + $0x18] sm:$0xf]
    %v1716 = vld [vmem:[%s1708 + $0x1c] sm:$0xf]
    %v1717 = vld [vmem:[%s1708 + $0x20] sm:$0xf]
    %v1718 = vld [vmem:[%s1708 + $0x24] sm:$0xf]
    %v1719 = vld [vmem:[%s1708 + $0x28] sm:$0xf]
    %v1720 = vld [vmem:[%s1708 + $0x2c] sm:$0xf]
    %v1721 = vld [vmem:[%s1708 + $0x30] sm:$0xf]
    %v1722 = vld [vmem:[%s1708 + $0x34] sm:$0xf]
    %v1723 = vld [vmem:[%s1708 + $0x38] sm:$0xf]
    %v1724 = vld [vmem:[%s1708 + $0x3c] sm:$0xf]
    %v1725 = vlaneseq
    %v1726 = vshrl.u32 %v1725, 7
    %v1727 = vsub.s32 1, %v1726
    %v1728 = vrot.slane %v1023, %v1727
    %v1745 = vunpack.c.l.b16 %v1709
    %v1746 = vunpack.c.l.b16 %v1710
    %v1747 = vunpack.c.l.b16 %v1711
    %v1748 = vunpack.c.l.b16 %v1712
    %v1749 = vunpack.c.l.b16 %v1713
    %v1750 = vunpack.c.l.b16 %v1714
    %v1751 = vunpack.c.l.b16 %v1715
    %v1752 = vunpack.c.l.b16 %v1716
    %v1753 = vunpack.c.l.b16 %v1717
    %v1754 = vunpack.c.l.b16 %v1718
    %v1755 = vunpack.c.l.b16 %v1719
    %v1756 = vunpack.c.l.b16 %v1720
    %v1757 = vunpack.c.l.b16 %v1721
    %v1758 = vunpack.c.l.b16 %v1722
    %v1759 = vunpack.c.l.b16 %v1723
    %v1760 = vunpack.c.l.b16 %v1724
    %v1761 = vpack.c.b16 %v1746, %v1745
    %v1762 = vpack.c.b16 %v1748, %v1747
    %v1763 = vpack.c.b16 %v1750, %v1749
    %v1764 = vpack.c.b16 %v1752, %v1751
    %v1765 = vpack.c.b16 %v1754, %v1753
    %v1766 = vpack.c.b16 %v1756, %v1755
    %v1767 = vpack.c.b16 %v1758, %v1757
    %v1768 = vpack.c.b16 %v1760, %v1759
    %1777 = vmatprep.subr.bf16.mxu0 0
    %1778 = vmatpush1.bf16.msra.mxu0 %v1761
    %1779 = vmatprep.subr.bf16.mxu0 0
    %1780 = vmatpush1.bf16.msra.mxu0 %v1762
    %1781 = vmatprep.subr.bf16.mxu0 0
    %1782 = vmatpush1.bf16.msra.mxu0 %v1763
    %1783 = vmatprep.subr.bf16.mxu0 0
    %1784 = vmatpush1.bf16.msra.mxu0 %v1764
    %1785 = vmatprep.subr.bf16.mxu0 0
    %1786 = vmatpush1.bf16.msra.mxu0 %v1765
    %1787 = vmatprep.subr.bf16.mxu0 0
    %1788 = vmatpush1.bf16.msra.mxu0 %v1766
    %1789 = vmatprep.subr.bf16.mxu0 0
    %1790 = vmatpush1.bf16.msra.mxu0 %v1767
    %1791 = vmatprep.subr.bf16.mxu0 0
    %1792 = vmatpush1.bf16.msra.mxu0 %v1768
    %1793 = vmatprep.subr.bf16.mxu0 0
    %1794 = vmatpush1.bf16.msra.mxu0 0
    %1795 = vmatprep.subr.bf16.mxu0 0
    %1796 = vmatpush1.bf16.msra.mxu0 0
    %1797 = vmatprep.subr.bf16.mxu0 0
    %1798 = vmatpush1.bf16.msra.mxu0 0
    %1799 = vmatprep.subr.bf16.mxu0 0
    %1800 = vmatpush1.bf16.msra.mxu0 0
    %1801 = vmatprep.subr.bf16.mxu0 0
    %1802 = vmatpush1.bf16.msra.mxu0 0
    %1803 = vmatprep.subr.bf16.mxu0 0
    %1804 = vmatpush1.bf16.msra.mxu0 0
    %1805 = vmatprep.subr.bf16.mxu0 0
    %1806 = vmatpush1.bf16.msra.mxu0 0
    %1807 = vmatprep.subr.bf16.mxu0 0
    %1808 = vmatpush1.bf16.msra.mxu0 0
    %1809 = vmatprep.mubr.bf16.mxu0 0
    %1810 = vmatmul.mubr.bf16.gmra.mrb[0].mxu0 %v1707
    %v1811 = vpop.f32.mrb[0].mxu0
    %v1812 = vadd.f32 %v1728, %v1811
    %v1813 = vpop.f32.mrb[0].mxu0
    %v1814 = vpop.f32.mrb[0].mxu0
    %v1815 = vadd.f32 %v1728, %v1814
    %v1816 = vpop.f32.mrb[0].mxu0
    %1817 = vdwg.mxu0
    %v1818 = vadd.f32 %v1617, %v1812
    %v1819 = vadd.f32 %v1618, %v1815
    %v1820 = vsel %vm251, %v1818, 0.0
    %1821 = vadd.xlane.f32.xlu0 %v1820
    %v1822 = vpop.xlane.xlu0 %1821
    %v1823 = vsel %vm251, %v1819, 0.0
    %1824 = vadd.xlane.f32.xlu0 %v1823
    %v1825 = vpop.xlane.xlu0 %1824
    %v1826 = vmul.f32 %v1822, %v753
    %v1827 = vmul.f32 %v1825, %v753
    %v1828 = vsub.f32 %v1818, %v1826
    %v1829 = vsub.f32 %v1819, %v1827
    %v1830 = vmul.f32 %v1828, %v1828
    %v1831 = vmul.f32 %v1829, %v1829
    %v1832 = vsel %vm251, %v1830, 0.0
    %1833 = vadd.xlane.f32.xlu0 %v1832
    %v1834 = vpop.xlane.xlu0 %1833
    %v1835 = vsel %vm251, %v1831, 0.0
    %1836 = vadd.xlane.f32.xlu0 %v1835
    %v1837 = vpop.xlane.xlu0 %1836
    %v1838 = vmul.f32 %v1834, %v753
    %v1839 = vmul.f32 %v1837, %v753
    %v1840 = vadd.f32 %v1838, 1e-05
    %v1841 = vadd.f32 %v1839, 1e-05
    %v1842 = vrsqrt.pop %v1840
    %v1843 = vrsqrt.pop %v1841
    %v1844 = vmul.f32 %v1828, %v1842
    %v1845 = vmul.f32 %v1829, %v1843
    %v1846 = vlaneseq
    %v1847 = vshrl.u32 %v1846, 7
    %v1848 = vsub.s32 4, %v1847
    %v1849 = vrot.slane %v1023, %v1848
    %v1850 = vmul.f32 %v1844, %v1849
    %v1851 = vmul.f32 %v1845, %v1849
    %v1852 = vlaneseq
    %v1853 = vshrl.u32 %v1852, 7
    %v1854 = vsub.s32 5, %v1853
    %v1855 = vrot.slane %v1023, %v1854
    %v1856 = vadd.f32 %v1850, %v1855
    %v1857 = vadd.f32 %v1851, %v1855
    %s1858 = scalar_lea.vmem [#allocation6], 16
    %v1859 = vld [vmem:[%s1858] sm:$0xff]
    %v1860 = vpack.c.bf16 %v1857, %v1856
    %s1861 = scalar_lea.vmem %s4, 128
    %v1862 = vld [vmem:[%s1861] sm:$0xff]
    %v1863 = vld [vmem:[%s1861 + $0x8] sm:$0xff]
    %v1864 = vld [vmem:[%s1861 + $0x10] sm:$0xff]
    %v1865 = vld [vmem:[%s1861 + $0x18] sm:$0xff]
    %v1866 = vld [vmem:[%s1861 + $0x20] sm:$0xff]
    %v1867 = vld [vmem:[%s1861 + $0x28] sm:$0xff]
    %v1868 = vld [vmem:[%s1861 + $0x30] sm:$0xff]
    %v1869 = vld [vmem:[%s1861 + $0x38] sm:$0xff]
    %s1870 = scalar_lea.vmem %s5, 4
    %v1871 = vld [vmem:[%s1870] sm:$0x3]
    %v1873 = vlaneseq
    %v1874 = vshrl.u32 %v1873, 7
    %v1875 = vsub.s32 0, %v1874
    %v1876 = vrot.slane %v1871, %v1875
    %v1877 = vlaneseq
    %v1878 = vshrl.u32 %v1877, 7
    %v1879 = vsub.s32 1, %v1878
    %v1880 = vrot.slane %v1871, %v1879
    %v1891 = vunpack.c.l.b16 %v1862
    %v1892 = vunpack.c.h.b16 %v1862
    %v1893 = vunpack.c.l.b16 %v1863
    %v1894 = vunpack.c.h.b16 %v1863
    %v1895 = vunpack.c.l.b16 %v1864
    %v1896 = vunpack.c.h.b16 %v1864
    %v1897 = vunpack.c.l.b16 %v1865
    %v1898 = vunpack.c.h.b16 %v1865
    %v1899 = vunpack.c.l.b16 %v1866
    %v1900 = vunpack.c.h.b16 %v1866
    %v1901 = vunpack.c.l.b16 %v1867
    %v1902 = vunpack.c.h.b16 %v1867
    %v1903 = vunpack.c.l.b16 %v1868
    %v1904 = vunpack.c.h.b16 %v1868
    %v1905 = vunpack.c.l.b16 %v1869
    %v1906 = vunpack.c.h.b16 %v1869
    %v1907 = vpack.c.b16 %v1893, %v1891
    %v1908 = vpack.c.b16 %v1894, %v1892
    %v1909 = vpack.c.b16 %v1897, %v1895
    %v1910 = vpack.c.b16 %v1898, %v1896
    %v1911 = vpack.c.b16 %v1901, %v1899
    %v1912 = vpack.c.b16 %v1902, %v1900
    %v1913 = vpack.c.b16 %v1905, %v1903
    %v1914 = vpack.c.b16 %v1906, %v1904
    %v1924 = vsel %vm251, %v1860, 0
    %1926 = vmatprep.subr.bf16.mxu0 %v1908
    %1927 = vmatpush1.bf16.msra.mxu0 %v1907
    %1928 = vmatprep.subr.bf16.mxu0 %v1910
    %1929 = vmatpush1.bf16.msra.mxu0 %v1909
    %1930 = vmatprep.subr.bf16.mxu0 %v1912
    %1931 = vmatpush1.bf16.msra.mxu0 %v1911
    %1932 = vmatprep.subr.bf16.mxu0 %v1914
    %1933 = vmatpush1.bf16.msra.mxu0 %v1913
    %1934 = vmatprep.subr.bf16.mxu0 0
    %1935 = vmatpush1.bf16.msra.mxu0 0
    %1936 = vmatprep.subr.bf16.mxu0 0
    %1937 = vmatpush1.bf16.msra.mxu0 0
    %1938 = vmatprep.subr.bf16.mxu0 0
    %1939 = vmatpush1.bf16.msra.mxu0 0
    %1940 = vmatprep.subr.bf16.mxu0 0
    %1941 = vmatpush1.bf16.msra.mxu0 0
    %1942 = vmatprep.subr.bf16.mxu0 0
    %1943 = vmatpush1.bf16.msra.mxu0 0
    %1944 = vmatprep.subr.bf16.mxu0 0
    %1945 = vmatpush1.bf16.msra.mxu0 0
    %1946 = vmatprep.subr.bf16.mxu0 0
    %1947 = vmatpush1.bf16.msra.mxu0 0
    %1948 = vmatprep.subr.bf16.mxu0 0
    %1949 = vmatpush1.bf16.msra.mxu0 0
    %1950 = vmatprep.subr.bf16.mxu0 0
    %1951 = vmatpush1.bf16.msra.mxu0 0
    %1952 = vmatprep.subr.bf16.mxu0 0
    %1953 = vmatpush1.bf16.msra.mxu0 0
    %1954 = vmatprep.subr.bf16.mxu0 0
    %1955 = vmatpush1.bf16.msra.mxu0 0
    %1956 = vmatprep.subr.bf16.mxu0 0
    %1957 = vmatpush1.bf16.msra.mxu0 0
    %1958 = vmatprep.mubr.bf16.mxu0 0
    %1959 = vmatmul.mubr.bf16.gmra.mrb[0].mxu0 %v1924
    %v1960 = vpop.f32.mrb[0].mxu0
    %v1961 = vadd.f32 %v1876, %v1960
    %v1962 = vpop.f32.mrb[0].mxu0
    %v1963 = vadd.f32 %v1880, %v1962
    %v1964 = vpop.f32.mrb[0].mxu0
    %v1965 = vadd.f32 %v1876, %v1964
    %v1966 = vpop.f32.mrb[0].mxu0
    %v1967 = vadd.f32 %v1880, %v1966
    %1968 = vdwg.mxu0
    %1971 = vrot.lane.b32.xlu0 %v1961, 112
    %v1972 = vpop.permute.xlu0 %1971
    %1973 = vrot.lane.b32.xlu0 %v1965, 112
    %v1974 = vpop.permute.xlu0 %1973
    %1977 = vrot.lane.b32.xlu0 %v1961, 96
    %v1978 = vpop.permute.xlu0 %1977
    %1979 = vrot.lane.b32.xlu0 %v1965, 96
    %v1980 = vpop.permute.xlu0 %1979
    %1983 = vrot.lane.b32.xlu0 %v1961, 80
    %v1984 = vpop.permute.xlu0 %1983
    %1985 = vrot.lane.b32.xlu0 %v1965, 80
    %v1986 = vpop.permute.xlu0 %1985
    %v1989 = vpack.c.bf16 %v1965, %v1961
    %v1990 = vpack.c.bf16 %v1974, %v1972
    %v1991 = vpack.c.bf16 %v1980, %v1978
    %v1992 = vpack.c.bf16 %v1986, %v1984
    %1995 = vrot.lane.b32.xlu0 %v1963, 112
    %v1996 = vpop.permute.xlu0 %1995
    %1997 = vrot.lane.b32.xlu0 %v1967, 112
    %v1998 = vpop.permute.xlu0 %1997
    %2001 = vrot.lane.b32.xlu0 %v1963, 96
    %v2002 = vpop.permute.xlu0 %2001
    %2003 = vrot.lane.b32.xlu0 %v1967, 96
    %v2004 = vpop.permute.xlu0 %2003
    %2007 = vrot.lane.b32.xlu0 %v1963, 80
    %v2008 = vpop.permute.xlu0 %2007
    %2009 = vrot.lane.b32.xlu0 %v1967, 80
    %v2010 = vpop.permute.xlu0 %2009
    %v2013 = vpack.c.bf16 %v1967, %v1963
    %v2014 = vpack.c.bf16 %v1998, %v1996
    %v2015 = vpack.c.bf16 %v2004, %v2002
    %v2016 = vpack.c.bf16 %v2010, %v2008
    %2021 = vrot.lane.b32.xlu0 %v1989, 64
    %v2022 = vpop.permute.xlu0 %2021
    %2023 = vrot.lane.b32.xlu0 %v1990, 64
    %v2024 = vpop.permute.xlu0 %2023
    %2025 = vrot.lane.b32.xlu0 %v1991, 64
    %v2026 = vpop.permute.xlu0 %2025
    %2027 = vrot.lane.b32.xlu0 %v1992, 64
    %v2028 = vpop.permute.xlu0 %2027
    %v2030 = vsel %vm358, %v1989, 0
    %v2033 = vsel %vm358, %v1990, 0
    %v2036 = vsel %vm358, %v1991, 0
    %v2039 = vsel %vm358, %v1992, 0
    %v2042 = vsel %vm358, %v2022, 0
    %v2045 = vsel %vm358, %v2024, 0
    %v2048 = vsel %vm358, %v2026, 0
    %v2051 = vsel %vm358, %v2028, 0
    %2053 = vmatprep.subr.bf16.mxu0 0
    %2054 = vmatpush1.bf16.xpose.msra.mxu0 %v2042
    %2055 = vmatprep.subr.bf16.mxu0 0
    %2056 = vmatpush1.bf16.xpose.msra.mxu0 %v2045
    %2057 = vmatprep.subr.bf16.mxu0 0
    %2058 = vmatpush1.bf16.xpose.msra.mxu0 %v2048
    %2059 = vmatprep.subr.bf16.mxu0 0
    %2060 = vmatpush1.bf16.xpose.msra.mxu0 %v2051
    %2061 = vmatprep.subr.bf16.mxu0 0
    %2062 = vmatpush1.bf16.xpose.msra.mxu0 0
    %2063 = vmatprep.subr.bf16.mxu0 0
    %2064 = vmatpush1.bf16.xpose.msra.mxu0 0
    %2065 = vmatprep.subr.bf16.mxu0 0
    %2066 = vmatpush1.bf16.xpose.msra.mxu0 0
    %2067 = vmatprep.subr.bf16.mxu0 0
    %2068 = vmatpush1.bf16.xpose.msra.mxu0 0
    %2069 = vmatprep.subr.bf16.mxu0 0
    %2070 = vmatpush1.bf16.xpose.msra.mxu0 0
    %2071 = vmatprep.subr.bf16.mxu0 0
    %2072 = vmatpush1.bf16.xpose.msra.mxu0 0
    %2073 = vmatprep.subr.bf16.mxu0 0
    %2074 = vmatpush1.bf16.xpose.msra.mxu0 0
    %2075 = vmatprep.subr.bf16.mxu0 0
    %2076 = vmatpush1.bf16.xpose.msra.mxu0 0
    %2077 = vmatprep.subr.bf16.mxu0 0
    %2078 = vmatpush1.bf16.xpose.msra.mxu0 0
    %2079 = vmatprep.subr.bf16.mxu0 0
    %2080 = vmatpush1.bf16.xpose.msra.mxu0 0
    %2081 = vmatprep.subr.bf16.mxu0 0
    %2082 = vmatpush1.bf16.xpose.msra.mxu0 0
    %2083 = vmatprep.subr.bf16.mxu0 0
    %2084 = vmatpush1.bf16.xpose.msra.mxu0 0
    %2085 = vmatprep.mubr.bf16.mxu0 0
    %2086 = vmatmul.mubr.bf16.gmra.mrb[0].mxu0 %v2030
    %v2087 = vpop.f32.mrb[0].mxu0
    %v2088 = vadd.f32 0.0, %v2087
    %v2089 = vpop.f32.mrb[0].mxu0
    %v2090 = vpop.f32.mrb[0].mxu0
    %v2091 = vadd.f32 0.0, %v2090
    %v2092 = vpop.f32.mrb[0].mxu0
    %2093 = vmatprep.mubr.bf16.mxu0 0
    %2094 = vmatmul.mubr.bf16.gmra.mrb[0].mxu0 %v2033
    %v2095 = vpop.f32.mrb[0].mxu0
    %v2096 = vadd.f32 0.0, %v2095
    %v2097 = vpop.f32.mrb[0].mxu0
    %v2098 = vpop.f32.mrb[0].mxu0
    %v2099 = vadd.f32 0.0, %v2098
    %v2100 = vpop.f32.mrb[0].mxu0
    %2101 = vmatprep.mubr.bf16.mxu0 0
    %2102 = vmatmul.mubr.bf16.gmra.mrb[0].mxu0 %v2036
    %v2103 = vpop.f32.mrb[0].mxu0
    %v2104 = vadd.f32 0.0, %v2103
    %v2105 = vpop.f32.mrb[0].mxu0
    %v2106 = vpop.f32.mrb[0].mxu0
    %v2107 = vadd.f32 0.0, %v2106
    %v2108 = vpop.f32.mrb[0].mxu0
    %2109 = vmatprep.mubr.bf16.mxu0 0
    %2110 = vmatmul.mubr.bf16.gmra.mrb[0].mxu0 %v2039
    %v2111 = vpop.f32.mrb[0].mxu0
    %v2112 = vadd.f32 0.0, %v2111
    %v2113 = vpop.f32.mrb[0].mxu0
    %v2114 = vpop.f32.mrb[0].mxu0
    %v2115 = vadd.f32 0.0, %v2114
    %v2116 = vpop.f32.mrb[0].mxu0
    %2117 = vdwg.mxu0
    %v2118 = vmul.f32 %v2088, 0.25
    %v2119 = vmul.f32 %v2091, 0.25
    %v2120 = vmul.f32 %v2096, 0.25
    %v2121 = vmul.f32 %v2099, 0.25
    %v2122 = vmul.f32 %v2104, 0.25
    %v2123 = vmul.f32 %v2107, 0.25
    %v2124 = vmul.f32 %v2112, 0.25
    %v2125 = vmul.f32 %v2115, 0.25
    %v2126 = vadd.f32 %v2118, %v181
    %v2127 = vadd.f32 %v2119, %v182
    %v2128 = vadd.f32 %v2120, %v183
    %v2129 = vadd.f32 %v2121, %v184
    %v2130 = vadd.f32 %v2122, %v185
    %v2131 = vadd.f32 %v2123, %v186
    %v2132 = vadd.f32 %v2124, %v187
    %v2133 = vadd.f32 %v2125, %v188
    %v2134 = vsel %vm251, %v2126, -inf
    %2135 = vmax.xlane.f32.xlu0 %v2134
    %v2136 = vpop.xlane.xlu0 %2135
    %v2137 = vsel %vm251, %v2127, -inf
    %2138 = vmax.xlane.f32.xlu0 %v2137
    %v2139 = vpop.xlane.xlu0 %2138
    %v2140 = vsel %vm251, %v2128, -inf
    %2141 = vmax.xlane.f32.xlu0 %v2140
    %v2142 = vpop.xlane.xlu0 %2141
    %v2143 = vsel %vm251, %v2129, -inf
    %2144 = vmax.xlane.f32.xlu0 %v2143
    %v2145 = vpop.xlane.xlu0 %2144
    %v2146 = vsel %vm251, %v2130, -inf
    %2147 = vmax.xlane.f32.xlu0 %v2146
    %v2148 = vpop.xlane.xlu0 %2147
    %v2149 = vsel %vm251, %v2131, -inf
    %2150 = vmax.xlane.f32.xlu0 %v2149
    %v2151 = vpop.xlane.xlu0 %2150
    %v2152 = vsel %vm251, %v2132, -inf
    %2153 = vmax.xlane.f32.xlu0 %v2152
    %v2154 = vpop.xlane.xlu0 %2153
    %v2155 = vsel %vm251, %v2133, -inf
    %2156 = vmax.xlane.f32.xlu0 %v2155
    %v2157 = vpop.xlane.xlu0 %2156
    %v2158 = vsub.f32 %v2126, %v2136
    %v2159 = vsub.f32 %v2127, %v2139
    %v2160 = vsub.f32 %v2128, %v2142
    %v2161 = vsub.f32 %v2129, %v2145
    %v2162 = vsub.f32 %v2130, %v2148
    %v2163 = vsub.f32 %v2131, %v2151
    %v2164 = vsub.f32 %v2132, %v2154
    %v2165 = vsub.f32 %v2133, %v2157
    %v2166 = vmul.f32 %v2158, 1.442695
    %v2167 = vpow.pop %v2166
    %v2168 = vmul.f32 %v2159, 1.442695
    %v2169 = vpow.pop %v2168
    %v2170 = vmul.f32 %v2160, 1.442695
    %v2171 = vpow.pop %v2170
    %v2172 = vmul.f32 %v2161, 1.442695
    %v2173 = vpow.pop %v2172
    %v2174 = vmul.f32 %v2162, 1.442695
    %v2175 = vpow.pop %v2174
    %v2176 = vmul.f32 %v2163, 1.442695
    %v2177 = vpow.pop %v2176
    %v2178 = vmul.f32 %v2164, 1.442695
    %v2179 = vpow.pop %v2178
    %v2180 = vmul.f32 %v2165, 1.442695
    %v2181 = vpow.pop %v2180
    %v2182 = vsel %vm251, %v2167, 0.0
    %2183 = vadd.xlane.f32.xlu0 %v2182
    %v2184 = vpop.xlane.xlu0 %2183
    %v2185 = vsel %vm251, %v2169, 0.0
    %2186 = vadd.xlane.f32.xlu0 %v2185
    %v2187 = vpop.xlane.xlu0 %2186
    %v2188 = vsel %vm251, %v2171, 0.0
    %2189 = vadd.xlane.f32.xlu0 %v2188
    %v2190 = vpop.xlane.xlu0 %2189
    %v2191 = vsel %vm251, %v2173, 0.0
    %2192 = vadd.xlane.f32.xlu0 %v2191
    %v2193 = vpop.xlane.xlu0 %2192
    %v2194 = vsel %vm251, %v2175, 0.0
    %2195 = vadd.xlane.f32.xlu0 %v2194
    %v2196 = vpop.xlane.xlu0 %2195
    %v2197 = vsel %vm251, %v2177, 0.0
    %2198 = vadd.xlane.f32.xlu0 %v2197
    %v2199 = vpop.xlane.xlu0 %2198
    %v2200 = vsel %vm251, %v2179, 0.0
    %2201 = vadd.xlane.f32.xlu0 %v2200
    %v2202 = vpop.xlane.xlu0 %2201
    %v2203 = vsel %vm251, %v2181, 0.0
    %2204 = vadd.xlane.f32.xlu0 %v2203
    %v2205 = vpop.xlane.xlu0 %2204
    %v2206 = vrcp.pop %v2184
    %v2207 = vmul.f32 %v2167, %v2206
    %v2208 = vrcp.pop %v2187
    %v2209 = vmul.f32 %v2169, %v2208
    %v2210 = vrcp.pop %v2190
    %v2211 = vmul.f32 %v2171, %v2210
    %v2212 = vrcp.pop %v2193
    %v2213 = vmul.f32 %v2173, %v2212
    %v2214 = vrcp.pop %v2196
    %v2215 = vmul.f32 %v2175, %v2214
    %v2216 = vrcp.pop %v2199
    %v2217 = vmul.f32 %v2177, %v2216
    %v2218 = vrcp.pop %v2202
    %v2219 = vmul.f32 %v2179, %v2218
    %v2220 = vrcp.pop %v2205
    %v2221 = vmul.f32 %v2181, %v2220
    %v2222 = vpack.c.bf16 %v2209, %v2207
    %v2223 = vpack.c.bf16 %v2213, %v2211
    %v2224 = vpack.c.bf16 %v2217, %v2215
    %v2225 = vpack.c.bf16 %v2221, %v2219
    %v2227 = vsel %vm251, %v2222, 0
    %v2230 = vsel %vm251, %v2223, 0
    %v2233 = vsel %vm251, %v2224, 0
    %v2236 = vsel %vm251, %v2225, 0
    %2238 = vmatprep.subr.bf16.mxu0 0
    %2239 = vmatpush1.bf16.msra.mxu0 %v2013
    %2240 = vmatprep.subr.bf16.mxu0 0
    %2241 = vmatpush1.bf16.msra.mxu0 %v2014
    %2242 = vmatprep.subr.bf16.mxu0 0
    %2243 = vmatpush1.bf16.msra.mxu0 %v2015
    %2244 = vmatprep.subr.bf16.mxu0 0
    %2245 = vmatpush1.bf16.msra.mxu0 %v2016
    %2246 = vmatprep.subr.bf16.mxu0 0
    %2247 = vmatpush1.bf16.msra.mxu0 0
    %2248 = vmatprep.subr.bf16.mxu0 0
    %2249 = vmatpush1.bf16.msra.mxu0 0
    %2250 = vmatprep.subr.bf16.mxu0 0
    %2251 = vmatpush1.bf16.msra.mxu0 0
    %2252 = vmatprep.subr.bf16.mxu0 0
    %2253 = vmatpush1.bf16.msra.mxu0 0
    %2254 = vmatprep.subr.bf16.mxu0 0
    %2255 = vmatpush1.bf16.msra.mxu0 0
    %2256 = vmatprep.subr.bf16.mxu0 0
    %2257 = vmatpush1.bf16.msra.mxu0 0
    %2258 = vmatprep.subr.bf16.mxu0 0
    %2259 = vmatpush1.bf16.msra.mxu0 0
    %2260 = vmatprep.subr.bf16.mxu0 0
    %2261 = vmatpush1.bf16.msra.mxu0 0
    %2262 = vmatprep.subr.bf16.mxu0 0
    %2263 = vmatpush1.bf16.msra.mxu0 0
    %2264 = vmatprep.subr.bf16.mxu0 0
    %2265 = vmatpush1.bf16.msra.mxu0 0
    %2266 = vmatprep.subr.bf16.mxu0 0
    %2267 = vmatpush1.bf16.msra.mxu0 0
    %2268 = vmatprep.subr.bf16.mxu0 0
    %2269 = vmatpush1.bf16.msra.mxu0 0
    %2270 = vmatprep.mubr.bf16.mxu0 0
    %2271 = vmatmul.mubr.bf16.gmra.mrb[0].mxu0 %v2227
    %v2272 = vpop.f32.mrb[0].mxu0
    %v2273 = vadd.f32 0.0, %v2272
    %v2274 = vpop.f32.mrb[0].mxu0
    %v2275 = vpop.f32.mrb[0].mxu0
    %v2276 = vadd.f32 0.0, %v2275
    %v2277 = vpop.f32.mrb[0].mxu0
    %2278 = vmatprep.mubr.bf16.mxu0 0
    %2279 = vmatmul.mubr.bf16.gmra.mrb[0].mxu0 %v2230
    %v2280 = vpop.f32.mrb[0].mxu0
    %v2281 = vadd.f32 0.0, %v2280
    %v2282 = vpop.f32.mrb[0].mxu0
    %v2283 = vpop.f32.mrb[0].mxu0
    %v2284 = vadd.f32 0.0, %v2283
    %v2285 = vpop.f32.mrb[0].mxu0
    %2286 = vmatprep.mubr.bf16.mxu0 0
    %2287 = vmatmul.mubr.bf16.gmra.mrb[0].mxu0 %v2233
    %v2288 = vpop.f32.mrb[0].mxu0
    %v2289 = vadd.f32 0.0, %v2288
    %v2290 = vpop.f32.mrb[0].mxu0
    %v2291 = vpop.f32.mrb[0].mxu0
    %v2292 = vadd.f32 0.0, %v2291
    %v2293 = vpop.f32.mrb[0].mxu0
    %2294 = vmatprep.mubr.bf16.mxu0 0
    %2295 = vmatmul.mubr.bf16.gmra.mrb[0].mxu0 %v2236
    %v2296 = vpop.f32.mrb[0].mxu0
    %v2297 = vadd.f32 0.0, %v2296
    %v2298 = vpop.f32.mrb[0].mxu0
    %v2299 = vpop.f32.mrb[0].mxu0
    %v2300 = vadd.f32 0.0, %v2299
    %v2301 = vpop.f32.mrb[0].mxu0
    %2302 = vdwg.mxu0
    %2305 = vrot.lane.b32.xlu0 %v2281, 16
    %v2306 = vpop.permute.xlu0 %2305
    %2307 = vrot.lane.b32.xlu0 %v2284, 16
    %v2308 = vpop.permute.xlu0 %2307
    %2313 = vrot.lane.b32.xlu0 %v2289, 32
    %v2314 = vpop.permute.xlu0 %2313
    %2315 = vrot.lane.b32.xlu0 %v2292, 32
    %v2316 = vpop.permute.xlu0 %2315
    %2321 = vrot.lane.b32.xlu0 %v2297, 48
    %v2322 = vpop.permute.xlu0 %2321
    %2323 = vrot.lane.b32.xlu0 %v2300, 48
    %v2324 = vpop.permute.xlu0 %2323
    %v2327 = vsel %vm358, %v2273, %v2306
    %v2328 = vsel %vm358, %v2276, %v2308
    %v2329 = vsel %vm131, %v2327, %v2314
    %v2330 = vsel %vm131, %v2328, %v2316
    %v2331 = vsel %vm661, %v2329, %v2322
    %v2332 = vsel %vm661, %v2330, %v2324
    %v2333 = vpack.c.bf16 %v2332, %v2331
    %s2334 = scalar_lea.vmem %s6, 64
    %v2335 = vld [vmem:[%s2334] sm:$0xf]
    %v2336 = vld [vmem:[%s2334 + $0x4] sm:$0xf]
    %v2337 = vld [vmem:[%s2334 + $0x8] sm:$0xf]
    %v2338 = vld [vmem:[%s2334 + $0xc] sm:$0xf]
    %v2339 = vld [vmem:[%s2334 + $0x10] sm:$0xf]
    %v2340 = vld [vmem:[%s2334 + $0x14] sm:$0xf]
    %v2341 = vld [vmem:[%s2334 + $0x18] sm:$0xf]
    %v2342 = vld [vmem:[%s2334 + $0x1c] sm:$0xf]
    %v2343 = vlaneseq
    %v2344 = vshrl.u32 %v2343, 7
    %v2345 = vsub.s32 0, %v2344
    %v2346 = vrot.slane %v1859, %v2345
    %v2355 = vunpack.c.l.b16 %v2335
    %v2356 = vunpack.c.l.b16 %v2336
    %v2357 = vunpack.c.l.b16 %v2337
    %v2358 = vunpack.c.l.b16 %v2338
    %v2359 = vunpack.c.l.b16 %v2339
    %v2360 = vunpack.c.l.b16 %v2340
    %v2361 = vunpack.c.l.b16 %v2341
    %v2362 = vunpack.c.l.b16 %v2342
    %v2363 = vpack.c.b16 %v2356, %v2355
    %v2364 = vpack.c.b16 %v2358, %v2357
    %v2365 = vpack.c.b16 %v2360, %v2359
    %v2366 = vpack.c.b16 %v2362, %v2361
    %v2372 = vsel %vm251, %v2333, 0
    %2374 = vmatprep.subr.bf16.mxu0 0
    %2375 = vmatpush1.bf16.msra.mxu0 %v2363
    %2376 = vmatprep.subr.bf16.mxu0 0
    %2377 = vmatpush1.bf16.msra.mxu0 %v2364
    %2378 = vmatprep.subr.bf16.mxu0 0
    %2379 = vmatpush1.bf16.msra.mxu0 %v2365
    %2380 = vmatprep.subr.bf16.mxu0 0
    %2381 = vmatpush1.bf16.msra.mxu0 %v2366
    %2382 = vmatprep.subr.bf16.mxu0 0
    %2383 = vmatpush1.bf16.msra.mxu0 0
    %2384 = vmatprep.subr.bf16.mxu0 0
    %2385 = vmatpush1.bf16.msra.mxu0 0
    %2386 = vmatprep.subr.bf16.mxu0 0
    %2387 = vmatpush1.bf16.msra.mxu0 0
    %2388 = vmatprep.subr.bf16.mxu0 0
    %2389 = vmatpush1.bf16.msra.mxu0 0
    %2390 = vmatprep.subr.bf16.mxu0 0
    %2391 = vmatpush1.bf16.msra.mxu0 0
    %2392 = vmatprep.subr.bf16.mxu0 0
    %2393 = vmatpush1.bf16.msra.mxu0 0
    %2394 = vmatprep.subr.bf16.mxu0 0
    %2395 = vmatpush1.bf16.msra.mxu0 0
    %2396 = vmatprep.subr.bf16.mxu0 0
    %2397 = vmatpush1.bf16.msra.mxu0 0
    %2398 = vmatprep.subr.bf16.mxu0 0
    %2399 = vmatpush1.bf16.msra.mxu0 0
    %2400 = vmatprep.subr.bf16.mxu0 0
    %2401 = vmatpush1.bf16.msra.mxu0 0
    %2402 = vmatprep.subr.bf16.mxu0 0
    %2403 = vmatpush1.bf16.msra.mxu0 0
    %2404 = vmatprep.subr.bf16.mxu0 0
    %2405 = vmatpush1.bf16.msra.mxu0 0
    %2406 = vmatprep.mubr.bf16.mxu0 0
    %2407 = vmatmul.mubr.bf16.gmra.mrb[0].mxu0 %v2372
    %v2408 = vpop.f32.mrb[0].mxu0
    %v2409 = vadd.f32 %v2346, %v2408
    %v2410 = vpop.f32.mrb[0].mxu0
    %v2411 = vpop.f32.mrb[0].mxu0
    %v2412 = vadd.f32 %v2346, %v2411
    %v2413 = vpop.f32.mrb[0].mxu0
    %2414 = vdwg.mxu0
    %v2415 = vadd.f32 %v1856, %v2409
    %v2416 = vadd.f32 %v1857, %v2412
    %v2417 = vsel %vm251, %v2415, 0.0
    %2418 = vadd.xlane.f32.xlu0 %v2417
    %v2419 = vpop.xlane.xlu0 %2418
    %v2420 = vsel %vm251, %v2416, 0.0
    %2421 = vadd.xlane.f32.xlu0 %v2420
    %v2422 = vpop.xlane.xlu0 %2421
    %v2423 = vmul.f32 %v2419, %v753
    %v2424 = vmul.f32 %v2422, %v753
    %v2425 = vsub.f32 %v2415, %v2423
    %v2426 = vsub.f32 %v2416, %v2424
    %v2427 = vmul.f32 %v2425, %v2425
    %v2428 = vmul.f32 %v2426, %v2426
    %v2429 = vsel %vm251, %v2427, 0.0
    %2430 = vadd.xlane.f32.xlu0 %v2429
    %v2431 = vpop.xlane.xlu0 %2430
    %v2432 = vsel %vm251, %v2428, 0.0
    %2433 = vadd.xlane.f32.xlu0 %v2432
    %v2434 = vpop.xlane.xlu0 %2433
    %v2435 = vmul.f32 %v2431, %v753
    %v2436 = vmul.f32 %v2434, %v753
    %v2437 = vadd.f32 %v2435, 1e-05
    %v2438 = vadd.f32 %v2436, 1e-05
    %v2439 = vrsqrt.pop %v2437
    %v2440 = vrsqrt.pop %v2438
    %v2441 = vmul.f32 %v2425, %v2439
    %v2442 = vmul.f32 %v2426, %v2440
    %v2443 = vlaneseq
    %v2444 = vshrl.u32 %v2443, 7
    %v2445 = vsub.s32 2, %v2444
    %v2446 = vrot.slane %v1859, %v2445
    %v2447 = vmul.f32 %v2441, %v2446
    %v2448 = vmul.f32 %v2442, %v2446
    %v2449 = vlaneseq
    %v2450 = vshrl.u32 %v2449, 7
    %v2451 = vsub.s32 3, %v2450
    %v2452 = vrot.slane %v1859, %v2451
    %v2453 = vadd.f32 %v2447, %v2452
    %v2454 = vadd.f32 %v2448, %v2452
    %v2455 = vpack.c.bf16 %v2454, %v2453
    %s2456 = scalar_lea.vmem %s7, 64
    %v2457 = vld [vmem:[%s2456] sm:$0xf]
    %v2458 = vld [vmem:[%s2456 + $0x4] sm:$0xf]
    %v2459 = vld [vmem:[%s2456 + $0x8] sm:$0xf]
    %v2460 = vld [vmem:[%s2456 + $0xc] sm:$0xf]
    %v2461 = vld [vmem:[%s2456 + $0x10] sm:$0xf]
    %v2462 = vld [vmem:[%s2456 + $0x14] sm:$0xf]
    %v2463 = vld [vmem:[%s2456 + $0x18] sm:$0xf]
    %v2464 = vld [vmem:[%s2456 + $0x1c] sm:$0xf]
    %s2465 = scalar_lea.vmem [#allocation4], 2
    %v2466 = vld [vmem:[%s2465] sm:$0x1]
    %v2468 = vlaneseq
    %v2469 = vshrl.u32 %v2468, 7
    %v2470 = vsub.s32 0, %v2469
    %v2471 = vrot.slane %v2466, %v2470
    %v2481 = vunpack.c.l.b16 %v2457
    %v2482 = vunpack.c.l.b16 %v2458
    %v2483 = vunpack.c.l.b16 %v2459
    %v2484 = vunpack.c.l.b16 %v2460
    %v2485 = vunpack.c.l.b16 %v2461
    %v2486 = vunpack.c.l.b16 %v2462
    %v2487 = vunpack.c.l.b16 %v2463
    %v2488 = vunpack.c.l.b16 %v2464
    %v2489 = vpack.c.b16 %v2482, %v2481
    %v2490 = vpack.c.b16 %v2484, %v2483
    %v2491 = vpack.c.b16 %v2486, %v2485
    %v2492 = vpack.c.b16 %v2488, %v2487
    %v2498 = vsel %vm251, %v2455, 0
    %2500 = vmatprep.subr.bf16.mxu0 0
    %2501 = vmatpush1.bf16.msra.mxu0 %v2489
    %2502 = vmatprep.subr.bf16.mxu0 0
    %2503 = vmatpush1.bf16.msra.mxu0 %v2490
    %2504 = vmatprep.subr.bf16.mxu0 0
    %2505 = vmatpush1.bf16.msra.mxu0 %v2491
    %2506 = vmatprep.subr.bf16.mxu0 0
    %2507 = vmatpush1.bf16.msra.mxu0 %v2492
    %2508 = vmatprep.subr.bf16.mxu0 0
    %2509 = vmatpush1.bf16.msra.mxu0 0
    %2510 = vmatprep.subr.bf16.mxu0 0
    %2511 = vmatpush1.bf16.msra.mxu0 0
    %2512 = vmatprep.subr.bf16.mxu0 0
    %2513 = vmatpush1.bf16.msra.mxu0 0
    %2514 = vmatprep.subr.bf16.mxu0 0
    %2515 = vmatpush1.bf16.msra.mxu0 0
    %2516 = vmatprep.subr.bf16.mxu0 0
    %2517 = vmatpush1.bf16.msra.mxu0 0
    %2518 = vmatprep.subr.bf16.mxu0 0
    %2519 = vmatpush1.bf16.msra.mxu0 0
    %2520 = vmatprep.subr.bf16.mxu0 0
    %2521 = vmatpush1.bf16.msra.mxu0 0
    %2522 = vmatprep.subr.bf16.mxu0 0
    %2523 = vmatpush1.bf16.msra.mxu0 0
    %2524 = vmatprep.subr.bf16.mxu0 0
    %2525 = vmatpush1.bf16.msra.mxu0 0
    %2526 = vmatprep.subr.bf16.mxu0 0
    %2527 = vmatpush1.bf16.msra.mxu0 0
    %2528 = vmatprep.subr.bf16.mxu0 0
    %2529 = vmatpush1.bf16.msra.mxu0 0
    %2530 = vmatprep.subr.bf16.mxu0 0
    %2531 = vmatpush1.bf16.msra.mxu0 0
    %2532 = vmatprep.mubr.bf16.mxu0 0
    %2533 = vmatmul.mubr.bf16.gmra.mrb[0].mxu0 %v2498
    %v2534 = vpop.f32.mrb[0].mxu0
    %v2535 = vadd.f32 %v2471, %v2534
    %v2536 = vpop.f32.mrb[0].mxu0
    %v2537 = vpop.f32.mrb[0].mxu0
    %v2538 = vadd.f32 %v2471, %v2537
    %v2539 = vpop.f32.mrb[0].mxu0
    %2540 = vdwg.mxu0
    %v2541 = vmax.f32 %v2535, 0.0
    %v2542 = vmax.f32 %v2538, 0.0
    %v2543 = vpack.c.bf16 %v2542, %v2541
    %s2544 = scalar_lea.vmem %s9, 128
    %v2545 = vld [vmem:[%s2544] sm:$0xf]
    %v2546 = vld [vmem:[%s2544 + $0x4] sm:$0xf]
    %v2547 = vld [vmem:[%s2544 + $0x8] sm:$0xf]
    %v2548 = vld [vmem:[%s2544 + $0xc] sm:$0xf]
    %v2549 = vld [vmem:[%s2544 + $0x10] sm:$0xf]
    %v2550 = vld [vmem:[%s2544 + $0x14] sm:$0xf]
    %v2551 = vld [vmem:[%s2544 + $0x18] sm:$0xf]
    %v2552 = vld [vmem:[%s2544 + $0x1c] sm:$0xf]
    %v2553 = vld [vmem:[%s2544 + $0x20] sm:$0xf]
    %v2554 = vld [vmem:[%s2544 + $0x24] sm:$0xf]
    %v2555 = vld [vmem:[%s2544 + $0x28] sm:$0xf]
    %v2556 = vld [vmem:[%s2544 + $0x2c] sm:$0xf]
    %v2557 = vld [vmem:[%s2544 + $0x30] sm:$0xf]
    %v2558 = vld [vmem:[%s2544 + $0x34] sm:$0xf]
    %v2559 = vld [vmem:[%s2544 + $0x38] sm:$0xf]
    %v2560 = vld [vmem:[%s2544 + $0x3c] sm:$0xf]
    %v2561 = vlaneseq
    %v2562 = vshrl.u32 %v2561, 7
    %v2563 = vsub.s32 1, %v2562
    %v2564 = vrot.slane %v1859, %v2563
    %v2581 = vunpack.c.l.b16 %v2545
    %v2582 = vunpack.c.l.b16 %v2546
    %v2583 = vunpack.c.l.b16 %v2547
    %v2584 = vunpack.c.l.b16 %v2548
    %v2585 = vunpack.c.l.b16 %v2549
    %v2586 = vunpack.c.l.b16 %v2550
    %v2587 = vunpack.c.l.b16 %v2551
    %v2588 = vunpack.c.l.b16 %v2552
    %v2589 = vunpack.c.l.b16 %v2553
    %v2590 = vunpack.c.l.b16 %v2554
    %v2591 = vunpack.c.l.b16 %v2555
    %v2592 = vunpack.c.l.b16 %v2556
    %v2593 = vunpack.c.l.b16 %v2557
    %v2594 = vunpack.c.l.b16 %v2558
    %v2595 = vunpack.c.l.b16 %v2559
    %v2596 = vunpack.c.l.b16 %v2560
    %v2597 = vpack.c.b16 %v2582, %v2581
    %v2598 = vpack.c.b16 %v2584, %v2583
    %v2599 = vpack.c.b16 %v2586, %v2585
    %v2600 = vpack.c.b16 %v2588, %v2587
    %v2601 = vpack.c.b16 %v2590, %v2589
    %v2602 = vpack.c.b16 %v2592, %v2591
    %v2603 = vpack.c.b16 %v2594, %v2593
    %v2604 = vpack.c.b16 %v2596, %v2595
    %2613 = vmatprep.subr.bf16.mxu0 0
    %2614 = vmatpush1.bf16.msra.mxu0 %v2597
    %2615 = vmatprep.subr.bf16.mxu0 0
    %2616 = vmatpush1.bf16.msra.mxu0 %v2598
    %2617 = vmatprep.subr.bf16.mxu0 0
    %2618 = vmatpush1.bf16.msra.mxu0 %v2599
    %2619 = vmatprep.subr.bf16.mxu0 0
    %2620 = vmatpush1.bf16.msra.mxu0 %v2600
    %2621 = vmatprep.subr.bf16.mxu0 0
    %2622 = vmatpush1.bf16.msra.mxu0 %v2601
    %2623 = vmatprep.subr.bf16.mxu0 0
    %2624 = vmatpush1.bf16.msra.mxu0 %v2602
    %2625 = vmatprep.subr.bf16.mxu0 0
    %2626 = vmatpush1.bf16.msra.mxu0 %v2603
    %2627 = vmatprep.subr.bf16.mxu0 0
    %2628 = vmatpush1.bf16.msra.mxu0 %v2604
    %2629 = vmatprep.subr.bf16.mxu0 0
    %2630 = vmatpush1.bf16.msra.mxu0 0
    %2631 = vmatprep.subr.bf16.mxu0 0
    %2632 = vmatpush1.bf16.msra.mxu0 0
    %2633 = vmatprep.subr.bf16.mxu0 0
    %2634 = vmatpush1.bf16.msra.mxu0 0
    %2635 = vmatprep.subr.bf16.mxu0 0
    %2636 = vmatpush1.bf16.msra.mxu0 0
    %2637 = vmatprep.subr.bf16.mxu0 0
    %2638 = vmatpush1.bf16.msra.mxu0 0
    %2639 = vmatprep.subr.bf16.mxu0 0
    %2640 = vmatpush1.bf16.msra.mxu0 0
    %2641 = vmatprep.subr.bf16.mxu0 0
    %2642 = vmatpush1.bf16.msra.mxu0 0
    %2643 = vmatprep.subr.bf16.mxu0 0
    %2644 = vmatpush1.bf16.msra.mxu0 0
    %2645 = vmatprep.mubr.bf16.mxu0 0
    %2646 = vmatmul.mubr.bf16.gmra.mrb[0].mxu0 %v2543
    %v2647 = vpop.f32.mrb[0].mxu0
    %v2648 = vadd.f32 %v2564, %v2647
    %v2649 = vpop.f32.mrb[0].mxu0
    %v2650 = vpop.f32.mrb[0].mxu0
    %v2651 = vadd.f32 %v2564, %v2650
    %v2652 = vpop.f32.mrb[0].mxu0
    %2653 = vdwg.mxu0
    %v2654 = vadd.f32 %v2453, %v2648
    %v2655 = vadd.f32 %v2454, %v2651
    %v2656 = vsel %vm251, %v2654, 0.0
    %2657 = vadd.xlane.f32.xlu0 %v2656
    %v2658 = vpop.xlane.xlu0 %2657
    %v2659 = vsel %vm251, %v2655, 0.0
    %2660 = vadd.xlane.f32.xlu0 %v2659
    %v2661 = vpop.xlane.xlu0 %2660
    %v2662 = vmul.f32 %v2658, %v753
    %v2663 = vmul.f32 %v2661, %v753
    %v2664 = vsub.f32 %v2654, %v2662
    %v2665 = vsub.f32 %v2655, %v2663
    %v2666 = vmul.f32 %v2664, %v2664
    %v2667 = vmul.f32 %v2665, %v2665
    %v2668 = vsel %vm251, %v2666, 0.0
    %2669 = vadd.xlane.f32.xlu0 %v2668
    %v2670 = vpop.xlane.xlu0 %2669
    %v2671 = vsel %vm251, %v2667, 0.0
    %2672 = vadd.xlane.f32.xlu0 %v2671
    %v2673 = vpop.xlane.xlu0 %2672
    %v2674 = vmul.f32 %v2670, %v753
    %v2675 = vmul.f32 %v2673, %v753
    %v2676 = vadd.f32 %v2674, 1e-05
    %v2677 = vadd.f32 %v2675, 1e-05
    %v2678 = vrsqrt.pop %v2676
    %v2679 = vrsqrt.pop %v2677
    %v2680 = vmul.f32 %v2664, %v2678
    %v2681 = vmul.f32 %v2665, %v2679
    %v2682 = vlaneseq
    %v2683 = vshrl.u32 %v2682, 7
    %v2684 = vsub.s32 4, %v2683
    %v2685 = vrot.slane %v1859, %v2684
    %v2686 = vmul.f32 %v2680, %v2685
    %v2687 = vmul.f32 %v2681, %v2685
    %v2688 = vlaneseq
    %v2689 = vshrl.u32 %v2688, 7
    %v2690 = vsub.s32 5, %v2689
    %v2691 = vrot.slane %v1859, %v2690
    %v2692 = vadd.f32 %v2686, %v2691
    %v2693 = vadd.f32 %v2687, %v2691
    %v2694 = vpack.c.bf16 %v2693, %v2692
    %v2695 = vld [vmem:[%s11] sm:$0xf]
    %v2696 = vld [vmem:[%s11 + $0x4] sm:$0xf]
    %v2697 = vld [vmem:[%s11 + $0x8] sm:$0xf]
    %v2698 = vld [vmem:[%s11 + $0xc] sm:$0xf]
    %v2699 = vld [vmem:[%s11 + $0x10] sm:$0xf]
    %v2700 = vld [vmem:[%s11 + $0x14] sm:$0xf]
    %v2701 = vld [vmem:[%s11 + $0x18] sm:$0xf]
    %v2702 = vld [vmem:[%s11 + $0x1c] sm:$0xf]
    %v2703 = vld [vmem:[#allocation7] sm:$0x1]
    %v2705 = vlaneseq
    %v2706 = vshrl.u32 %v2705, 7
    %v2707 = vsub.s32 0, %v2706
    %v2708 = vrot.slane %v2703, %v2707
    %v2718 = vunpack.c.l.b16 %v2695
    %v2719 = vunpack.c.l.b16 %v2696
    %v2720 = vunpack.c.l.b16 %v2697
    %v2721 = vunpack.c.l.b16 %v2698
    %v2722 = vunpack.c.l.b16 %v2699
    %v2723 = vunpack.c.l.b16 %v2700
    %v2724 = vunpack.c.l.b16 %v2701
    %v2725 = vunpack.c.l.b16 %v2702
    %v2726 = vpack.c.b16 %v2719, %v2718
    %v2727 = vpack.c.b16 %v2721, %v2720
    %v2728 = vpack.c.b16 %v2723, %v2722
    %v2729 = vpack.c.b16 %v2725, %v2724
    %v2735 = vsel %vm251, %v2694, 0
    %2737 = vmatprep.subr.bf16.mxu0 0
    %2738 = vmatpush1.bf16.msra.mxu0 %v2726
    %2739 = vmatprep.subr.bf16.mxu0 0
    %2740 = vmatpush1.bf16.msra.mxu0 %v2727
    %2741 = vmatprep.subr.bf16.mxu0 0
    %2742 = vmatpush1.bf16.msra.mxu0 %v2728
    %2743 = vmatprep.subr.bf16.mxu0 0
    %2744 = vmatpush1.bf16.msra.mxu0 %v2729
    %2745 = vmatprep.subr.bf16.mxu0 0
    %2746 = vmatpush1.bf16.msra.mxu0 0
    %2747 = vmatprep.subr.bf16.mxu0 0
    %2748 = vmatpush1.bf16.msra.mxu0 0
    %2749 = vmatprep.subr.bf16.mxu0 0
    %2750 = vmatpush1.bf16.msra.mxu0 0
    %2751 = vmatprep.subr.bf16.mxu0 0
    %2752 = vmatpush1.bf16.msra.mxu0 0
    %2753 = vmatprep.subr.bf16.mxu0 0
    %2754 = vmatpush1.bf16.msra.mxu0 0
    %2755 = vmatprep.subr.bf16.mxu0 0
    %2756 = vmatpush1.bf16.msra.mxu0 0
    %2757 = vmatprep.subr.bf16.mxu0 0
    %2758 = vmatpush1.bf16.msra.mxu0 0
    %2759 = vmatprep.subr.bf16.mxu0 0
    %2760 = vmatpush1.bf16.msra.mxu0 0
    %2761 = vmatprep.subr.bf16.mxu0 0
    %2762 = vmatpush1.bf16.msra.mxu0 0
    %2763 = vmatprep.subr.bf16.mxu0 0
    %2764 = vmatpush1.bf16.msra.mxu0 0
    %2765 = vmatprep.subr.bf16.mxu0 0
    %2766 = vmatpush1.bf16.msra.mxu0 0
    %2767 = vmatprep.subr.bf16.mxu0 0
    %2768 = vmatpush1.bf16.msra.mxu0 0
    %2769 = vmatprep.mubr.bf16.mxu0 0
    %2770 = vmatmul.mubr.bf16.gmra.mrb[0].mxu0 %v2735
    %v2771 = vpop.f32.mrb[0].mxu0
    %v2772 = vadd.f32 %v2708, %v2771
    %v2773 = vpop.f32.mrb[0].mxu0
    %v2774 = vpop.f32.mrb[0].mxu0
    %v2775 = vadd.f32 %v2708, %v2774
    %v2776 = vpop.f32.mrb[0].mxu0
    %2777 = vdwg.mxu0
    %2778 = vst [vmem:[%s13] sm:$0xff] %v2772
    %2779 = vst [vmem:[%s13 + $0x8] sm:$0xff] %v2775
    // Predicated region
    $region70: #{forward.1} parent=1 // pred_check
      _
    $region71: #{forward.1} parent=1 // pred_check_branch
      %2781 = sbr.rel (0) target = $region73
    $region72: #{forward.1} parent=1 // pred_region
      _
    $region73: #{forward.1} parent=1 // pred_fallthru
      _
    // Predicated region
    $region74: #{forward.1} parent=1 // pred_check
      _
    $region75: #{forward.1} parent=1 // pred_check_branch
      %2783 = sbr.rel (0) target = $region77
    $region76: #{forward.1} parent=1 // pred_region
      _
    $region77: #{forward.1} parent=1 // pred_fallthru
      _
    %2784 = vsyncpa [#allocation3], 1
    %2785 = vsyncpa [#allocation5], 1
    %2786 = vsyncpa [#allocation8], 1

</llo_original>
